<compile_context>
chip_gen: v6e
topology: v6e:2x2x1
jax: 0.10.0
libtpu: 0.0.40
codegen_flags: <defaults>
</compile_context>

<pallas_src>
import functools

import jax
import jax.numpy as jnp
from jax import lax
from jax.experimental import pallas as pl
from jax.experimental.pallas import tpu as pltpu

BN_EPS = 1e-5
VMEM_LIMIT = 48 * 1024 * 1024   # conservative: fits v7x's 64 MiB VMEM with headroom


# ----------------------------------------------------------------------------
# Pallas kernels
# ----------------------------------------------------------------------------
def _matmul_kernel(x_ref, w_ref, o_ref):
    # x_ref: (bm, K) bf16, w_ref: (K, Np) bf16 (resident), o_ref: (bm, Np) f32
    o_ref[...] = jnp.dot(x_ref[...], w_ref[...],
                         preferred_element_type=jnp.float32)


def _bn_stats_kernel(x_ref, stats_ref, sum_ref, sq_ref, *, inv_count):
    # Accumulate per-channel sum / sum-of-squares across the M grid axis.
    i = pl.program_id(0)

    @pl.when(i == 0)
    def _():
        sum_ref[...] = jnp.zeros_like(sum_ref)
        sq_ref[...] = jnp.zeros_like(sq_ref)

    x = x_ref[...]
    sum_ref[...] += jnp.sum(x, axis=0, keepdims=True)
    sq_ref[...] += jnp.sum(x * x, axis=0, keepdims=True)

    @pl.when(i == pl.num_programs(0) - 1)
    def _():
        mean = sum_ref[...] * inv_count
        var = jnp.maximum(sq_ref[...] * inv_count - mean * mean, 0.0)  # biased, like torch BN
        stats_ref[0:1, :] = mean
        stats_ref[1:2, :] = lax.rsqrt(var + BN_EPS)


def _bn_norm_relu_kernel(x_ref, stats_ref, g_ref, b_ref, o_ref):
    # x_ref: (bm, C) f32; stats/g/b resident; o_ref: (bm, C) bf16
    mean = stats_ref[0:1, :]
    inv = stats_ref[1:2, :]
    y = (x_ref[...] - mean) * (inv * g_ref[...]) + b_ref[...]
    o_ref[...] = jnp.maximum(y, 0.0).astype(o_ref.dtype)


def _sigmoid_kernel(x_ref, o_ref):
    # exp on the EUP; approx reciprocal also on the EUP -> VALU stays free.
    e = jnp.exp(-x_ref[...])
    o_ref[...] = pl.reciprocal(1.0 + e, approx=True).astype(o_ref.dtype)


# ----------------------------------------------------------------------------
# Pallas wrappers (tiling / grids)
# ----------------------------------------------------------------------------
def _pick_block(m, target):
    """Largest block <= target that divides m and satisfies the (8,128) rule."""
    if m <= target:
        return m
    bm = target
    while bm >= 8 and m % bm:
        bm //= 2
    return bm if (bm >= 8 and m % bm == 0) else m


def _matmul_pallas(x2d, wmat, *, tm=512):
    """(M,K) @ (K,N) on the MXU; bf16 inputs, f32 output, tiled over M."""
    M, K = x2d.shape
    N = wmat.shape[1]
    npad = (-N) % 128
    if npad:                                   # lane-dense output stores
        wmat = jnp.pad(wmat, ((0, 0), (0, npad)))
    Np = N + npad
    bm = _pick_block(M, tm)

    out = pl.pallas_call(
        _matmul_kernel,
        out_shape=jax.ShapeDtypeStruct((M, Np), jnp.float32),
        grid=(M // bm,),
        in_specs=[
            pl.BlockSpec((bm, K), lambda i: (i, 0)),
            pl.BlockSpec((K, Np), lambda i: (0, 0)),   # VMEM-resident weights
        ],
        out_specs=pl.BlockSpec((bm, Np), lambda i: (i, 0)),
        compiler_params=pltpu.CompilerParams(
            dimension_semantics=("parallel",),
            vmem_limit_bytes=VMEM_LIMIT),
    )(x2d.astype(jnp.bfloat16), wmat.astype(jnp.bfloat16))
    return out[:, :N] if npad else out


def _bn_relu_pallas(x2d, gamma, beta, *, tm=1024):
    """Exact training-mode BatchNorm (stats over all M rows) + ReLU, two passes."""
    M, C = x2d.shape
    bm = _pick_block(M, tm)
    grid = (M // bm,)

    # Pass 1: per-channel sum / sumsq accumulated across the grid -> (mean, inv_std).
    stats = pl.pallas_call(
        functools.partial(_bn_stats_kernel, inv_count=1.0 / M),
        out_shape=jax.ShapeDtypeStruct((2, C), jnp.float32),
        grid=grid,
        in_specs=[pl.BlockSpec((bm, C), lambda i: (i, 0))],
        out_specs=pl.BlockSpec((2, C), lambda i: (0, 0)),
        scratch_shapes=[pltpu.VMEM((1, C), jnp.float32),
                        pltpu.VMEM((1, C), jnp.float32)],
        compiler_params=pltpu.CompilerParams(
            dimension_semantics=("arbitrary",),        # accumulating axis
            vmem_limit_bytes=VMEM_LIMIT),
    )(x2d)

    # Pass 2: tiled elementwise normalize + ReLU (f32 math, bf16 out for next GEMM).
    return pl.pallas_call(
        _bn_norm_relu_kernel,
        out_shape=jax.ShapeDtypeStruct((M, C), jnp.bfloat16),
        grid=grid,
        in_specs=[
            pl.BlockSpec((bm, C), lambda i: (i, 0)),
            pl.BlockSpec((2, C), lambda i: (0, 0)),
            pl.BlockSpec((1, C), lambda i: (0, 0)),
            pl.BlockSpec((1, C), lambda i: (0, 0)),
        ],
        out_specs=pl.BlockSpec((bm, C), lambda i: (i, 0)),
        compiler_params=pltpu.CompilerParams(
            dimension_semantics=("parallel",),
            vmem_limit_bytes=VMEM_LIMIT),
    )(x2d, stats, gamma.reshape(1, C), beta.reshape(1, C))


def _sigmoid_pallas(x, *, tm=1024):
    """Elementwise sigmoid on a lane-dense 2-D view of x."""
    shape = x.shape
    total = x.size
    lanes = 128
    while total % (lanes * 2) == 0 and lanes < 1024:
        lanes *= 2
    if total % lanes:
        lanes = total                     # tiny fallback: single full row
    rows = total // lanes
    bm = _pick_block(rows, tm)

    out = pl.pallas_call(
        _sigmoid_kernel,
        out_shape=jax.ShapeDtypeStruct((rows, lanes), jnp.float32),
        grid=(rows // bm,),
        in_specs=[pl.BlockSpec((bm, lanes), lambda i: (i, 0))],
        out_specs=pl.BlockSpec((bm, lanes), lambda i: (i, 0)),
        compiler_params=pltpu.CompilerParams(
            dimension_semantics=("parallel",),
            vmem_limit_bytes=VMEM_LIMIT),
    )(x.reshape(rows, lanes))
    return out.reshape(shape)


# ----------------------------------------------------------------------------
# Glue: ConvTranspose2d = GEMM (no upsampling) + col2im scatter-add (NHWC)
# ----------------------------------------------------------------------------
def _col2im_nhwc(cols, B, Hin, Win, Cout, k, stride, pad):
    """Scatter-add the GEMM columns back to the NHWC ConvTranspose output."""
    Hf = (Hin - 1) * stride + k
    Wf = (Win - 1) * stride + k
    cols = cols.reshape(B, Hin, Win, Cout, k, k)
    full = jnp.zeros((B, Hf, Wf, Cout), cols.dtype)
    hi_span = (Hin - 1) * stride + 1
    wi_span = (Win - 1) * stride + 1
    for kh in range(k):
        for kw in range(k):
            full = full.at[:, kh:kh + hi_span:stride,
                              kw:kw + wi_span:stride, :].add(cols[:, :, :, :, kh, kw])
    if pad:
        full = full[:, pad:Hf - pad, pad:Wf - pad, :]
    return full


def _deconv_layer(x_nhwc, w, stride, pad, gamma=None, beta=None, act="bn_relu"):
    """ConvTranspose2d(bias=False) [+ BatchNorm + ReLU | + Sigmoid], NHWC in/out."""
    B, Hin, Win, Cin = x_nhwc.shape
    cin_w, Cout, k, _ = w.shape
    assert Cin == cin_w
    wmat = w.reshape(Cin, Cout * k * k)                      # (ci) x (co, kh, kw)
    cols = _matmul_pallas(x_nhwc.reshape(B * Hin * Win, Cin), wmat)
    y = _col2im_nhwc(cols, B, Hin, Win, Cout, k, stride, pad)
    Hout, Wout = y.shape[1], y.shape[2]
    if act == "bn_relu":
        out = _bn_relu_pallas(y.reshape(B * Hout * Wout, Cout), gamma, beta)
        return out.reshape(B, Hout, Wout, Cout)
    return _sigmoid_pallas(y)


# ----------------------------------------------------------------------------
# _netG forward:  z (B, nz, 1, 1) -> image (B, nc, 32, 32)
# ----------------------------------------------------------------------------
def netg_forward(params, z):
    # TODO(synk): nn.parallel.data_parallel multi-GPU branch has no single-device
    # equivalent; this is the plain single-device forward.
    h = jnp.transpose(z, (0, 2, 3, 1))                                    # NHWC
    h = _deconv_layer(h, params["w1"], 1, 0, params["g1"], params["b1"])  # 1  -> 4
    h = _deconv_layer(h, params["w2"], 2, 1, params["g2"], params["b2"])  # 4  -> 8
    h = _deconv_layer(h, params["w3"], 2, 1, params["g3"], params["b3"])  # 8  -> 16
    h = _deconv_layer(h, params["w4"], 2, 1, act="sigmoid")               # 16 -> 32
    return jnp.transpose(h, (0, 3, 1, 2))                                 # NCHW out


def init_params(key, nz, ngf, nc):
    ks = jax.random.split(key, 4)
    std = 0.02  # DCGAN-style init; deterministic via PRNGKey
    return {
        "w1": jax.random.normal(ks[0], (nz, ngf * 8, 4, 4), jnp.float32) * std,
        "w2": jax.random.normal(ks[1], (ngf * 8, ngf * 4, 4, 4), jnp.float32) * std,
        "w3": jax.random.normal(ks[2], (ngf * 4, ngf * 2, 4, 4), jnp.float32) * std,
        "w4": jax.random.normal(ks[3], (ngf * 2, nc, 4, 4), jnp.float32) * std,
        "g1": jnp.ones((ngf * 8,), jnp.float32), "b1": jnp.zeros((ngf * 8,), jnp.float32),
        "g2": jnp.ones((ngf * 4,), jnp.float32), "b2": jnp.zeros((ngf * 4,), jnp.float32),
        "g3": jnp.ones((ngf * 2,), jnp.float32), "b3": jnp.zeros((ngf * 2,), jnp.float32),
    }


# ----------------------------------------------------------------------------
# Pure-JAX f32 reference (correctness check only)
# ----------------------------------------------------------------------------
def _conv_t_ref(x, w, stride, pad):
    k = w.shape[2]
    wf = jnp.transpose(w[:, :, ::-1, ::-1], (1, 0, 2, 3))  # (Cout, Cin, k, k)
    return lax.conv_general_dilated(
        x, wf, window_strides=(1, 1),
        padding=[(k - 1 - pad, k - 1 - pad)] * 2,
        lhs_dilation=(stride, stride),
        dimension_numbers=("NCHW", "OIHW", "NCHW"))


def _bn_relu_ref(x, g, b):
    mean = x.mean(axis=(0, 2, 3), keepdims=True)
    var = ((x - mean) ** 2).mean(axis=(0, 2, 3), keepdims=True)
    y = (x - mean) / jnp.sqrt(var + BN_EPS)
    y = y * g.reshape(1, -1, 1, 1) + b.reshape(1, -1, 1, 1)
    return jnp.maximum(y, 0.0)


def netg_ref(params, z):
    h = _bn_relu_ref(_conv_t_ref(z, params["w1"], 1, 0), params["g1"], params["b1"])
    h = _bn_relu_ref(_conv_t_ref(h, params["w2"], 2, 1), params["g2"], params["b2"])
    h = _bn_relu_ref(_conv_t_ref(h, params["w3"], 2, 1), params["g3"], params["b3"])
    return jax.nn.sigmoid(_conv_t_ref(h, params["w4"], 2, 1))


if __name__ == "__main__":
    B, nz, ngf, nc = 2, 8, 8, 3
    key = jax.random.PRNGKey(0)
    kp, kz = jax.random.split(key)
    params = init_params(kp, nz, ngf, nc)
    z = jax.random.normal(kz, (B, nz, 1, 1), jnp.float32)

    out = jax.block_until_ready(jax.jit(netg_forward)(params, z))
    assert out.shape == (B, nc, 32, 32), out.shape

    ref = jax.block_until_ready(netg_ref(params, z))
    err = float(jnp.max(jnp.abs(out - ref)))
    # bf16 MXU inputs + approx reciprocal -> relaxed tolerance vs f32 reference.
    assert err < 3e-2, err

    print("KERNEL_OK")
</pallas_src>

<mosaic_0001>
module attributes {stable_mosaic.version = 11 : i64} {
  func.func @_matmul_kernel(%arg0: i32, %arg1: memref<2x8xbf16, #tpu.memory_space<vmem>>, %arg2: memref<8x1024xbf16, #tpu.memory_space<vmem>>, %arg3: memref<2x1024xf32, #tpu.memory_space<vmem>>) attributes {dimension_semantics = [#tpu.dimension_semantics<parallel>], iteration_bounds = array<i64: 1>, scalar_prefetch = 0 : i64, scratch_operands = 0 : i64, tpu.core_type = #tpu.core_type<tc>, window_params = [{transform_indices = @transform_0, window_bounds = array<i64: 2, 8>}, {pipeline_mode = #tpu.pipeline_mode<synchronous>, transform_indices = @transform_1, window_bounds = array<i64: 8, 1024>}, {transform_indices = @transform_2, window_bounds = array<i64: 2, 1024>}]} {
    %c0 = arith.constant 0 : index
    %c0_0 = arith.constant 0 : index
    %0 = vector.load %arg1[%c0, %c0_0] : memref<2x8xbf16, #tpu.memory_space<vmem>>, vector<2x8xbf16>
    %c0_1 = arith.constant 0 : index
    %c0_2 = arith.constant 0 : index
    %1 = vector.load %arg2[%c0_1, %c0_2] : memref<8x1024xbf16, #tpu.memory_space<vmem>>, vector<8x1024xbf16>
    %cst = arith.constant dense<0.000000e+00> : vector<2x1024xf32>
    %2 = tpu.matmul %0, %1, %cst {dimension_numbers = #tpu.dot_dimension_numbers<[1], [0], [0], [1], [0, 0, 1, 1], [], []>} : vector<2x8xbf16>, vector<8x1024xbf16>, vector<2x1024xf32> -> vector<2x1024xf32>
    %c0_3 = arith.constant 0 : index
    %c0_4 = arith.constant 0 : index
    %3 = vector.load %arg3[%c0_3, %c0_4] : memref<2x1024xf32, #tpu.memory_space<vmem>>, vector<2x1024xf32>
    tpu.vector_store %arg3[%c0_3, %c0_4], %2 {strides = array<i32>} : memref<2x1024xf32, #tpu.memory_space<vmem>>, vector<2x1024xf32>,
    return
  }
  func.func @transform_0(%arg0: i32) -> (i32, i32) {
    %c0_i32 = arith.constant 0 : i32
    %c0_i32_0 = arith.constant 0 : i32
    return %arg0, %c0_i32 : i32, i32
  }
  func.func @transform_1(%arg0: i32) -> (i32, i32) {
    %c0_i32 = arith.constant 0 : i32
    %c0_i32_0 = arith.constant 0 : i32
    %c0_i32_1 = arith.constant 0 : i32
    return %c0_i32, %c0_i32_0 : i32, i32
  }
  func.func @transform_2(%arg0: i32) -> (i32, i32) {
    %c0_i32 = arith.constant 0 : i32
    %c0_i32_0 = arith.constant 0 : i32
    return %arg0, %c0_i32 : i32, i32
  }
}

module attributes {stable_mosaic.version = 11 : i64} {
  func.func @_bn_stats_kernel(%arg0: i32, %arg1: memref<32x64xf32, #tpu.memory_space<vmem>>, %arg2: memref<2x64xf32, #tpu.memory_space<vmem>>, %arg3: memref<1x64xf32, #tpu.memory_space<vmem>>, %arg4: memref<1x64xf32, #tpu.memory_space<vmem>>) attributes {dimension_semantics = [#tpu.dimension_semantics<arbitrary>], iteration_bounds = array<i64: 1>, scalar_prefetch = 0 : i64, scratch_operands = 2 : i64, tpu.core_type = #tpu.core_type<tc>, window_params = [{transform_indices = @transform_0, window_bounds = array<i64: 32, 64>}, {pipeline_mode = #tpu.pipeline_mode<synchronous>, transform_indices = @transform_1, window_bounds = array<i64: 2, 64>}]} {
    %c0_i32 = arith.constant 0 : i32
    %0 = arith.cmpi eq, %arg0, %c0_i32 : i32
    %1 = arith.extui %0 : i1 to i32
    %c0_i32_0 = arith.constant 0 : i32
    %2 = arith.cmpi ne, %1, %c0_i32_0 : i32
    scf.if %2 {
      %cst_13 = arith.constant 0.000000e+00 : f32
      %18 = vector.broadcast %cst_13 : f32 to vector<1x64xf32>
      %c0_14 = arith.constant 0 : index
      %c0_15 = arith.constant 0 : index
      %19 = vector.load %arg3[%c0_14, %c0_15] : memref<1x64xf32, #tpu.memory_space<vmem>>, vector<1x64xf32>
      tpu.vector_store %arg3[%c0_14, %c0_15], %18 {strides = array<i32>} : memref<1x64xf32, #tpu.memory_space<vmem>>, vector<1x64xf32>,
      %cst_16 = arith.constant 0.000000e+00 : f32
      %20 = vector.broadcast %cst_16 : f32 to vector<1x64xf32>
      %c0_17 = arith.constant 0 : index
      %c0_18 = arith.constant 0 : index
      %21 = vector.load %arg4[%c0_17, %c0_18] : memref<1x64xf32, #tpu.memory_space<vmem>>, vector<1x64xf32>
      tpu.vector_store %arg4[%c0_17, %c0_18], %20 {strides = array<i32>} : memref<1x64xf32, #tpu.memory_space<vmem>>, vector<1x64xf32>,
    } else {
    }
    %c0 = arith.constant 0 : index
    %c0_1 = arith.constant 0 : index
    %3 = vector.load %arg1[%c0, %c0_1] : memref<32x64xf32, #tpu.memory_space<vmem>>, vector<32x64xf32>
    %c0_2 = arith.constant 0 : index
    %c0_3 = arith.constant 0 : index
    %4 = vector.load %arg3[%c0_2, %c0_3] : memref<1x64xf32, #tpu.memory_space<vmem>>, vector<1x64xf32>
    %cst = arith.constant dense<0.000000e+00> : vector<64xf32>
    %5 = vector.multi_reduction <add>, %3, %cst [0] : vector<32x64xf32> to vector<64xf32>
    %6 = vector.shape_cast %5 : vector<64xf32> to vector<1x64xf32>
    %7 = arith.addf %4, %6 : vector<1x64xf32>
    %c0_4 = arith.constant 0 : index
    %c0_5 = arith.constant 0 : index
    %8 = vector.load %arg3[%c0_4, %c0_5] : memref<1x64xf32, #tpu.memory_space<vmem>>, vector<1x64xf32>
    tpu.vector_store %arg3[%c0_4, %c0_5], %7 {strides = array<i32>} : memref<1x64xf32, #tpu.memory_space<vmem>>, vector<1x64xf32>,
    %c0_6 = arith.constant 0 : index
    %c0_7 = arith.constant 0 : index
    %9 = vector.load %arg4[%c0_6, %c0_7] : memref<1x64xf32, #tpu.memory_space<vmem>>, vector<1x64xf32>
    %10 = arith.mulf %3, %3 : vector<32x64xf32>
    %cst_8 = arith.constant dense<0.000000e+00> : vector<64xf32>
    %11 = vector.multi_reduction <add>, %10, %cst_8 [0] : vector<32x64xf32> to vector<64xf32>
    %12 = vector.shape_cast %11 : vector<64xf32> to vector<1x64xf32>
    %13 = arith.addf %9, %12 : vector<1x64xf32>
    %c0_9 = arith.constant 0 : index
    %c0_10 = arith.constant 0 : index
    %14 = vector.load %arg4[%c0_9, %c0_10] : memref<1x64xf32, #tpu.memory_space<vmem>>, vector<1x64xf32>
    tpu.vector_store %arg4[%c0_9, %c0_10], %13 {strides = array<i32>} : memref<1x64xf32, #tpu.memory_space<vmem>>, vector<1x64xf32>,
    %c0_i32_11 = arith.constant 0 : i32
    %15 = arith.cmpi eq, %arg0, %c0_i32_11 : i32
    %16 = arith.extui %15 : i1 to i32
    %c0_i32_12 = arith.constant 0 : i32
    %17 = arith.cmpi ne, %16, %c0_i32_12 : i32
    scf.if %17 {
      %c0_13 = arith.constant 0 : index
      %c0_14 = arith.constant 0 : index
      %18 = vector.load %arg3[%c0_13, %c0_14] : memref<1x64xf32, #tpu.memory_space<vmem>>, vector<1x64xf32>
      %cst_15 = arith.constant 3.125000e-02 : f32
      %19 = vector.broadcast %cst_15 : f32 to vector<1x64xf32>
      %20 = arith.mulf %18, %19 : vector<1x64xf32>
      %c0_16 = arith.constant 0 : index
      %c0_17 = arith.constant 0 : index
      %21 = vector.load %arg4[%c0_16, %c0_17] : memref<1x64xf32, #tpu.memory_space<vmem>>, vector<1x64xf32>
      %cst_18 = arith.constant 3.125000e-02 : f32
      %22 = vector.broadcast %cst_18 : f32 to vector<1x64xf32>
      %23 = arith.mulf %21, %22 : vector<1x64xf32>
      %24 = arith.mulf %20, %20 : vector<1x64xf32>
      %25 = arith.subf %23, %24 : vector<1x64xf32>
      %cst_19 = arith.constant 0.000000e+00 : f32
      %26 = vector.broadcast %cst_19 : f32 to vector<1x64xf32>
      %27 = arith.maximumf %25, %26 : vector<1x64xf32>
      %c0_20 = arith.constant 0 : index
      %c0_21 = arith.constant 0 : index
      %28 = vector.load %arg2[%c0_20, %c0_21] : memref<2x64xf32, #tpu.memory_space<vmem>>, vector<1x64xf32>
      tpu.vector_store %arg2[%c0_20, %c0_21], %20 {strides = array<i32>} : memref<2x64xf32, #tpu.memory_space<vmem>>, vector<1x64xf32>,
      %cst_22 = arith.constant 9.99999974E-6 : f32
      %29 = vector.broadcast %cst_22 : f32 to vector<1x64xf32>
      %30 = arith.addf %27, %29 : vector<1x64xf32>
      %31 = math.rsqrt %30 : vector<1x64xf32>
      %c1 = arith.constant 1 : index
      %c0_23 = arith.constant 0 : index
      %32 = vector.load %arg2[%c1, %c0_23] : memref<2x64xf32, #tpu.memory_space<vmem>>, vector<1x64xf32>
      tpu.vector_store %arg2[%c1, %c0_23], %31 {strides = array<i32>} : memref<2x64xf32, #tpu.memory_space<vmem>>, vector<1x64xf32>,
    } else {
    }
    return
  }
  func.func @transform_0(%arg0: i32) -> (i32, i32) {
    %c0_i32 = arith.constant 0 : i32
    %c0_i32_0 = arith.constant 0 : i32
    return %arg0, %c0_i32 : i32, i32
  }
  func.func @transform_1(%arg0: i32) -> (i32, i32) {
    %c0_i32 = arith.constant 0 : i32
    %c0_i32_0 = arith.constant 0 : i32
    %c0_i32_1 = arith.constant 0 : i32
    return %c0_i32, %c0_i32_0 : i32, i32
  }
}

module attributes {stable_mosaic.version = 11 : i64} {
  func.func @_bn_norm_relu_kernel(%arg0: i32, %arg1: memref<32x64xf32, #tpu.memory_space<vmem>>, %arg2: memref<2x64xf32, #tpu.memory_space<vmem>>, %arg3: memref<1x64xf32, #tpu.memory_space<vmem>>, %arg4: memref<1x64xf32, #tpu.memory_space<vmem>>, %arg5: memref<32x64xbf16, #tpu.memory_space<vmem>>) attributes {dimension_semantics = [#tpu.dimension_semantics<parallel>], iteration_bounds = array<i64: 1>, scalar_prefetch = 0 : i64, scratch_operands = 0 : i64, tpu.core_type = #tpu.core_type<tc>, window_params = [{transform_indices = @transform_0, window_bounds = array<i64: 32, 64>}, {pipeline_mode = #tpu.pipeline_mode<synchronous>, transform_indices = @transform_1, window_bounds = array<i64: 2, 64>}, {pipeline_mode = #tpu.pipeline_mode<synchronous>, transform_indices = @transform_2, window_bounds = array<i64: 1, 64>}, {pipeline_mode = #tpu.pipeline_mode<synchronous>, transform_indices = @transform_3, window_bounds = array<i64: 1, 64>}, {transform_indices = @transform_4, window_bounds = array<i64: 32, 64>}]} {
    %c0 = arith.constant 0 : index
    %c0_0 = arith.constant 0 : index
    %0 = vector.load %arg2[%c0, %c0_0] : memref<2x64xf32, #tpu.memory_space<vmem>>, vector<1x64xf32>
    %c1 = arith.constant 1 : index
    %c0_1 = arith.constant 0 : index
    %1 = vector.load %arg2[%c1, %c0_1] : memref<2x64xf32, #tpu.memory_space<vmem>>, vector<1x64xf32>
    %c0_2 = arith.constant 0 : index
    %c0_3 = arith.constant 0 : index
    %2 = vector.load %arg1[%c0_2, %c0_3] : memref<32x64xf32, #tpu.memory_space<vmem>>, vector<32x64xf32>
    %3 = vector.broadcast %0 : vector<1x64xf32> to vector<32x64xf32>
    %4 = arith.subf %2, %3 : vector<32x64xf32>
    %c0_4 = arith.constant 0 : index
    %c0_5 = arith.constant 0 : index
    %5 = vector.load %arg3[%c0_4, %c0_5] : memref<1x64xf32, #tpu.memory_space<vmem>>, vector<1x64xf32>
    %6 = arith.mulf %1, %5 : vector<1x64xf32>
    %7 = vector.broadcast %6 : vector<1x64xf32> to vector<32x64xf32>
    %8 = arith.mulf %4, %7 : vector<32x64xf32>
    %c0_6 = arith.constant 0 : index
    %c0_7 = arith.constant 0 : index
    %9 = vector.load %arg4[%c0_6, %c0_7] : memref<1x64xf32, #tpu.memory_space<vmem>>, vector<1x64xf32>
    %10 = vector.broadcast %9 : vector<1x64xf32> to vector<32x64xf32>
    %11 = arith.addf %8, %10 : vector<32x64xf32>
    %cst = arith.constant 0.000000e+00 : f32
    %12 = vector.broadcast %cst : f32 to vector<32x64xf32>
    %13 = arith.maximumf %11, %12 : vector<32x64xf32>
    %14 = arith.truncf %13 : vector<32x64xf32> to vector<32x64xbf16>
    %c0_8 = arith.constant 0 : index
    %c0_9 = arith.constant 0 : index
    %15 = vector.load %arg5[%c0_8, %c0_9] : memref<32x64xbf16, #tpu.memory_space<vmem>>, vector<32x64xbf16>
    tpu.vector_store %arg5[%c0_8, %c0_9], %14 {strides = array<i32>} : memref<32x64xbf16, #tpu.memory_space<vmem>>, vector<32x64xbf16>,
    return
  }
  func.func @transform_0(%arg0: i32) -> (i32, i32) {
    %c0_i32 = arith.constant 0 : i32
    %c0_i32_0 = arith.constant 0 : i32
    return %arg0, %c0_i32 : i32, i32
  }
  func.func @transform_1(%arg0: i32) -> (i32, i32) {
    %c0_i32 = arith.constant 0 : i32
    %c0_i32_0 = arith.constant 0 : i32
    %c0_i32_1 = arith.constant 0 : i32
    return %c0_i32, %c0_i32_0 : i32, i32
  }
  func.func @transform_2(%arg0: i32) -> (i32, i32) {
    %c0_i32 = arith.constant 0 : i32
    %c0_i32_0 = arith.constant 0 : i32
    %c0_i32_1 = arith.constant 0 : i32
    return %c0_i32, %c0_i32_0 : i32, i32
  }
  func.func @transform_3(%arg0: i32) -> (i32, i32) {
    %c0_i32 = arith.constant 0 : i32
    %c0_i32_0 = arith.constant 0 : i32
    %c0_i32_1 = arith.constant 0 : i32
    return %c0_i32, %c0_i32_0 : i32, i32
  }
  func.func @transform_4(%arg0: i32) -> (i32, i32) {
    %c0_i32 = arith.constant 0 : i32
    %c0_i32_0 = arith.constant 0 : i32
    return %arg0, %c0_i32 : i32, i32
  }
}

module attributes {stable_mosaic.version = 11 : i64} {
  func.func @_matmul_kernel(%arg0: i32, %arg1: memref<32x64xbf16, #tpu.memory_space<vmem>>, %arg2: memref<64x512xbf16, #tpu.memory_space<vmem>>, %arg3: memref<32x512xf32, #tpu.memory_space<vmem>>) attributes {dimension_semantics = [#tpu.dimension_semantics<parallel>], iteration_bounds = array<i64: 1>, scalar_prefetch = 0 : i64, scratch_operands = 0 : i64, tpu.core_type = #tpu.core_type<tc>, window_params = [{transform_indices = @transform_0, window_bounds = array<i64: 32, 64>}, {pipeline_mode = #tpu.pipeline_mode<synchronous>, transform_indices = @transform_1, window_bounds = array<i64: 64, 512>}, {transform_indices = @transform_2, window_bounds = array<i64: 32, 512>}]} {
    %c0 = arith.constant 0 : index
    %c0_0 = arith.constant 0 : index
    %0 = vector.load %arg1[%c0, %c0_0] : memref<32x64xbf16, #tpu.memory_space<vmem>>, vector<32x64xbf16>
    %c0_1 = arith.constant 0 : index
    %c0_2 = arith.constant 0 : index
    %1 = vector.load %arg2[%c0_1, %c0_2] : memref<64x512xbf16, #tpu.memory_space<vmem>>, vector<64x512xbf16>
    %cst = arith.constant dense<0.000000e+00> : vector<32x512xf32>
    %2 = tpu.matmul %0, %1, %cst {dimension_numbers = #tpu.dot_dimension_numbers<[1], [0], [0], [1], [0, 0, 1, 1], [], []>} : vector<32x64xbf16>, vector<64x512xbf16>, vector<32x512xf32> -> vector<32x512xf32>
    %c0_3 = arith.constant 0 : index
    %c0_4 = arith.constant 0 : index
    %3 = vector.load %arg3[%c0_3, %c0_4] : memref<32x512xf32, #tpu.memory_space<vmem>>, vector<32x512xf32>
    tpu.vector_store %arg3[%c0_3, %c0_4], %2 {strides = array<i32>} : memref<32x512xf32, #tpu.memory_space<vmem>>, vector<32x512xf32>,
    return
  }
  func.func @transform_0(%arg0: i32) -> (i32, i32) {
    %c0_i32 = arith.constant 0 : i32
    %c0_i32_0 = arith.constant 0 : i32
    return %arg0, %c0_i32 : i32, i32
  }
  func.func @transform_1(%arg0: i32) -> (i32, i32) {
    %c0_i32 = arith.constant 0 : i32
    %c0_i32_0 = arith.constant 0 : i32
    %c0_i32_1 = arith.constant 0 : i32
    return %c0_i32, %c0_i32_0 : i32, i32
  }
  func.func @transform_2(%arg0: i32) -> (i32, i32) {
    %c0_i32 = arith.constant 0 : i32
    %c0_i32_0 = arith.constant 0 : i32
    return %arg0, %c0_i32 : i32, i32
  }
}

module attributes {stable_mosaic.version = 11 : i64} {
  func.func @_bn_stats_kernel(%arg0: i32, %arg1: memref<128x32xf32, #tpu.memory_space<vmem>>, %arg2: memref<2x32xf32, #tpu.memory_space<vmem>>, %arg3: memref<1x32xf32, #tpu.memory_space<vmem>>, %arg4: memref<1x32xf32, #tpu.memory_space<vmem>>) attributes {dimension_semantics = [#tpu.dimension_semantics<arbitrary>], iteration_bounds = array<i64: 1>, scalar_prefetch = 0 : i64, scratch_operands = 2 : i64, tpu.core_type = #tpu.core_type<tc>, window_params = [{transform_indices = @transform_0, window_bounds = array<i64: 128, 32>}, {pipeline_mode = #tpu.pipeline_mode<synchronous>, transform_indices = @transform_1, window_bounds = array<i64: 2, 32>}]} {
    %c0_i32 = arith.constant 0 : i32
    %0 = arith.cmpi eq, %arg0, %c0_i32 : i32
    %1 = arith.extui %0 : i1 to i32
    %c0_i32_0 = arith.constant 0 : i32
    %2 = arith.cmpi ne, %1, %c0_i32_0 : i32
    scf.if %2 {
      %cst_13 = arith.constant 0.000000e+00 : f32
      %18 = vector.broadcast %cst_13 : f32 to vector<1x32xf32>
      %c0_14 = arith.constant 0 : index
      %c0_15 = arith.constant 0 : index
      %19 = vector.load %arg3[%c0_14, %c0_15] : memref<1x32xf32, #tpu.memory_space<vmem>>, vector<1x32xf32>
      tpu.vector_store %arg3[%c0_14, %c0_15], %18 {strides = array<i32>} : memref<1x32xf32, #tpu.memory_space<vmem>>, vector<1x32xf32>,
      %cst_16 = arith.constant 0.000000e+00 : f32
      %20 = vector.broadcast %cst_16 : f32 to vector<1x32xf32>
      %c0_17 = arith.constant 0 : index
      %c0_18 = arith.constant 0 : index
      %21 = vector.load %arg4[%c0_17, %c0_18] : memref<1x32xf32, #tpu.memory_space<vmem>>, vector<1x32xf32>
      tpu.vector_store %arg4[%c0_17, %c0_18], %20 {strides = array<i32>} : memref<1x32xf32, #tpu.memory_space<vmem>>, vector<1x32xf32>,
    } else {
    }
    %c0 = arith.constant 0 : index
    %c0_1 = arith.constant 0 : index
    %3 = vector.load %arg1[%c0, %c0_1] : memref<128x32xf32, #tpu.memory_space<vmem>>, vector<128x32xf32>
    %c0_2 = arith.constant 0 : index
    %c0_3 = arith.constant 0 : index
    %4 = vector.load %arg3[%c0_2, %c0_3] : memref<1x32xf32, #tpu.memory_space<vmem>>, vector<1x32xf32>
    %cst = arith.constant dense<0.000000e+00> : vector<32xf32>
    %5 = vector.multi_reduction <add>, %3, %cst [0] : vector<128x32xf32> to vector<32xf32>
    %6 = vector.shape_cast %5 : vector<32xf32> to vector<1x32xf32>
    %7 = arith.addf %4, %6 : vector<1x32xf32>
    %c0_4 = arith.constant 0 : index
    %c0_5 = arith.constant 0 : index
    %8 = vector.load %arg3[%c0_4, %c0_5] : memref<1x32xf32, #tpu.memory_space<vmem>>, vector<1x32xf32>
    tpu.vector_store %arg3[%c0_4, %c0_5], %7 {strides = array<i32>} : memref<1x32xf32, #tpu.memory_space<vmem>>, vector<1x32xf32>,
    %c0_6 = arith.constant 0 : index
    %c0_7 = arith.constant 0 : index
    %9 = vector.load %arg4[%c0_6, %c0_7] : memref<1x32xf32, #tpu.memory_space<vmem>>, vector<1x32xf32>
    %10 = arith.mulf %3, %3 : vector<128x32xf32>
    %cst_8 = arith.constant dense<0.000000e+00> : vector<32xf32>
    %11 = vector.multi_reduction <add>, %10, %cst_8 [0] : vector<128x32xf32> to vector<32xf32>
    %12 = vector.shape_cast %11 : vector<32xf32> to vector<1x32xf32>
    %13 = arith.addf %9, %12 : vector<1x32xf32>
    %c0_9 = arith.constant 0 : index
    %c0_10 = arith.constant 0 : index
    %14 = vector.load %arg4[%c0_9, %c0_10] : memref<1x32xf32, #tpu.memory_space<vmem>>, vector<1x32xf32>
    tpu.vector_store %arg4[%c0_9, %c0_10], %13 {strides = array<i32>} : memref<1x32xf32, #tpu.memory_space<vmem>>, vector<1x32xf32>,
    %c0_i32_11 = arith.constant 0 : i32
    %15 = arith.cmpi eq, %arg0, %c0_i32_11 : i32
    %16 = arith.extui %15 : i1 to i32
    %c0_i32_12 = arith.constant 0 : i32
    %17 = arith.cmpi ne, %16, %c0_i32_12 : i32
    scf.if %17 {
      %c0_13 = arith.constant 0 : index
      %c0_14 = arith.constant 0 : index
      %18 = vector.load %arg3[%c0_13, %c0_14] : memref<1x32xf32, #tpu.memory_space<vmem>>, vector<1x32xf32>
      %cst_15 = arith.constant 7.812500e-03 : f32
      %19 = vector.broadcast %cst_15 : f32 to vector<1x32xf32>
      %20 = arith.mulf %18, %19 : vector<1x32xf32>
      %c0_16 = arith.constant 0 : index
      %c0_17 = arith.constant 0 : index
      %21 = vector.load %arg4[%c0_16, %c0_17] : memref<1x32xf32, #tpu.memory_space<vmem>>, vector<1x32xf32>
      %cst_18 = arith.constant 7.812500e-03 : f32
      %22 = vector.broadcast %cst_18 : f32 to vector<1x32xf32>
      %23 = arith.mulf %21, %22 : vector<1x32xf32>
      %24 = arith.mulf %20, %20 : vector<1x32xf32>
      %25 = arith.subf %23, %24 : vector<1x32xf32>
      %cst_19 = arith.constant 0.000000e+00 : f32
      %26 = vector.broadcast %cst_19 : f32 to vector<1x32xf32>
      %27 = arith.maximumf %25, %26 : vector<1x32xf32>
      %c0_20 = arith.constant 0 : index
      %c0_21 = arith.constant 0 : index
      %28 = vector.load %arg2[%c0_20, %c0_21] : memref<2x32xf32, #tpu.memory_space<vmem>>, vector<1x32xf32>
      tpu.vector_store %arg2[%c0_20, %c0_21], %20 {strides = array<i32>} : memref<2x32xf32, #tpu.memory_space<vmem>>, vector<1x32xf32>,
      %cst_22 = arith.constant 9.99999974E-6 : f32
      %29 = vector.broadcast %cst_22 : f32 to vector<1x32xf32>
      %30 = arith.addf %27, %29 : vector<1x32xf32>
      %31 = math.rsqrt %30 : vector<1x32xf32>
      %c1 = arith.constant 1 : index
      %c0_23 = arith.constant 0 : index
      %32 = vector.load %arg2[%c1, %c0_23] : memref<2x32xf32, #tpu.memory_space<vmem>>, vector<1x32xf32>
      tpu.vector_store %arg2[%c1, %c0_23], %31 {strides = array<i32>} : memref<2x32xf32, #tpu.memory_space<vmem>>, vector<1x32xf32>,
    } else {
    }
    return
  }
  func.func @transform_0(%arg0: i32) -> (i32, i32) {
    %c0_i32 = arith.constant 0 : i32
    %c0_i32_0 = arith.constant 0 : i32
    return %arg0, %c0_i32 : i32, i32
  }
  func.func @transform_1(%arg0: i32) -> (i32, i32) {
    %c0_i32 = arith.constant 0 : i32
    %c0_i32_0 = arith.constant 0 : i32
    %c0_i32_1 = arith.constant 0 : i32
    return %c0_i32, %c0_i32_0 : i32, i32
  }
}

module attributes {stable_mosaic.version = 11 : i64} {
  func.func @_bn_norm_relu_kernel(%arg0: i32, %arg1: memref<128x32xf32, #tpu.memory_space<vmem>>, %arg2: memref<2x32xf32, #tpu.memory_space<vmem>>, %arg3: memref<1x32xf32, #tpu.memory_space<vmem>>, %arg4: memref<1x32xf32, #tpu.memory_space<vmem>>, %arg5: memref<128x32xbf16, #tpu.memory_space<vmem>>) attributes {dimension_semantics = [#tpu.dimension_semantics<parallel>], iteration_bounds = array<i64: 1>, scalar_prefetch = 0 : i64, scratch_operands = 0 : i64, tpu.core_type = #tpu.core_type<tc>, window_params = [{transform_indices = @transform_0, window_bounds = array<i64: 128, 32>}, {pipeline_mode = #tpu.pipeline_mode<synchronous>, transform_indices = @transform_1, window_bounds = array<i64: 2, 32>}, {pipeline_mode = #tpu.pipeline_mode<synchronous>, transform_indices = @transform_2, window_bounds = array<i64: 1, 32>}, {pipeline_mode = #tpu.pipeline_mode<synchronous>, transform_indices = @transform_3, window_bounds = array<i64: 1, 32>}, {transform_indices = @transform_4, window_bounds = array<i64: 128, 32>}]} {
    %c0 = arith.constant 0 : index
    %c0_0 = arith.constant 0 : index
    %0 = vector.load %arg2[%c0, %c0_0] : memref<2x32xf32, #tpu.memory_space<vmem>>, vector<1x32xf32>
    %c1 = arith.constant 1 : index
    %c0_1 = arith.constant 0 : index
    %1 = vector.load %arg2[%c1, %c0_1] : memref<2x32xf32, #tpu.memory_space<vmem>>, vector<1x32xf32>
    %c0_2 = arith.constant 0 : index
    %c0_3 = arith.constant 0 : index
    %2 = vector.load %arg1[%c0_2, %c0_3] : memref<128x32xf32, #tpu.memory_space<vmem>>, vector<128x32xf32>
    %3 = vector.broadcast %0 : vector<1x32xf32> to vector<128x32xf32>
    %4 = arith.subf %2, %3 : vector<128x32xf32>
    %c0_4 = arith.constant 0 : index
    %c0_5 = arith.constant 0 : index
    %5 = vector.load %arg3[%c0_4, %c0_5] : memref<1x32xf32, #tpu.memory_space<vmem>>, vector<1x32xf32>
    %6 = arith.mulf %1, %5 : vector<1x32xf32>
    %7 = vector.broadcast %6 : vector<1x32xf32> to vector<128x32xf32>
    %8 = arith.mulf %4, %7 : vector<128x32xf32>
    %c0_6 = arith.constant 0 : index
    %c0_7 = arith.constant 0 : index
    %9 = vector.load %arg4[%c0_6, %c0_7] : memref<1x32xf32, #tpu.memory_space<vmem>>, vector<1x32xf32>
    %10 = vector.broadcast %9 : vector<1x32xf32> to vector<128x32xf32>
    %11 = arith.addf %8, %10 : vector<128x32xf32>
    %cst = arith.constant 0.000000e+00 : f32
    %12 = vector.broadcast %cst : f32 to vector<128x32xf32>
    %13 = arith.maximumf %11, %12 : vector<128x32xf32>
    %14 = arith.truncf %13 : vector<128x32xf32> to vector<128x32xbf16>
    %c0_8 = arith.constant 0 : index
    %c0_9 = arith.constant 0 : index
    %15 = vector.load %arg5[%c0_8, %c0_9] : memref<128x32xbf16, #tpu.memory_space<vmem>>, vector<128x32xbf16>
    tpu.vector_store %arg5[%c0_8, %c0_9], %14 {strides = array<i32>} : memref<128x32xbf16, #tpu.memory_space<vmem>>, vector<128x32xbf16>,
    return
  }
  func.func @transform_0(%arg0: i32) -> (i32, i32) {
    %c0_i32 = arith.constant 0 : i32
    %c0_i32_0 = arith.constant 0 : i32
    return %arg0, %c0_i32 : i32, i32
  }
  func.func @transform_1(%arg0: i32) -> (i32, i32) {
    %c0_i32 = arith.constant 0 : i32
    %c0_i32_0 = arith.constant 0 : i32
    %c0_i32_1 = arith.constant 0 : i32
    return %c0_i32, %c0_i32_0 : i32, i32
  }
  func.func @transform_2(%arg0: i32) -> (i32, i32) {
    %c0_i32 = arith.constant 0 : i32
    %c0_i32_0 = arith.constant 0 : i32
    %c0_i32_1 = arith.constant 0 : i32
    return %c0_i32, %c0_i32_0 : i32, i32
  }
  func.func @transform_3(%arg0: i32) -> (i32, i32) {
    %c0_i32 = arith.constant 0 : i32
    %c0_i32_0 = arith.constant 0 : i32
    %c0_i32_1 = arith.constant 0 : i32
    return %c0_i32, %c0_i32_0 : i32, i32
  }
  func.func @transform_4(%arg0: i32) -> (i32, i32) {
    %c0_i32 = arith.constant 0 : i32
    %c0_i32_0 = arith.constant 0 : i32
    return %arg0, %c0_i32 : i32, i32
  }
}

module attributes {stable_mosaic.version = 11 : i64} {
  func.func @_matmul_kernel(%arg0: i32, %arg1: memref<128x32xbf16, #tpu.memory_space<vmem>>, %arg2: memref<32x256xbf16, #tpu.memory_space<vmem>>, %arg3: memref<128x256xf32, #tpu.memory_space<vmem>>) attributes {dimension_semantics = [#tpu.dimension_semantics<parallel>], iteration_bounds = array<i64: 1>, scalar_prefetch = 0 : i64, scratch_operands = 0 : i64, tpu.core_type = #tpu.core_type<tc>, window_params = [{transform_indices = @transform_0, window_bounds = array<i64: 128, 32>}, {pipeline_mode = #tpu.pipeline_mode<synchronous>, transform_indices = @transform_1, window_bounds = array<i64: 32, 256>}, {transform_indices = @transform_2, window_bounds = array<i64: 128, 256>}]} {
    %c0 = arith.constant 0 : index
    %c0_0 = arith.constant 0 : index
    %0 = vector.load %arg1[%c0, %c0_0] : memref<128x32xbf16, #tpu.memory_space<vmem>>, vector<128x32xbf16>
    %c0_1 = arith.constant 0 : index
    %c0_2 = arith.constant 0 : index
    %1 = vector.load %arg2[%c0_1, %c0_2] : memref<32x256xbf16, #tpu.memory_space<vmem>>, vector<32x256xbf16>
    %cst = arith.constant dense<0.000000e+00> : vector<128x256xf32>
    %2 = tpu.matmul %0, %1, %cst {dimension_numbers = #tpu.dot_dimension_numbers<[1], [0], [0], [1], [0, 0, 1, 1], [], []>} : vector<128x32xbf16>, vector<32x256xbf16>, vector<128x256xf32> -> vector<128x256xf32>
    %c0_3 = arith.constant 0 : index
    %c0_4 = arith.constant 0 : index
    %3 = vector.load %arg3[%c0_3, %c0_4] : memref<128x256xf32, #tpu.memory_space<vmem>>, vector<128x256xf32>
    tpu.vector_store %arg3[%c0_3, %c0_4], %2 {strides = array<i32>} : memref<128x256xf32, #tpu.memory_space<vmem>>, vector<128x256xf32>,
    return
  }
  func.func @transform_0(%arg0: i32) -> (i32, i32) {
    %c0_i32 = arith.constant 0 : i32
    %c0_i32_0 = arith.constant 0 : i32
    return %arg0, %c0_i32 : i32, i32
  }
  func.func @transform_1(%arg0: i32) -> (i32, i32) {
    %c0_i32 = arith.constant 0 : i32
    %c0_i32_0 = arith.constant 0 : i32
    %c0_i32_1 = arith.constant 0 : i32
    return %c0_i32, %c0_i32_0 : i32, i32
  }
  func.func @transform_2(%arg0: i32) -> (i32, i32) {
    %c0_i32 = arith.constant 0 : i32
    %c0_i32_0 = arith.constant 0 : i32
    return %arg0, %c0_i32 : i32, i32
  }
}

module attributes {stable_mosaic.version = 11 : i64} {
  func.func @_bn_stats_kernel(%arg0: i32, %arg1: memref<512x16xf32, #tpu.memory_space<vmem>>, %arg2: memref<2x16xf32, #tpu.memory_space<vmem>>, %arg3: memref<1x16xf32, #tpu.memory_space<vmem>>, %arg4: memref<1x16xf32, #tpu.memory_space<vmem>>) attributes {dimension_semantics = [#tpu.dimension_semantics<arbitrary>], iteration_bounds = array<i64: 1>, scalar_prefetch = 0 : i64, scratch_operands = 2 : i64, tpu.core_type = #tpu.core_type<tc>, window_params = [{transform_indices = @transform_0, window_bounds = array<i64: 512, 16>}, {pipeline_mode = #tpu.pipeline_mode<synchronous>, transform_indices = @transform_1, window_bounds = array<i64: 2, 16>}]} {
    %c0_i32 = arith.constant 0 : i32
    %0 = arith.cmpi eq, %arg0, %c0_i32 : i32
    %1 = arith.extui %0 : i1 to i32
    %c0_i32_0 = arith.constant 0 : i32
    %2 = arith.cmpi ne, %1, %c0_i32_0 : i32
    scf.if %2 {
      %cst_13 = arith.constant 0.000000e+00 : f32
      %18 = vector.broadcast %cst_13 : f32 to vector<1x16xf32>
      %c0_14 = arith.constant 0 : index
      %c0_15 = arith.constant 0 : index
      %19 = vector.load %arg3[%c0_14, %c0_15] : memref<1x16xf32, #tpu.memory_space<vmem>>, vector<1x16xf32>
      tpu.vector_store %arg3[%c0_14, %c0_15], %18 {strides = array<i32>} : memref<1x16xf32, #tpu.memory_space<vmem>>, vector<1x16xf32>,
      %cst_16 = arith.constant 0.000000e+00 : f32
      %20 = vector.broadcast %cst_16 : f32 to vector<1x16xf32>
      %c0_17 = arith.constant 0 : index
      %c0_18 = arith.constant 0 : index
      %21 = vector.load %arg4[%c0_17, %c0_18] : memref<1x16xf32, #tpu.memory_space<vmem>>, vector<1x16xf32>
      tpu.vector_store %arg4[%c0_17, %c0_18], %20 {strides = array<i32>} : memref<1x16xf32, #tpu.memory_space<vmem>>, vector<1x16xf32>,
    } else {
    }
    %c0 = arith.constant 0 : index
    %c0_1 = arith.constant 0 : index
    %3 = vector.load %arg1[%c0, %c0_1] : memref<512x16xf32, #tpu.memory_space<vmem>>, vector<512x16xf32>
    %c0_2 = arith.constant 0 : index
    %c0_3 = arith.constant 0 : index
    %4 = vector.load %arg3[%c0_2, %c0_3] : memref<1x16xf32, #tpu.memory_space<vmem>>, vector<1x16xf32>
    %cst = arith.constant dense<0.000000e+00> : vector<16xf32>
    %5 = vector.multi_reduction <add>, %3, %cst [0] : vector<512x16xf32> to vector<16xf32>
    %6 = vector.shape_cast %5 : vector<16xf32> to vector<1x16xf32>
    %7 = arith.addf %4, %6 : vector<1x16xf32>
    %c0_4 = arith.constant 0 : index
    %c0_5 = arith.constant 0 : index
    %8 = vector.load %arg3[%c0_4, %c0_5] : memref<1x16xf32, #tpu.memory_space<vmem>>, vector<1x16xf32>
    tpu.vector_store %arg3[%c0_4, %c0_5], %7 {strides = array<i32>} : memref<1x16xf32, #tpu.memory_space<vmem>>, vector<1x16xf32>,
    %c0_6 = arith.constant 0 : index
    %c0_7 = arith.constant 0 : index
    %9 = vector.load %arg4[%c0_6, %c0_7] : memref<1x16xf32, #tpu.memory_space<vmem>>, vector<1x16xf32>
    %10 = arith.mulf %3, %3 : vector<512x16xf32>
    %cst_8 = arith.constant dense<0.000000e+00> : vector<16xf32>
    %11 = vector.multi_reduction <add>, %10, %cst_8 [0] : vector<512x16xf32> to vector<16xf32>
    %12 = vector.shape_cast %11 : vector<16xf32> to vector<1x16xf32>
    %13 = arith.addf %9, %12 : vector<1x16xf32>
    %c0_9 = arith.constant 0 : index
    %c0_10 = arith.constant 0 : index
    %14 = vector.load %arg4[%c0_9, %c0_10] : memref<1x16xf32, #tpu.memory_space<vmem>>, vector<1x16xf32>
    tpu.vector_store %arg4[%c0_9, %c0_10], %13 {strides = array<i32>} : memref<1x16xf32, #tpu.memory_space<vmem>>, vector<1x16xf32>,
    %c0_i32_11 = arith.constant 0 : i32
    %15 = arith.cmpi eq, %arg0, %c0_i32_11 : i32
    %16 = arith.extui %15 : i1 to i32
    %c0_i32_12 = arith.constant 0 : i32
    %17 = arith.cmpi ne, %16, %c0_i32_12 : i32
    scf.if %17 {
      %c0_13 = arith.constant 0 : index
      %c0_14 = arith.constant 0 : index
      %18 = vector.load %arg3[%c0_13, %c0_14] : memref<1x16xf32, #tpu.memory_space<vmem>>, vector<1x16xf32>
      %cst_15 = arith.constant 0.001953125 : f32
      %19 = vector.broadcast %cst_15 : f32 to vector<1x16xf32>
      %20 = arith.mulf %18, %19 : vector<1x16xf32>
      %c0_16 = arith.constant 0 : index
      %c0_17 = arith.constant 0 : index
      %21 = vector.load %arg4[%c0_16, %c0_17] : memref<1x16xf32, #tpu.memory_space<vmem>>, vector<1x16xf32>
      %cst_18 = arith.constant 0.001953125 : f32
      %22 = vector.broadcast %cst_18 : f32 to vector<1x16xf32>
      %23 = arith.mulf %21, %22 : vector<1x16xf32>
      %24 = arith.mulf %20, %20 : vector<1x16xf32>
      %25 = arith.subf %23, %24 : vector<1x16xf32>
      %cst_19 = arith.constant 0.000000e+00 : f32
      %26 = vector.broadcast %cst_19 : f32 to vector<1x16xf32>
      %27 = arith.maximumf %25, %26 : vector<1x16xf32>
      %c0_20 = arith.constant 0 : index
      %c0_21 = arith.constant 0 : index
      %28 = vector.load %arg2[%c0_20, %c0_21] : memref<2x16xf32, #tpu.memory_space<vmem>>, vector<1x16xf32>
      tpu.vector_store %arg2[%c0_20, %c0_21], %20 {strides = array<i32>} : memref<2x16xf32, #tpu.memory_space<vmem>>, vector<1x16xf32>,
      %cst_22 = arith.constant 9.99999974E-6 : f32
      %29 = vector.broadcast %cst_22 : f32 to vector<1x16xf32>
      %30 = arith.addf %27, %29 : vector<1x16xf32>
      %31 = math.rsqrt %30 : vector<1x16xf32>
      %c1 = arith.constant 1 : index
      %c0_23 = arith.constant 0 : index
      %32 = vector.load %arg2[%c1, %c0_23] : memref<2x16xf32, #tpu.memory_space<vmem>>, vector<1x16xf32>
      tpu.vector_store %arg2[%c1, %c0_23], %31 {strides = array<i32>} : memref<2x16xf32, #tpu.memory_space<vmem>>, vector<1x16xf32>,
    } else {
    }
    return
  }
  func.func @transform_0(%arg0: i32) -> (i32, i32) {
    %c0_i32 = arith.constant 0 : i32
    %c0_i32_0 = arith.constant 0 : i32
    return %arg0, %c0_i32 : i32, i32
  }
  func.func @transform_1(%arg0: i32) -> (i32, i32) {
    %c0_i32 = arith.constant 0 : i32
    %c0_i32_0 = arith.constant 0 : i32
    %c0_i32_1 = arith.constant 0 : i32
    return %c0_i32, %c0_i32_0 : i32, i32
  }
}

module attributes {stable_mosaic.version = 11 : i64} {
  func.func @_bn_norm_relu_kernel(%arg0: i32, %arg1: memref<512x16xf32, #tpu.memory_space<vmem>>, %arg2: memref<2x16xf32, #tpu.memory_space<vmem>>, %arg3: memref<1x16xf32, #tpu.memory_space<vmem>>, %arg4: memref<1x16xf32, #tpu.memory_space<vmem>>, %arg5: memref<512x16xbf16, #tpu.memory_space<vmem>>) attributes {dimension_semantics = [#tpu.dimension_semantics<parallel>], iteration_bounds = array<i64: 1>, scalar_prefetch = 0 : i64, scratch_operands = 0 : i64, tpu.core_type = #tpu.core_type<tc>, window_params = [{transform_indices = @transform_0, window_bounds = array<i64: 512, 16>}, {pipeline_mode = #tpu.pipeline_mode<synchronous>, transform_indices = @transform_1, window_bounds = array<i64: 2, 16>}, {pipeline_mode = #tpu.pipeline_mode<synchronous>, transform_indices = @transform_2, window_bounds = array<i64: 1, 16>}, {pipeline_mode = #tpu.pipeline_mode<synchronous>, transform_indices = @transform_3, window_bounds = array<i64: 1, 16>}, {transform_indices = @transform_4, window_bounds = array<i64: 512, 16>}]} {
    %c0 = arith.constant 0 : index
    %c0_0 = arith.constant 0 : index
    %0 = vector.load %arg2[%c0, %c0_0] : memref<2x16xf32, #tpu.memory_space<vmem>>, vector<1x16xf32>
    %c1 = arith.constant 1 : index
    %c0_1 = arith.constant 0 : index
    %1 = vector.load %arg2[%c1, %c0_1] : memref<2x16xf32, #tpu.memory_space<vmem>>, vector<1x16xf32>
    %c0_2 = arith.constant 0 : index
    %c0_3 = arith.constant 0 : index
    %2 = vector.load %arg1[%c0_2, %c0_3] : memref<512x16xf32, #tpu.memory_space<vmem>>, vector<512x16xf32>
    %3 = vector.broadcast %0 : vector<1x16xf32> to vector<512x16xf32>
    %4 = arith.subf %2, %3 : vector<512x16xf32>
    %c0_4 = arith.constant 0 : index
    %c0_5 = arith.constant 0 : index
    %5 = vector.load %arg3[%c0_4, %c0_5] : memref<1x16xf32, #tpu.memory_space<vmem>>, vector<1x16xf32>
    %6 = arith.mulf %1, %5 : vector<1x16xf32>
    %7 = vector.broadcast %6 : vector<1x16xf32> to vector<512x16xf32>
    %8 = arith.mulf %4, %7 : vector<512x16xf32>
    %c0_6 = arith.constant 0 : index
    %c0_7 = arith.constant 0 : index
    %9 = vector.load %arg4[%c0_6, %c0_7] : memref<1x16xf32, #tpu.memory_space<vmem>>, vector<1x16xf32>
    %10 = vector.broadcast %9 : vector<1x16xf32> to vector<512x16xf32>
    %11 = arith.addf %8, %10 : vector<512x16xf32>
    %cst = arith.constant 0.000000e+00 : f32
    %12 = vector.broadcast %cst : f32 to vector<512x16xf32>
    %13 = arith.maximumf %11, %12 : vector<512x16xf32>
    %14 = arith.truncf %13 : vector<512x16xf32> to vector<512x16xbf16>
    %c0_8 = arith.constant 0 : index
    %c0_9 = arith.constant 0 : index
    %15 = vector.load %arg5[%c0_8, %c0_9] : memref<512x16xbf16, #tpu.memory_space<vmem>>, vector<512x16xbf16>
    tpu.vector_store %arg5[%c0_8, %c0_9], %14 {strides = array<i32>} : memref<512x16xbf16, #tpu.memory_space<vmem>>, vector<512x16xbf16>,
    return
  }
  func.func @transform_0(%arg0: i32) -> (i32, i32) {
    %c0_i32 = arith.constant 0 : i32
    %c0_i32_0 = arith.constant 0 : i32
    return %arg0, %c0_i32 : i32, i32
  }
  func.func @transform_1(%arg0: i32) -> (i32, i32) {
    %c0_i32 = arith.constant 0 : i32
    %c0_i32_0 = arith.constant 0 : i32
    %c0_i32_1 = arith.constant 0 : i32
    return %c0_i32, %c0_i32_0 : i32, i32
  }
  func.func @transform_2(%arg0: i32) -> (i32, i32) {
    %c0_i32 = arith.constant 0 : i32
    %c0_i32_0 = arith.constant 0 : i32
    %c0_i32_1 = arith.constant 0 : i32
    return %c0_i32, %c0_i32_0 : i32, i32
  }
  func.func @transform_3(%arg0: i32) -> (i32, i32) {
    %c0_i32 = arith.constant 0 : i32
    %c0_i32_0 = arith.constant 0 : i32
    %c0_i32_1 = arith.constant 0 : i32
    return %c0_i32, %c0_i32_0 : i32, i32
  }
  func.func @transform_4(%arg0: i32) -> (i32, i32) {
    %c0_i32 = arith.constant 0 : i32
    %c0_i32_0 = arith.constant 0 : i32
    return %arg0, %c0_i32 : i32, i32
  }
}

module attributes {stable_mosaic.version = 11 : i64} {
  func.func @_matmul_kernel(%arg0: i32, %arg1: memref<512x16xbf16, #tpu.memory_space<vmem>>, %arg2: memref<16x128xbf16, #tpu.memory_space<vmem>>, %arg3: memref<512x128xf32, #tpu.memory_space<vmem>>) attributes {dimension_semantics = [#tpu.dimension_semantics<parallel>], iteration_bounds = array<i64: 1>, scalar_prefetch = 0 : i64, scratch_operands = 0 : i64, tpu.core_type = #tpu.core_type<tc>, window_params = [{transform_indices = @transform_0, window_bounds = array<i64: 512, 16>}, {pipeline_mode = #tpu.pipeline_mode<synchronous>, transform_indices = @transform_1, window_bounds = array<i64: 16, 128>}, {transform_indices = @transform_2, window_bounds = array<i64: 512, 128>}]} {
    %c0 = arith.constant 0 : index
    %c0_0 = arith.constant 0 : index
    %0 = vector.load %arg1[%c0, %c0_0] : memref<512x16xbf16, #tpu.memory_space<vmem>>, vector<512x16xbf16>
    %c0_1 = arith.constant 0 : index
    %c0_2 = arith.constant 0 : index
    %1 = vector.load %arg2[%c0_1, %c0_2] : memref<16x128xbf16, #tpu.memory_space<vmem>>, vector<16x128xbf16>
    %cst = arith.constant dense<0.000000e+00> : vector<512x128xf32>
    %2 = tpu.matmul %0, %1, %cst {dimension_numbers = #tpu.dot_dimension_numbers<[1], [0], [0], [1], [0, 0, 1, 1], [], []>} : vector<512x16xbf16>, vector<16x128xbf16>, vector<512x128xf32> -> vector<512x128xf32>
    %c0_3 = arith.constant 0 : index
    %c0_4 = arith.constant 0 : index
    %3 = vector.load %arg3[%c0_3, %c0_4] : memref<512x128xf32, #tpu.memory_space<vmem>>, vector<512x128xf32>
    tpu.vector_store %arg3[%c0_3, %c0_4], %2 {strides = array<i32>} : memref<512x128xf32, #tpu.memory_space<vmem>>, vector<512x128xf32>,
    return
  }
  func.func @transform_0(%arg0: i32) -> (i32, i32) {
    %c0_i32 = arith.constant 0 : i32
    %c0_i32_0 = arith.constant 0 : i32
    return %arg0, %c0_i32 : i32, i32
  }
  func.func @transform_1(%arg0: i32) -> (i32, i32) {
    %c0_i32 = arith.constant 0 : i32
    %c0_i32_0 = arith.constant 0 : i32
    %c0_i32_1 = arith.constant 0 : i32
    return %c0_i32, %c0_i32_0 : i32, i32
  }
  func.func @transform_2(%arg0: i32) -> (i32, i32) {
    %c0_i32 = arith.constant 0 : i32
    %c0_i32_0 = arith.constant 0 : i32
    return %arg0, %c0_i32 : i32, i32
  }
}

module attributes {stable_mosaic.version = 11 : i64} {
  func.func @_sigmoid_kernel(%arg0: i32, %arg1: memref<6x1024xf32, #tpu.memory_space<vmem>>, %arg2: memref<6x1024xf32, #tpu.memory_space<vmem>>) attributes {dimension_semantics = [#tpu.dimension_semantics<parallel>], iteration_bounds = array<i64: 1>, scalar_prefetch = 0 : i64, scratch_operands = 0 : i64, tpu.core_type = #tpu.core_type<tc>, window_params = [{transform_indices = @transform_0, window_bounds = array<i64: 6, 1024>}, {transform_indices = @transform_1, window_bounds = array<i64: 6, 1024>}]} {
    %c0 = arith.constant 0 : index
    %c0_0 = arith.constant 0 : index
    %0 = vector.load %arg1[%c0, %c0_0] : memref<6x1024xf32, #tpu.memory_space<vmem>>, vector<6x1024xf32>
    %cst = arith.constant 0.000000e+00 : f32
    %1 = vector.broadcast %cst : f32 to vector<6x1024xf32>
    %2 = arith.subf %1, %0 : vector<6x1024xf32>
    %3 = math.exp %2 : vector<6x1024xf32>
    %cst_1 = arith.constant 1.000000e+00 : f32
    %4 = vector.broadcast %cst_1 : f32 to vector<6x1024xf32>
    %5 = arith.addf %4, %3 : vector<6x1024xf32>
    %6 = tpu.reciprocal %5 {approx = true} : vector<6x1024xf32> -> vector<6x1024xf32>
    %c0_2 = arith.constant 0 : index
    %c0_3 = arith.constant 0 : index
    %7 = vector.load %arg2[%c0_2, %c0_3] : memref<6x1024xf32, #tpu.memory_space<vmem>>, vector<6x1024xf32>
    tpu.vector_store %arg2[%c0_2, %c0_3], %6 {strides = array<i32>} : memref<6x1024xf32, #tpu.memory_space<vmem>>, vector<6x1024xf32>,
    return
  }
  func.func @transform_0(%arg0: i32) -> (i32, i32) {
    %c0_i32 = arith.constant 0 : i32
    %c0_i32_0 = arith.constant 0 : i32
    return %arg0, %c0_i32 : i32, i32
  }
  func.func @transform_1(%arg0: i32) -> (i32, i32) {
    %c0_i32 = arith.constant 0 : i32
    %c0_i32_0 = arith.constant 0 : i32
    return %arg0, %c0_i32 : i32, i32
  }
}

</mosaic_0001>

<llo_original>
// kernel: netg_forward.11
$region0: #{netg_forward.11}
  #allocation0 [shape = 'u32[]', space=smem, size = 0x4, offset = 0x4, fixed_abs, tag = 'smem constant byte address 0x4 - core index']
  #allocation1 [shape = 'u32[144,128]{1,0:T(1,128)}', space=vmem, size = 0x12000, scoped, tag = 'internal scratch']
  %s0 = inlined_call_operand.vmem [shape: bf16[2,8], index: 0, kind: input, shape index: {}]
  %s1 = inlined_call_operand.vmem [shape: bf16[8,1024], index: 1, kind: input, shape index: {}]
  %s2 = inlined_call_operand.vmem [shape: f32[2,1024], index: 2, kind: output, shape index: {}]
  %s3 = sld [smem:[#allocation0]]
  $region18: #{netg_forward.11} parent=0
    _
  %s5 = ssub.s32 1, %s3
  %s6 = scalar_select 0, %s5, %s3
  // Predicated region
  $region2: #{netg_forward.11} parent=0 // pred_check
    _
  $region3: #{netg_forward.11} parent=0 // pred_check_branch
    %8 = sbr.rel (0) target = $region5
  $region4: #{netg_forward.11} parent=0 // pred_region
    _
  $region5: #{netg_forward.11} parent=0 // pred_fallthru
    _
  // Predicated region
  $region6: #{netg_forward.11} parent=0 // pred_check
    _
  $region7: #{netg_forward.11} parent=0 // pred_check_branch
    %10 = sbr.rel (0) target = $region9
  $region8: #{netg_forward.11} parent=0 // pred_region
    _
  $region9: #{netg_forward.11} parent=0 // pred_fallthru
    _
  %v12 = vld [vmem:[%s0] sm:$0x1]
  %v13 = vld [vmem:[%s1] sm:$0xff]
  %v14 = vld [vmem:[%s1 + $0x8] sm:$0xff]
  %v15 = vld [vmem:[%s1 + $0x10] sm:$0xff]
  %v16 = vld [vmem:[%s1 + $0x18] sm:$0xff]
  %v21 = vunpack.c.l.b16 %v13
  %v22 = vunpack.c.h.b16 %v13
  %v23 = vunpack.c.l.b16 %v14
  %v24 = vunpack.c.h.b16 %v14
  %v25 = vunpack.c.l.b16 %v15
  %v26 = vunpack.c.h.b16 %v15
  %v27 = vunpack.c.l.b16 %v16
  %v28 = vunpack.c.h.b16 %v16
  %v29 = vpack.c.b16 %v21, %v21
  %v30 = vpack.c.b16 %v22, %v22
  %v31 = vpack.c.b16 %v23, %v23
  %v32 = vpack.c.b16 %v24, %v24
  %v33 = vpack.c.b16 %v25, %v25
  %v34 = vpack.c.b16 %v26, %v26
  %v35 = vpack.c.b16 %v27, %v27
  %v36 = vpack.c.b16 %v28, %v28
  %vm37 = vcmask 64512
  %v39 = vsel %vm37, %v12, 0
  %vm41 = vcmask 1043456
  %v43 = vsel %vm41, %v29, 0
  %v46 = vsel %vm41, %v30, 0
  %v49 = vsel %vm41, %v31, 0
  %v52 = vsel %vm41, %v32, 0
  %v55 = vsel %vm41, %v33, 0
  %v58 = vsel %vm41, %v34, 0
  %v61 = vsel %vm41, %v35, 0
  %v64 = vsel %vm41, %v36, 0
  %66 = vmatprep.subr.bf16.mxu0 0
  %67 = vmatpush1.bf16.msra.mxu0 0
  %68 = vmatprep.subr.bf16.mxu0 0
  %69 = vmatpush1.bf16.msra.mxu0 0
  %70 = vmatprep.subr.bf16.mxu0 0
  %71 = vmatpush1.bf16.msra.mxu0 0
  %72 = vmatprep.subr.bf16.mxu0 0
  %73 = vmatpush1.bf16.msra.mxu0 0
  %74 = vmatprep.subr.bf16.mxu0 0
  %75 = vmatpush1.bf16.msra.mxu0 0
  %76 = vmatprep.subr.bf16.mxu0 0
  %77 = vmatpush1.bf16.msra.mxu0 0
  %78 = vmatprep.subr.bf16.mxu0 0
  %79 = vmatpush1.bf16.msra.mxu0 0
  %80 = vmatprep.subr.bf16.mxu0 %v46
  %81 = vmatpush1.bf16.msra.mxu0 %v43
  %82 = vmatprep.subr.bf16.mxu0 0
  %83 = vmatpush2.bf16.msra.mxu0 0
  %84 = vmatprep.subr.bf16.mxu0 0
  %85 = vmatpush2.bf16.msra.mxu0 0
  %86 = vmatprep.subr.bf16.mxu0 0
  %87 = vmatpush2.bf16.msra.mxu0 0
  %88 = vmatprep.subr.bf16.mxu0 0
  %89 = vmatpush2.bf16.msra.mxu0 0
  %90 = vmatprep.subr.bf16.mxu0 0
  %91 = vmatpush2.bf16.msra.mxu0 0
  %92 = vmatprep.subr.bf16.mxu0 0
  %93 = vmatpush2.bf16.msra.mxu0 0
  %94 = vmatprep.subr.bf16.mxu0 0
  %95 = vmatpush2.bf16.msra.mxu0 0
  %96 = vmatprep.subr.bf16.mxu0 0
  %97 = vmatpush2.bf16.msra.mxu0 0
  %98 = vmatprep.mubr.bf16.mxu0 0
  %99 = vmatmul.mubr.bf16.gmra.mxu0 %v39
  %v100 = vpop.f32.mrf.mxu0
  %v101 = vadd.f32 0.0, %v100
  %v102 = vpop.f32.mrf.mxu0
  %v103 = vadd.f32 0.0, %v102
  %v104 = vpop.f32.mrf.mxu0
  %v105 = vpop.f32.mrf.mxu0
  %106 = vdwg.mxu0
  %107 = vmatprep.subr.bf16.mxu0 0
  %108 = vmatpush1.bf16.msra.mxu0 0
  %109 = vmatprep.subr.bf16.mxu0 0
  %110 = vmatpush1.bf16.msra.mxu0 0
  %111 = vmatprep.subr.bf16.mxu0 0
  %112 = vmatpush1.bf16.msra.mxu0 0
  %113 = vmatprep.subr.bf16.mxu0 0
  %114 = vmatpush1.bf16.msra.mxu0 0
  %115 = vmatprep.subr.bf16.mxu0 0
  %116 = vmatpush1.bf16.msra.mxu0 0
  %117 = vmatprep.subr.bf16.mxu0 0
  %118 = vmatpush1.bf16.msra.mxu0 0
  %119 = vmatprep.subr.bf16.mxu0 0
  %120 = vmatpush1.bf16.msra.mxu0 0
  %121 = vmatprep.subr.bf16.mxu0 %v52
  %122 = vmatpush1.bf16.msra.mxu0 %v49
  %123 = vmatprep.subr.bf16.mxu0 0
  %124 = vmatpush2.bf16.msra.mxu0 0
  %125 = vmatprep.subr.bf16.mxu0 0
  %126 = vmatpush2.bf16.msra.mxu0 0
  %127 = vmatprep.subr.bf16.mxu0 0
  %128 = vmatpush2.bf16.msra.mxu0 0
  %129 = vmatprep.subr.bf16.mxu0 0
  %130 = vmatpush2.bf16.msra.mxu0 0
  %131 = vmatprep.subr.bf16.mxu0 0
  %132 = vmatpush2.bf16.msra.mxu0 0
  %133 = vmatprep.subr.bf16.mxu0 0
  %134 = vmatpush2.bf16.msra.mxu0 0
  %135 = vmatprep.subr.bf16.mxu0 0
  %136 = vmatpush2.bf16.msra.mxu0 0
  %137 = vmatprep.subr.bf16.mxu0 0
  %138 = vmatpush2.bf16.msra.mxu0 0
  %139 = vmatprep.mubr.bf16.mxu0 0
  %140 = vmatmul.mubr.bf16.gmra.mxu0 %v39
  %v141 = vpop.f32.mrf.mxu0
  %v142 = vadd.f32 0.0, %v141
  %v143 = vpop.f32.mrf.mxu0
  %v144 = vadd.f32 0.0, %v143
  %v145 = vpop.f32.mrf.mxu0
  %v146 = vpop.f32.mrf.mxu0
  %147 = vdwg.mxu0
  %148 = vmatprep.subr.bf16.mxu0 0
  %149 = vmatpush1.bf16.msra.mxu0 0
  %150 = vmatprep.subr.bf16.mxu0 0
  %151 = vmatpush1.bf16.msra.mxu0 0
  %152 = vmatprep.subr.bf16.mxu0 0
  %153 = vmatpush1.bf16.msra.mxu0 0
  %154 = vmatprep.subr.bf16.mxu0 0
  %155 = vmatpush1.bf16.msra.mxu0 0
  %156 = vmatprep.subr.bf16.mxu0 0
  %157 = vmatpush1.bf16.msra.mxu0 0
  %158 = vmatprep.subr.bf16.mxu0 0
  %159 = vmatpush1.bf16.msra.mxu0 0
  %160 = vmatprep.subr.bf16.mxu0 0
  %161 = vmatpush1.bf16.msra.mxu0 0
  %162 = vmatprep.subr.bf16.mxu0 %v58
  %163 = vmatpush1.bf16.msra.mxu0 %v55
  %164 = vmatprep.subr.bf16.mxu0 0
  %165 = vmatpush2.bf16.msra.mxu0 0
  %166 = vmatprep.subr.bf16.mxu0 0
  %167 = vmatpush2.bf16.msra.mxu0 0
  %168 = vmatprep.subr.bf16.mxu0 0
  %169 = vmatpush2.bf16.msra.mxu0 0
  %170 = vmatprep.subr.bf16.mxu0 0
  %171 = vmatpush2.bf16.msra.mxu0 0
  %172 = vmatprep.subr.bf16.mxu0 0
  %173 = vmatpush2.bf16.msra.mxu0 0
  %174 = vmatprep.subr.bf16.mxu0 0
  %175 = vmatpush2.bf16.msra.mxu0 0
  %176 = vmatprep.subr.bf16.mxu0 0
  %177 = vmatpush2.bf16.msra.mxu0 0
  %178 = vmatprep.subr.bf16.mxu0 0
  %179 = vmatpush2.bf16.msra.mxu0 0
  %180 = vmatprep.mubr.bf16.mxu0 0
  %181 = vmatmul.mubr.bf16.gmra.mxu0 %v39
  %v182 = vpop.f32.mrf.mxu0
  %v183 = vadd.f32 0.0, %v182
  %v184 = vpop.f32.mrf.mxu0
  %v185 = vadd.f32 0.0, %v184
  %v186 = vpop.f32.mrf.mxu0
  %v187 = vpop.f32.mrf.mxu0
  %188 = vdwg.mxu0
  %189 = vmatprep.subr.bf16.mxu0 0
  %190 = vmatpush1.bf16.msra.mxu0 0
  %191 = vmatprep.subr.bf16.mxu0 0
  %192 = vmatpush1.bf16.msra.mxu0 0
  %193 = vmatprep.subr.bf16.mxu0 0
  %194 = vmatpush1.bf16.msra.mxu0 0
  %195 = vmatprep.subr.bf16.mxu0 0
  %196 = vmatpush1.bf16.msra.mxu0 0
  %197 = vmatprep.subr.bf16.mxu0 0
  %198 = vmatpush1.bf16.msra.mxu0 0
  %199 = vmatprep.subr.bf16.mxu0 0
  %200 = vmatpush1.bf16.msra.mxu0 0
  %201 = vmatprep.subr.bf16.mxu0 0
  %202 = vmatpush1.bf16.msra.mxu0 0
  %203 = vmatprep.subr.bf16.mxu0 %v64
  %204 = vmatpush1.bf16.msra.mxu0 %v61
  %205 = vmatprep.subr.bf16.mxu0 0
  %206 = vmatpush2.bf16.msra.mxu0 0
  %207 = vmatprep.subr.bf16.mxu0 0
  %208 = vmatpush2.bf16.msra.mxu0 0
  %209 = vmatprep.subr.bf16.mxu0 0
  %210 = vmatpush2.bf16.msra.mxu0 0
  %211 = vmatprep.subr.bf16.mxu0 0
  %212 = vmatpush2.bf16.msra.mxu0 0
  %213 = vmatprep.subr.bf16.mxu0 0
  %214 = vmatpush2.bf16.msra.mxu0 0
  %215 = vmatprep.subr.bf16.mxu0 0
  %216 = vmatpush2.bf16.msra.mxu0 0
  %217 = vmatprep.subr.bf16.mxu0 0
  %218 = vmatpush2.bf16.msra.mxu0 0
  %219 = vmatprep.subr.bf16.mxu0 0
  %220 = vmatpush2.bf16.msra.mxu0 0
  %221 = vmatprep.mubr.bf16.mxu0 0
  %222 = vmatmul.mubr.bf16.gmra.mxu0 %v39
  %v223 = vpop.f32.mrf.mxu0
  %v224 = vadd.f32 0.0, %v223
  %v225 = vpop.f32.mrf.mxu0
  %v226 = vadd.f32 0.0, %v225
  %v227 = vpop.f32.mrf.mxu0
  %v228 = vpop.f32.mrf.mxu0
  %229 = vdwg.mxu0
  %v238 = vcombine.low %v101, %v103
  %v239 = vcombine.low %v142, %v144
  %v241 = vunpack.c.l.s4 1983009808
  %v242 = vunpack.c.0.s8 %v241
  %v243 = vlaneseq
  %v244 = vshrl.u32 %v243, 7
  %v245 = vsub.s32 %v242, %v244
  %v246 = vrot.slane %v238, %v245
  %v248 = vunpack.c.l.s4 1983009808
  %v249 = vunpack.c.0.s8 %v248
  %v250 = vlaneseq
  %v251 = vshrl.u32 %v250, 7
  %v252 = vsub.s32 %v249, %v251
  %v253 = vrot.slane %v239, %v252
  %v254 = vcombine.low %v246, %v253
  %v255 = vcombine.low %v183, %v185
  %v256 = vcombine.low %v224, %v226
  %v258 = vunpack.c.l.s4 1983009808
  %v259 = vunpack.c.0.s8 %v258
  %v260 = vlaneseq
  %v261 = vshrl.u32 %v260, 7
  %v262 = vsub.s32 %v259, %v261
  %v263 = vrot.slane %v255, %v262
  %v265 = vunpack.c.l.s4 1983009808
  %v266 = vunpack.c.0.s8 %v265
  %v267 = vlaneseq
  %v268 = vshrl.u32 %v267, 7
  %v269 = vsub.s32 %v266, %v268
  %v270 = vrot.slane %v256, %v269
  %v271 = vcombine.low %v263, %v270
  %274 = vst [vmem:[%s2] sm:$0xff] %v254
  %275 = vst [vmem:[%s2 + $0x8] sm:$0xff] %v271
  // Predicated region
  $region10: #{netg_forward.11} parent=0 // pred_check
    _
  $region11: #{netg_forward.11} parent=0 // pred_check_branch
    %277 = sbr.rel (0) target = $region13
  $region12: #{netg_forward.11} parent=0 // pred_region
    _
  $region13: #{netg_forward.11} parent=0 // pred_fallthru
    _
  // Predicated region
  $region14: #{netg_forward.11} parent=0 // pred_check
    _
  $region15: #{netg_forward.11} parent=0 // pred_check_branch
    %279 = sbr.rel (0) target = $region17
  $region16: #{netg_forward.11} parent=0 // pred_region
    _
  $region17: #{netg_forward.11} parent=0 // pred_fallthru
    _

// kernel: netg_forward.12
$region0: #{netg_forward.12}
  #allocation0 [shape = 'u32[]', space=smem, size = 0x4, offset = 0x4, fixed_abs, tag = 'smem constant byte address 0x4 - core index']
  #allocation1 [shape = 'u32[144,128]{1,0:T(1,128)}', space=vmem, size = 0x12000, scoped, tag = 'internal scratch']
  #allocation2 [shape = 'f32[1,64]{1,0:T(1,128)}', space=vmem, size = 0x200, scoped, tag = 'scratch operand']
  #allocation3 [shape = 'f32[1,64]{1,0:T(1,128)}', space=vmem, size = 0x200, scoped, tag = 'scratch operand']
  %s0 = inlined_call_operand.vmem [shape: f32[32,64], index: 0, kind: input, shape index: {}]
  %s1 = inlined_call_operand.vmem [shape: f32[2,64], index: 1, kind: output, shape index: {}]
  %s2 = sld [smem:[#allocation0]]
  $region22: #{netg_forward.12} parent=0
    _
  %s4 = ssub.s32 1, %s2
  %s5 = scalar_select 0, %s4, %s2
  // Predicated region
  $region2: #{netg_forward.12} parent=0 // pred_check
    _
  $region3: #{netg_forward.12} parent=0 // pred_check_branch
    %7 = sbr.rel (0) target = $region5
  $region4: #{netg_forward.12} parent=0 // pred_region
    _
  $region5: #{netg_forward.12} parent=0 // pred_fallthru
    _
  %p8 = scmp.eq.s32.totalorder 0, 0
  // Predicated region
  $region6: #{netg_forward.12} parent=0 // pred_check
    %p9 = pneg %p8
  $region7: #{netg_forward.12} parent=0 // pred_check_branch
    %11 = sbr.rel (%p9) target = $region9
  $region8: #{netg_forward.12} parent=0 // pred_region
    %vm12 = vcmask 516096
    %13 = vst.msk [vmem:[#allocation2] sm:$0x1] %vm12, 0.0
    %14 = vst.msk [vmem:[#allocation3] sm:$0x1] %vm12, 0.0
  $region9: #{netg_forward.12} parent=0 // pred_fallthru
    _
  %v15 = vld [vmem:[%s0] sm:$0xff]
  %v16 = vld [vmem:[%s0 + $0x8] sm:$0xff]
  %v17 = vld [vmem:[%s0 + $0x10] sm:$0xff]
  %v18 = vld [vmem:[%s0 + $0x18] sm:$0xff]
  %v19 = vld [vmem:[#allocation2] sm:$0x1]
  %vm20 = vcmask 523264
  %v21 = vsel %vm20, %v15, 0.0
  %v22 = vsel %vm20, %v16, 0.0
  %v23 = vadd.f32 %v21, %v22
  %v24 = vsel %vm20, %v17, 0.0
  %v25 = vadd.f32 %v23, %v24
  %v26 = vsel %vm20, %v18, 0.0
  %v27 = vadd.f32 %v25, %v26
  %v28 = vrot.slane %v27, 4
  %v29 = vadd.f32 %v27, %v28
  %v30 = vrot.slane %v29, 2
  %v31 = vadd.f32 %v29, %v30
  %v32 = vrot.slane %v31, 1
  %v33 = vadd.f32 %v31, %v32
  %v34 = vadd.f32 %v19, %v33
  %vm35 = vcmask 516096
  %36 = vst.msk [vmem:[#allocation2] sm:$0x1] %vm35, %v34
  %v37 = vld [vmem:[#allocation3] sm:$0x1]
  %v38 = vmul.f32 %v15, %v15
  %v39 = vmul.f32 %v16, %v16
  %v40 = vmul.f32 %v17, %v17
  %v41 = vmul.f32 %v18, %v18
  %v42 = vsel %vm20, %v38, 0.0
  %v43 = vsel %vm20, %v39, 0.0
  %v44 = vadd.f32 %v42, %v43
  %v45 = vsel %vm20, %v40, 0.0
  %v46 = vadd.f32 %v44, %v45
  %v47 = vsel %vm20, %v41, 0.0
  %v48 = vadd.f32 %v46, %v47
  %v49 = vrot.slane %v48, 4
  %v50 = vadd.f32 %v48, %v49
  %v51 = vrot.slane %v50, 2
  %v52 = vadd.f32 %v50, %v51
  %v53 = vrot.slane %v52, 1
  %v54 = vadd.f32 %v52, %v53
  %v55 = vadd.f32 %v37, %v54
  %56 = vst.msk [vmem:[#allocation3] sm:$0x1] %vm35, %v55
  // Predicated region
  $region10: #{netg_forward.12} parent=0 // pred_check
    %p57 = pneg %p8
  $region11: #{netg_forward.12} parent=0 // pred_check_branch
    %59 = sbr.rel (%p57) target = $region13
  $region12: #{netg_forward.12} parent=0 // pred_region
    %v60 = vld [vmem:[#allocation2] sm:$0x1]
    %v61 = vmul.f32 %v60, 0.03125
    %v62 = vld [vmem:[#allocation3] sm:$0x1]
    %v63 = vmul.f32 %v62, 0.03125
    %v64 = vmul.f32 %v61, %v61
    %v65 = vsub.f32 %v63, %v64
    %v66 = vmax.f32 %v65, 0.0
    %67 = vst.msk [vmem:[%s1] sm:$0x1] %vm35, %v61
    %v68 = vadd.f32 %v66, 1e-05
    %v69 = vrsqrt.pop %v68
    %70 = vst.msk [vmem:[%s1 + $0x1] sm:$0x1] %vm35, %v69
  $region13: #{netg_forward.12} parent=0 // pred_fallthru
    _
  // Predicated region
  $region14: #{netg_forward.12} parent=0 // pred_check
    _
  $region15: #{netg_forward.12} parent=0 // pred_check_branch
    %72 = sbr.rel (0) target = $region17
  $region16: #{netg_forward.12} parent=0 // pred_region
    _
  $region17: #{netg_forward.12} parent=0 // pred_fallthru
    _
  // Predicated region
  $region18: #{netg_forward.12} parent=0 // pred_check
    _
  $region19: #{netg_forward.12} parent=0 // pred_check_branch
    %74 = sbr.rel (0) target = $region21
  $region20: #{netg_forward.12} parent=0 // pred_region
    _
  $region21: #{netg_forward.12} parent=0 // pred_fallthru
    _

// kernel: netg_forward.13
$region0: #{netg_forward.13}
  #allocation0 [shape = 'u32[]', space=smem, size = 0x4, offset = 0x4, fixed_abs, tag = 'smem constant byte address 0x4 - core index']
  #allocation1 [shape = 'u32[144,128]{1,0:T(1,128)}', space=vmem, size = 0x12000, scoped, tag = 'internal scratch']
  %s0 = inlined_call_operand.vmem [shape: f32[32,64], index: 0, kind: input, shape index: {}]
  %s1 = inlined_call_operand.vmem [shape: f32[2,64], index: 1, kind: input, shape index: {}]
  %s2 = inlined_call_operand.vmem [shape: f32[1,64], index: 2, kind: input, shape index: {}]
  %s3 = inlined_call_operand.vmem [shape: f32[1,64], index: 3, kind: input, shape index: {}]
  %s4 = inlined_call_operand.vmem [shape: bf16[32,64], index: 4, kind: output, shape index: {}]
  %s5 = sld [smem:[#allocation0]]
  $region26: #{netg_forward.13} parent=0
    _
  %s7 = ssub.s32 1, %s5
  %s8 = scalar_select 0, %s7, %s5
  // Predicated region
  $region2: #{netg_forward.13} parent=0 // pred_check
    _
  $region3: #{netg_forward.13} parent=0 // pred_check_branch
    %10 = sbr.rel (0) target = $region5
  $region4: #{netg_forward.13} parent=0 // pred_region
    _
  $region5: #{netg_forward.13} parent=0 // pred_fallthru
    _
  // Predicated region
  $region6: #{netg_forward.13} parent=0 // pred_check
    _
  $region7: #{netg_forward.13} parent=0 // pred_check_branch
    %12 = sbr.rel (0) target = $region9
  $region8: #{netg_forward.13} parent=0 // pred_region
    _
  $region9: #{netg_forward.13} parent=0 // pred_fallthru
    _
  // Predicated region
  $region10: #{netg_forward.13} parent=0 // pred_check
    _
  $region11: #{netg_forward.13} parent=0 // pred_check_branch
    %14 = sbr.rel (0) target = $region13
  $region12: #{netg_forward.13} parent=0 // pred_region
    _
  $region13: #{netg_forward.13} parent=0 // pred_fallthru
    _
  // Predicated region
  $region14: #{netg_forward.13} parent=0 // pred_check
    _
  $region15: #{netg_forward.13} parent=0 // pred_check_branch
    %16 = sbr.rel (0) target = $region17
  $region16: #{netg_forward.13} parent=0 // pred_region
    _
  $region17: #{netg_forward.13} parent=0 // pred_fallthru
    _
  %v17 = vld [vmem:[%s1] sm:$0x1]
  %v18 = vld [vmem:[%s1 + $0x1] sm:$0x1]
  %v19 = vld [vmem:[%s0] sm:$0xff]
  %v20 = vld [vmem:[%s0 + $0x8] sm:$0xff]
  %v21 = vld [vmem:[%s0 + $0x10] sm:$0xff]
  %v22 = vld [vmem:[%s0 + $0x18] sm:$0xff]
  %v23 = vlaneseq
  %v24 = vshrl.u32 %v23, 7
  %v25 = vsub.s32 0, %v24
  %v26 = vrot.slane %v17, %v25
  %v27 = vsub.f32 %v19, %v26
  %v28 = vsub.f32 %v20, %v26
  %v29 = vsub.f32 %v21, %v26
  %v30 = vsub.f32 %v22, %v26
  %v31 = vld [vmem:[%s2] sm:$0x1]
  %v32 = vmul.f32 %v18, %v31
  %v33 = vlaneseq
  %v34 = vshrl.u32 %v33, 7
  %v35 = vsub.s32 0, %v34
  %v36 = vrot.slane %v32, %v35
  %v37 = vmul.f32 %v27, %v36
  %v38 = vmul.f32 %v28, %v36
  %v39 = vmul.f32 %v29, %v36
  %v40 = vmul.f32 %v30, %v36
  %v41 = vld [vmem:[%s3] sm:$0x1]
  %v43 = vlaneseq
  %v44 = vshrl.u32 %v43, 7
  %v45 = vsub.s32 0, %v44
  %v46 = vrot.slane %v41, %v45
  %v48 = vadd.f32 %v37, %v46
  %v49 = vadd.f32 %v38, %v46
  %v50 = vadd.f32 %v39, %v46
  %v51 = vadd.f32 %v40, %v46
  %v52 = vmax.f32 %v48, 0.0
  %v53 = vmax.f32 %v49, 0.0
  %v54 = vmax.f32 %v50, 0.0
  %v55 = vmax.f32 %v51, 0.0
  %v56 = vpack.c.bf16 %v53, %v52
  %v57 = vpack.c.bf16 %v55, %v54
  %v60 = vunpack.c.l.b16 %v56
  %v61 = vunpack.c.h.b16 %v56
  %v62 = vunpack.c.l.b16 %v57
  %v63 = vunpack.c.h.b16 %v57
  %v64 = vpack.c.b16 %v60, %v60
  %v65 = vpack.c.b16 %v61, %v61
  %v66 = vpack.c.b16 %v62, %v62
  %v67 = vpack.c.b16 %v63, %v63
  %vm72 = vcmask 519168
  %73 = vst.msk [vmem:[%s4] sm:$0xf] %vm72, %v64
  %74 = vst.msk [vmem:[%s4 + $0x4] sm:$0xf] %vm72, %v65
  %75 = vst.msk [vmem:[%s4 + $0x8] sm:$0xf] %vm72, %v66
  %76 = vst.msk [vmem:[%s4 + $0xc] sm:$0xf] %vm72, %v67
  // Predicated region
  $region18: #{netg_forward.13} parent=0 // pred_check
    _
  $region19: #{netg_forward.13} parent=0 // pred_check_branch
    %78 = sbr.rel (0) target = $region21
  $region20: #{netg_forward.13} parent=0 // pred_region
    _
  $region21: #{netg_forward.13} parent=0 // pred_fallthru
    _
  // Predicated region
  $region22: #{netg_forward.13} parent=0 // pred_check
    _
  $region23: #{netg_forward.13} parent=0 // pred_check_branch
    %80 = sbr.rel (0) target = $region25
  $region24: #{netg_forward.13} parent=0 // pred_region
    _
  $region25: #{netg_forward.13} parent=0 // pred_fallthru
    _

// kernel: netg_forward.14
$region0: #{netg_forward.14}
  #allocation0 [shape = 'u32[]', space=smem, size = 0x4, offset = 0x4, fixed_abs, tag = 'smem constant byte address 0x4 - core index']
  #allocation1 [shape = 'u32[144,128]{1,0:T(1,128)}', space=vmem, size = 0x12000, scoped, tag = 'internal scratch']
  %s0 = inlined_call_operand.vmem [shape: bf16[32,64], index: 0, kind: input, shape index: {}]
  %s1 = inlined_call_operand.vmem [shape: bf16[64,512], index: 1, kind: input, shape index: {}]
  %s2 = inlined_call_operand.vmem [shape: f32[32,512], index: 2, kind: output, shape index: {}]
  %s3 = sld [smem:[#allocation0]]
  $region18: #{netg_forward.14} parent=0
    _
  %s5 = ssub.s32 1, %s3
  %s6 = scalar_select 0, %s5, %s3
  // Predicated region
  $region2: #{netg_forward.14} parent=0 // pred_check
    _
  $region3: #{netg_forward.14} parent=0 // pred_check_branch
    %8 = sbr.rel (0) target = $region5
  $region4: #{netg_forward.14} parent=0 // pred_region
    _
  $region5: #{netg_forward.14} parent=0 // pred_fallthru
    _
  // Predicated region
  $region6: #{netg_forward.14} parent=0 // pred_check
    _
  $region7: #{netg_forward.14} parent=0 // pred_check_branch
    %10 = sbr.rel (0) target = $region9
  $region8: #{netg_forward.14} parent=0 // pred_region
    _
  $region9: #{netg_forward.14} parent=0 // pred_fallthru
    _
  %v12 = vld [vmem:[%s0] sm:$0xf]
  %v13 = vld [vmem:[%s0 + $0x4] sm:$0xf]
  %v14 = vld [vmem:[%s0 + $0x8] sm:$0xf]
  %v15 = vld [vmem:[%s0 + $0xc] sm:$0xf]
  %v16 = vld [vmem:[%s1] sm:$0xff]
  %v17 = vld [vmem:[%s1 + $0x8] sm:$0xff]
  %v18 = vld [vmem:[%s1 + $0x10] sm:$0xff]
  %v19 = vld [vmem:[%s1 + $0x18] sm:$0xff]
  %v20 = vld [vmem:[%s1 + $0x20] sm:$0xff]
  %v21 = vld [vmem:[%s1 + $0x28] sm:$0xff]
  %v22 = vld [vmem:[%s1 + $0x30] sm:$0xff]
  %v23 = vld [vmem:[%s1 + $0x38] sm:$0xff]
  %v24 = vld [vmem:[%s1 + $0x40] sm:$0xff]
  %v25 = vld [vmem:[%s1 + $0x48] sm:$0xff]
  %v26 = vld [vmem:[%s1 + $0x50] sm:$0xff]
  %v27 = vld [vmem:[%s1 + $0x58] sm:$0xff]
  %v28 = vld [vmem:[%s1 + $0x60] sm:$0xff]
  %v29 = vld [vmem:[%s1 + $0x68] sm:$0xff]
  %v30 = vld [vmem:[%s1 + $0x70] sm:$0xff]
  %v31 = vld [vmem:[%s1 + $0x78] sm:$0xff]
  %v36 = vunpack.c.l.b16 %v12
  %v37 = vunpack.c.l.b16 %v13
  %v38 = vunpack.c.l.b16 %v14
  %v39 = vunpack.c.l.b16 %v15
  %v40 = vpack.c.b16 %v37, %v36
  %v41 = vpack.c.b16 %v39, %v38
  %v58 = vunpack.c.l.b16 %v16
  %v59 = vunpack.c.h.b16 %v16
  %v60 = vunpack.c.l.b16 %v17
  %v61 = vunpack.c.h.b16 %v17
  %v62 = vunpack.c.l.b16 %v18
  %v63 = vunpack.c.h.b16 %v18
  %v64 = vunpack.c.l.b16 %v19
  %v65 = vunpack.c.h.b16 %v19
  %v66 = vunpack.c.l.b16 %v20
  %v67 = vunpack.c.h.b16 %v20
  %v68 = vunpack.c.l.b16 %v21
  %v69 = vunpack.c.h.b16 %v21
  %v70 = vunpack.c.l.b16 %v22
  %v71 = vunpack.c.h.b16 %v22
  %v72 = vunpack.c.l.b16 %v23
  %v73 = vunpack.c.h.b16 %v23
  %v74 = vunpack.c.l.b16 %v24
  %v75 = vunpack.c.h.b16 %v24
  %v76 = vunpack.c.l.b16 %v25
  %v77 = vunpack.c.h.b16 %v25
  %v78 = vunpack.c.l.b16 %v26
  %v79 = vunpack.c.h.b16 %v26
  %v80 = vunpack.c.l.b16 %v27
  %v81 = vunpack.c.h.b16 %v27
  %v82 = vunpack.c.l.b16 %v28
  %v83 = vunpack.c.h.b16 %v28
  %v84 = vunpack.c.l.b16 %v29
  %v85 = vunpack.c.h.b16 %v29
  %v86 = vunpack.c.l.b16 %v30
  %v87 = vunpack.c.h.b16 %v30
  %v88 = vunpack.c.l.b16 %v31
  %v89 = vunpack.c.h.b16 %v31
  %v90 = vpack.c.b16 %v62, %v58
  %v91 = vpack.c.b16 %v63, %v59
  %v92 = vpack.c.b16 %v64, %v60
  %v93 = vpack.c.b16 %v65, %v61
  %v94 = vpack.c.b16 %v70, %v66
  %v95 = vpack.c.b16 %v71, %v67
  %v96 = vpack.c.b16 %v72, %v68
  %v97 = vpack.c.b16 %v73, %v69
  %v98 = vpack.c.b16 %v78, %v74
  %v99 = vpack.c.b16 %v79, %v75
  %v100 = vpack.c.b16 %v80, %v76
  %v101 = vpack.c.b16 %v81, %v77
  %v102 = vpack.c.b16 %v86, %v82
  %v103 = vpack.c.b16 %v87, %v83
  %v104 = vpack.c.b16 %v88, %v84
  %v105 = vpack.c.b16 %v89, %v85
  %vm122 = vcmask 523264
  %v124 = vsel %vm122, %v40, 0
  %v127 = vsel %vm122, %v41, 0
  %129 = vmatprep.subr.bf16.mxu0 0
  %130 = vmatpush1.bf16.msra.mxu0 0
  %131 = vmatprep.subr.bf16.mxu0 0
  %132 = vmatpush1.bf16.msra.mxu0 0
  %133 = vmatprep.subr.bf16.mxu0 0
  %134 = vmatpush1.bf16.msra.mxu0 0
  %135 = vmatprep.subr.bf16.mxu0 0
  %136 = vmatpush1.bf16.msra.mxu0 0
  %137 = vmatprep.subr.bf16.mxu0 %v103
  %138 = vmatpush1.bf16.msra.mxu0 %v102
  %139 = vmatprep.subr.bf16.mxu0 %v99
  %140 = vmatpush1.bf16.msra.mxu0 %v98
  %141 = vmatprep.subr.bf16.mxu0 %v95
  %142 = vmatpush1.bf16.msra.mxu0 %v94
  %143 = vmatprep.subr.bf16.mxu0 %v91
  %144 = vmatpush1.bf16.msra.mxu0 %v90
  %145 = vmatprep.subr.bf16.mxu0 0
  %146 = vmatpush2.bf16.msra.mxu0 0
  %147 = vmatprep.subr.bf16.mxu0 0
  %148 = vmatpush2.bf16.msra.mxu0 0
  %149 = vmatprep.subr.bf16.mxu0 0
  %150 = vmatpush2.bf16.msra.mxu0 0
  %151 = vmatprep.subr.bf16.mxu0 0
  %152 = vmatpush2.bf16.msra.mxu0 0
  %153 = vmatprep.subr.bf16.mxu0 0
  %154 = vmatpush2.bf16.msra.mxu0 0
  %155 = vmatprep.subr.bf16.mxu0 0
  %156 = vmatpush2.bf16.msra.mxu0 0
  %157 = vmatprep.subr.bf16.mxu0 0
  %158 = vmatpush2.bf16.msra.mxu0 0
  %159 = vmatprep.subr.bf16.mxu0 0
  %160 = vmatpush2.bf16.msra.mxu0 0
  %161 = vmatprep.mubr.bf16.mxu0 0
  %162 = vmatmul.mubr.bf16.gmra.mxu0 %v124
  %v163 = vpop.f32.mrf.mxu0
  %v164 = vadd.f32 0.0, %v163
  %v165 = vpop.f32.mrf.mxu0
  %v166 = vadd.f32 0.0, %v165
  %v167 = vpop.f32.mrf.mxu0
  %v168 = vadd.f32 0.0, %v167
  %v169 = vpop.f32.mrf.mxu0
  %v170 = vadd.f32 0.0, %v169
  %171 = vmatprep.mubr.bf16.mxu0 0
  %172 = vmatmul.mubr.bf16.gmra.mxu0 %v127
  %v173 = vpop.f32.mrf.mxu0
  %v174 = vadd.f32 0.0, %v173
  %v175 = vpop.f32.mrf.mxu0
  %v176 = vadd.f32 0.0, %v175
  %v177 = vpop.f32.mrf.mxu0
  %v178 = vadd.f32 0.0, %v177
  %v179 = vpop.f32.mrf.mxu0
  %v180 = vadd.f32 0.0, %v179
  %181 = vdwg.mxu0
  %182 = vmatprep.subr.bf16.mxu0 0
  %183 = vmatpush1.bf16.msra.mxu0 0
  %184 = vmatprep.subr.bf16.mxu0 0
  %185 = vmatpush1.bf16.msra.mxu0 0
  %186 = vmatprep.subr.bf16.mxu0 0
  %187 = vmatpush1.bf16.msra.mxu0 0
  %188 = vmatprep.subr.bf16.mxu0 0
  %189 = vmatpush1.bf16.msra.mxu0 0
  %190 = vmatprep.subr.bf16.mxu0 %v105
  %191 = vmatpush1.bf16.msra.mxu0 %v104
  %192 = vmatprep.subr.bf16.mxu0 %v101
  %193 = vmatpush1.bf16.msra.mxu0 %v100
  %194 = vmatprep.subr.bf16.mxu0 %v97
  %195 = vmatpush1.bf16.msra.mxu0 %v96
  %196 = vmatprep.subr.bf16.mxu0 %v93
  %197 = vmatpush1.bf16.msra.mxu0 %v92
  %198 = vmatprep.subr.bf16.mxu0 0
  %199 = vmatpush2.bf16.msra.mxu0 0
  %200 = vmatprep.subr.bf16.mxu0 0
  %201 = vmatpush2.bf16.msra.mxu0 0
  %202 = vmatprep.subr.bf16.mxu0 0
  %203 = vmatpush2.bf16.msra.mxu0 0
  %204 = vmatprep.subr.bf16.mxu0 0
  %205 = vmatpush2.bf16.msra.mxu0 0
  %206 = vmatprep.subr.bf16.mxu0 0
  %207 = vmatpush2.bf16.msra.mxu0 0
  %208 = vmatprep.subr.bf16.mxu0 0
  %209 = vmatpush2.bf16.msra.mxu0 0
  %210 = vmatprep.subr.bf16.mxu0 0
  %211 = vmatpush2.bf16.msra.mxu0 0
  %212 = vmatprep.subr.bf16.mxu0 0
  %213 = vmatpush2.bf16.msra.mxu0 0
  %214 = vmatprep.mubr.bf16.mxu0 0
  %215 = vmatmul.mubr.bf16.gmra.mxu0 %v124
  %v216 = vpop.f32.mrf.mxu0
  %v217 = vadd.f32 0.0, %v216
  %v218 = vpop.f32.mrf.mxu0
  %v219 = vadd.f32 0.0, %v218
  %v220 = vpop.f32.mrf.mxu0
  %v221 = vadd.f32 0.0, %v220
  %v222 = vpop.f32.mrf.mxu0
  %v223 = vadd.f32 0.0, %v222
  %224 = vmatprep.mubr.bf16.mxu0 0
  %225 = vmatmul.mubr.bf16.gmra.mxu0 %v127
  %v226 = vpop.f32.mrf.mxu0
  %v227 = vadd.f32 0.0, %v226
  %v228 = vpop.f32.mrf.mxu0
  %v229 = vadd.f32 0.0, %v228
  %v230 = vpop.f32.mrf.mxu0
  %v231 = vadd.f32 0.0, %v230
  %v232 = vpop.f32.mrf.mxu0
  %v233 = vadd.f32 0.0, %v232
  %234 = vdwg.mxu0
  %235 = vst [vmem:[%s2] sm:$0xff] %v164
  %236 = vst [vmem:[%s2 + $0x8] sm:$0xff] %v166
  %237 = vst [vmem:[%s2 + $0x10] sm:$0xff] %v217
  %238 = vst [vmem:[%s2 + $0x18] sm:$0xff] %v219
  %239 = vst [vmem:[%s2 + $0x20] sm:$0xff] %v168
  %240 = vst [vmem:[%s2 + $0x28] sm:$0xff] %v170
  %241 = vst [vmem:[%s2 + $0x30] sm:$0xff] %v221
  %242 = vst [vmem:[%s2 + $0x38] sm:$0xff] %v223
  %243 = vst [vmem:[%s2 + $0x40] sm:$0xff] %v174
  %244 = vst [vmem:[%s2 + $0x48] sm:$0xff] %v176
  %245 = vst [vmem:[%s2 + $0x50] sm:$0xff] %v227
  %246 = vst [vmem:[%s2 + $0x58] sm:$0xff] %v229
  %247 = vst [vmem:[%s2 + $0x60] sm:$0xff] %v178
  %248 = vst [vmem:[%s2 + $0x68] sm:$0xff] %v180
  %249 = vst [vmem:[%s2 + $0x70] sm:$0xff] %v231
  %250 = vst [vmem:[%s2 + $0x78] sm:$0xff] %v233
  // Predicated region
  $region10: #{netg_forward.14} parent=0 // pred_check
    _
  $region11: #{netg_forward.14} parent=0 // pred_check_branch
    %252 = sbr.rel (0) target = $region13
  $region12: #{netg_forward.14} parent=0 // pred_region
    _
  $region13: #{netg_forward.14} parent=0 // pred_fallthru
    _
  // Predicated region
  $region14: #{netg_forward.14} parent=0 // pred_check
    _
  $region15: #{netg_forward.14} parent=0 // pred_check_branch
    %254 = sbr.rel (0) target = $region17
  $region16: #{netg_forward.14} parent=0 // pred_region
    _
  $region17: #{netg_forward.14} parent=0 // pred_fallthru
    _

// kernel: netg_forward.15
$region0: #{netg_forward.15}
  #allocation0 [shape = 'u32[]', space=smem, size = 0x4, offset = 0x4, fixed_abs, tag = 'smem constant byte address 0x4 - core index']
  #allocation1 [shape = 'u32[144,128]{1,0:T(1,128)}', space=vmem, size = 0x12000, scoped, tag = 'internal scratch']
  #allocation2 [shape = 'f32[1,32]{1,0:T(1,128)}', space=vmem, size = 0x200, scoped, tag = 'scratch operand']
  #allocation3 [shape = 'f32[1,32]{1,0:T(1,128)}', space=vmem, size = 0x200, scoped, tag = 'scratch operand']
  %s0 = inlined_call_operand.vmem [shape: f32[128,32], index: 0, kind: input, shape index: {}]
  %s1 = inlined_call_operand.vmem [shape: f32[2,32], index: 1, kind: output, shape index: {}]
  %s2 = sld [smem:[#allocation0]]
  $region22: #{netg_forward.15} parent=0
    _
  %s4 = ssub.s32 1, %s2
  %s5 = scalar_select 0, %s4, %s2
  // Predicated region
  $region2: #{netg_forward.15} parent=0 // pred_check
    _
  $region3: #{netg_forward.15} parent=0 // pred_check_branch
    %7 = sbr.rel (0) target = $region5
  $region4: #{netg_forward.15} parent=0 // pred_region
    _
  $region5: #{netg_forward.15} parent=0 // pred_fallthru
    _
  %p8 = scmp.eq.s32.totalorder 0, 0
  // Predicated region
  $region6: #{netg_forward.15} parent=0 // pred_check
    %p9 = pneg %p8
  $region7: #{netg_forward.15} parent=0 // pred_check_branch
    %11 = sbr.rel (%p9) target = $region9
  $region8: #{netg_forward.15} parent=0 // pred_region
    %vm12 = vcmask 253952
    %13 = vst.msk [vmem:[#allocation2] sm:$0x1] %vm12, 0.0
    %14 = vst.msk [vmem:[#allocation3] sm:$0x1] %vm12, 0.0
  $region9: #{netg_forward.15} parent=0 // pred_fallthru
    _
  %v15 = vld [vmem:[%s0] sm:$0xff]
  %v16 = vld [vmem:[%s0 + $0x8] sm:$0xff]
  %v17 = vld [vmem:[%s0 + $0x10] sm:$0xff]
  %v18 = vld [vmem:[%s0 + $0x18] sm:$0xff]
  %v19 = vld [vmem:[%s0 + $0x20] sm:$0xff]
  %v20 = vld [vmem:[%s0 + $0x28] sm:$0xff]
  %v21 = vld [vmem:[%s0 + $0x30] sm:$0xff]
  %v22 = vld [vmem:[%s0 + $0x38] sm:$0xff]
  %v23 = vld [vmem:[%s0 + $0x40] sm:$0xff]
  %v24 = vld [vmem:[%s0 + $0x48] sm:$0xff]
  %v25 = vld [vmem:[%s0 + $0x50] sm:$0xff]
  %v26 = vld [vmem:[%s0 + $0x58] sm:$0xff]
  %v27 = vld [vmem:[%s0 + $0x60] sm:$0xff]
  %v28 = vld [vmem:[%s0 + $0x68] sm:$0xff]
  %v29 = vld [vmem:[%s0 + $0x70] sm:$0xff]
  %v30 = vld [vmem:[%s0 + $0x78] sm:$0xff]
  %v31 = vld [vmem:[#allocation2] sm:$0x1]
  %vm32 = vcmask 261120
  %v33 = vsel %vm32, %v15, 0.0
  %v34 = vsel %vm32, %v16, 0.0
  %v35 = vadd.f32 %v33, %v34
  %v36 = vsel %vm32, %v17, 0.0
  %v37 = vadd.f32 %v35, %v36
  %v38 = vsel %vm32, %v18, 0.0
  %v39 = vadd.f32 %v37, %v38
  %v40 = vsel %vm32, %v19, 0.0
  %v41 = vadd.f32 %v39, %v40
  %v42 = vsel %vm32, %v20, 0.0
  %v43 = vadd.f32 %v41, %v42
  %v44 = vsel %vm32, %v21, 0.0
  %v45 = vadd.f32 %v43, %v44
  %v46 = vsel %vm32, %v22, 0.0
  %v47 = vadd.f32 %v45, %v46
  %v48 = vsel %vm32, %v23, 0.0
  %v49 = vadd.f32 %v47, %v48
  %v50 = vsel %vm32, %v24, 0.0
  %v51 = vadd.f32 %v49, %v50
  %v52 = vsel %vm32, %v25, 0.0
  %v53 = vadd.f32 %v51, %v52
  %v54 = vsel %vm32, %v26, 0.0
  %v55 = vadd.f32 %v53, %v54
  %v56 = vsel %vm32, %v27, 0.0
  %v57 = vadd.f32 %v55, %v56
  %v58 = vsel %vm32, %v28, 0.0
  %v59 = vadd.f32 %v57, %v58
  %v60 = vsel %vm32, %v29, 0.0
  %v61 = vadd.f32 %v59, %v60
  %v62 = vsel %vm32, %v30, 0.0
  %v63 = vadd.f32 %v61, %v62
  %v64 = vrot.slane %v63, 4
  %v65 = vadd.f32 %v63, %v64
  %v66 = vrot.slane %v65, 2
  %v67 = vadd.f32 %v65, %v66
  %v68 = vrot.slane %v67, 1
  %v69 = vadd.f32 %v67, %v68
  %v70 = vadd.f32 %v31, %v69
  %vm71 = vcmask 253952
  %72 = vst.msk [vmem:[#allocation2] sm:$0x1] %vm71, %v70
  %v73 = vld [vmem:[#allocation3] sm:$0x1]
  %v74 = vmul.f32 %v15, %v15
  %v75 = vmul.f32 %v16, %v16
  %v76 = vmul.f32 %v17, %v17
  %v77 = vmul.f32 %v18, %v18
  %v78 = vmul.f32 %v19, %v19
  %v79 = vmul.f32 %v20, %v20
  %v80 = vmul.f32 %v21, %v21
  %v81 = vmul.f32 %v22, %v22
  %v82 = vmul.f32 %v23, %v23
  %v83 = vmul.f32 %v24, %v24
  %v84 = vmul.f32 %v25, %v25
  %v85 = vmul.f32 %v26, %v26
  %v86 = vmul.f32 %v27, %v27
  %v87 = vmul.f32 %v28, %v28
  %v88 = vmul.f32 %v29, %v29
  %v89 = vmul.f32 %v30, %v30
  %v90 = vsel %vm32, %v74, 0.0
  %v91 = vsel %vm32, %v75, 0.0
  %v92 = vadd.f32 %v90, %v91
  %v93 = vsel %vm32, %v76, 0.0
  %v94 = vadd.f32 %v92, %v93
  %v95 = vsel %vm32, %v77, 0.0
  %v96 = vadd.f32 %v94, %v95
  %v97 = vsel %vm32, %v78, 0.0
  %v98 = vadd.f32 %v96, %v97
  %v99 = vsel %vm32, %v79, 0.0
  %v100 = vadd.f32 %v98, %v99
  %v101 = vsel %vm32, %v80, 0.0
  %v102 = vadd.f32 %v100, %v101
  %v103 = vsel %vm32, %v81, 0.0
  %v104 = vadd.f32 %v102, %v103
  %v105 = vsel %vm32, %v82, 0.0
  %v106 = vadd.f32 %v104, %v105
  %v107 = vsel %vm32, %v83, 0.0
  %v108 = vadd.f32 %v106, %v107
  %v109 = vsel %vm32, %v84, 0.0
  %v110 = vadd.f32 %v108, %v109
  %v111 = vsel %vm32, %v85, 0.0
  %v112 = vadd.f32 %v110, %v111
  %v113 = vsel %vm32, %v86, 0.0
  %v114 = vadd.f32 %v112, %v113
  %v115 = vsel %vm32, %v87, 0.0
  %v116 = vadd.f32 %v114, %v115
  %v117 = vsel %vm32, %v88, 0.0
  %v118 = vadd.f32 %v116, %v117
  %v119 = vsel %vm32, %v89, 0.0
  %v120 = vadd.f32 %v118, %v119
  %v121 = vrot.slane %v120, 4
  %v122 = vadd.f32 %v120, %v121
  %v123 = vrot.slane %v122, 2
  %v124 = vadd.f32 %v122, %v123
  %v125 = vrot.slane %v124, 1
  %v126 = vadd.f32 %v124, %v125
  %v127 = vadd.f32 %v73, %v126
  %128 = vst.msk [vmem:[#allocation3] sm:$0x1] %vm71, %v127
  // Predicated region
  $region10: #{netg_forward.15} parent=0 // pred_check
    %p129 = pneg %p8
  $region11: #{netg_forward.15} parent=0 // pred_check_branch
    %131 = sbr.rel (%p129) target = $region13
  $region12: #{netg_forward.15} parent=0 // pred_region
    %v132 = vld [vmem:[#allocation2] sm:$0x1]
    %v133 = vmul.f32 %v132, 0.0078125
    %v134 = vld [vmem:[#allocation3] sm:$0x1]
    %v135 = vmul.f32 %v134, 0.0078125
    %v136 = vmul.f32 %v133, %v133
    %v137 = vsub.f32 %v135, %v136
    %v138 = vmax.f32 %v137, 0.0
    %139 = vst.msk [vmem:[%s1] sm:$0x1] %vm71, %v133
    %v140 = vadd.f32 %v138, 1e-05
    %v141 = vrsqrt.pop %v140
    %142 = vst.msk [vmem:[%s1 + $0x1] sm:$0x1] %vm71, %v141
  $region13: #{netg_forward.15} parent=0 // pred_fallthru
    _
  // Predicated region
  $region14: #{netg_forward.15} parent=0 // pred_check
    _
  $region15: #{netg_forward.15} parent=0 // pred_check_branch
    %144 = sbr.rel (0) target = $region17
  $region16: #{netg_forward.15} parent=0 // pred_region
    _
  $region17: #{netg_forward.15} parent=0 // pred_fallthru
    _
  // Predicated region
  $region18: #{netg_forward.15} parent=0 // pred_check
    _
  $region19: #{netg_forward.15} parent=0 // pred_check_branch
    %146 = sbr.rel (0) target = $region21
  $region20: #{netg_forward.15} parent=0 // pred_region
    _
  $region21: #{netg_forward.15} parent=0 // pred_fallthru
    _

// kernel: netg_forward.16
$region0: #{netg_forward.16}
  #allocation0 [shape = 'u32[]', space=smem, size = 0x4, offset = 0x4, fixed_abs, tag = 'smem constant byte address 0x4 - core index']
  #allocation1 [shape = 'u32[144,128]{1,0:T(1,128)}', space=vmem, size = 0x12000, scoped, tag = 'internal scratch']
  %s0 = inlined_call_operand.vmem [shape: f32[128,32], index: 0, kind: input, shape index: {}]
  %s1 = inlined_call_operand.vmem [shape: f32[2,32], index: 1, kind: input, shape index: {}]
  %s2 = inlined_call_operand.vmem [shape: f32[1,32], index: 2, kind: input, shape index: {}]
  %s3 = inlined_call_operand.vmem [shape: f32[1,32], index: 3, kind: input, shape index: {}]
  %s4 = inlined_call_operand.vmem [shape: bf16[128,32], index: 4, kind: output, shape index: {}]
  %s5 = sld [smem:[#allocation0]]
  $region26: #{netg_forward.16} parent=0
    _
  %s7 = ssub.s32 1, %s5
  %s8 = scalar_select 0, %s7, %s5
  // Predicated region
  $region2: #{netg_forward.16} parent=0 // pred_check
    _
  $region3: #{netg_forward.16} parent=0 // pred_check_branch
    %10 = sbr.rel (0) target = $region5
  $region4: #{netg_forward.16} parent=0 // pred_region
    _
  $region5: #{netg_forward.16} parent=0 // pred_fallthru
    _
  // Predicated region
  $region6: #{netg_forward.16} parent=0 // pred_check
    _
  $region7: #{netg_forward.16} parent=0 // pred_check_branch
    %12 = sbr.rel (0) target = $region9
  $region8: #{netg_forward.16} parent=0 // pred_region
    _
  $region9: #{netg_forward.16} parent=0 // pred_fallthru
    _
  // Predicated region
  $region10: #{netg_forward.16} parent=0 // pred_check
    _
  $region11: #{netg_forward.16} parent=0 // pred_check_branch
    %14 = sbr.rel (0) target = $region13
  $region12: #{netg_forward.16} parent=0 // pred_region
    _
  $region13: #{netg_forward.16} parent=0 // pred_fallthru
    _
  // Predicated region
  $region14: #{netg_forward.16} parent=0 // pred_check
    _
  $region15: #{netg_forward.16} parent=0 // pred_check_branch
    %16 = sbr.rel (0) target = $region17
  $region16: #{netg_forward.16} parent=0 // pred_region
    _
  $region17: #{netg_forward.16} parent=0 // pred_fallthru
    _
  %v17 = vld [vmem:[%s1] sm:$0x1]
  %v18 = vld [vmem:[%s1 + $0x1] sm:$0x1]
  %v19 = vld [vmem:[%s0] sm:$0xff]
  %v20 = vld [vmem:[%s0 + $0x8] sm:$0xff]
  %v21 = vld [vmem:[%s0 + $0x10] sm:$0xff]
  %v22 = vld [vmem:[%s0 + $0x18] sm:$0xff]
  %v23 = vld [vmem:[%s0 + $0x20] sm:$0xff]
  %v24 = vld [vmem:[%s0 + $0x28] sm:$0xff]
  %v25 = vld [vmem:[%s0 + $0x30] sm:$0xff]
  %v26 = vld [vmem:[%s0 + $0x38] sm:$0xff]
  %v27 = vld [vmem:[%s0 + $0x40] sm:$0xff]
  %v28 = vld [vmem:[%s0 + $0x48] sm:$0xff]
  %v29 = vld [vmem:[%s0 + $0x50] sm:$0xff]
  %v30 = vld [vmem:[%s0 + $0x58] sm:$0xff]
  %v31 = vld [vmem:[%s0 + $0x60] sm:$0xff]
  %v32 = vld [vmem:[%s0 + $0x68] sm:$0xff]
  %v33 = vld [vmem:[%s0 + $0x70] sm:$0xff]
  %v34 = vld [vmem:[%s0 + $0x78] sm:$0xff]
  %v35 = vlaneseq
  %v36 = vshrl.u32 %v35, 7
  %v37 = vsub.s32 0, %v36
  %v38 = vrot.slane %v17, %v37
  %v39 = vsub.f32 %v19, %v38
  %v40 = vsub.f32 %v20, %v38
  %v41 = vsub.f32 %v21, %v38
  %v42 = vsub.f32 %v22, %v38
  %v43 = vsub.f32 %v23, %v38
  %v44 = vsub.f32 %v24, %v38
  %v45 = vsub.f32 %v25, %v38
  %v46 = vsub.f32 %v26, %v38
  %v47 = vsub.f32 %v27, %v38
  %v48 = vsub.f32 %v28, %v38
  %v49 = vsub.f32 %v29, %v38
  %v50 = vsub.f32 %v30, %v38
  %v51 = vsub.f32 %v31, %v38
  %v52 = vsub.f32 %v32, %v38
  %v53 = vsub.f32 %v33, %v38
  %v54 = vsub.f32 %v34, %v38
  %v55 = vld [vmem:[%s2] sm:$0x1]
  %v56 = vmul.f32 %v18, %v55
  %v57 = vlaneseq
  %v58 = vshrl.u32 %v57, 7
  %v59 = vsub.s32 0, %v58
  %v60 = vrot.slane %v56, %v59
  %v61 = vmul.f32 %v39, %v60
  %v62 = vmul.f32 %v40, %v60
  %v63 = vmul.f32 %v41, %v60
  %v64 = vmul.f32 %v42, %v60
  %v65 = vmul.f32 %v43, %v60
  %v66 = vmul.f32 %v44, %v60
  %v67 = vmul.f32 %v45, %v60
  %v68 = vmul.f32 %v46, %v60
  %v69 = vmul.f32 %v47, %v60
  %v70 = vmul.f32 %v48, %v60
  %v71 = vmul.f32 %v49, %v60
  %v72 = vmul.f32 %v50, %v60
  %v73 = vmul.f32 %v51, %v60
  %v74 = vmul.f32 %v52, %v60
  %v75 = vmul.f32 %v53, %v60
  %v76 = vmul.f32 %v54, %v60
  %v77 = vld [vmem:[%s3] sm:$0x1]
  %v79 = vlaneseq
  %v80 = vshrl.u32 %v79, 7
  %v81 = vsub.s32 0, %v80
  %v82 = vrot.slane %v77, %v81
  %v84 = vadd.f32 %v61, %v82
  %v85 = vadd.f32 %v62, %v82
  %v86 = vadd.f32 %v63, %v82
  %v87 = vadd.f32 %v64, %v82
  %v88 = vadd.f32 %v65, %v82
  %v89 = vadd.f32 %v66, %v82
  %v90 = vadd.f32 %v67, %v82
  %v91 = vadd.f32 %v68, %v82
  %v92 = vadd.f32 %v69, %v82
  %v93 = vadd.f32 %v70, %v82
  %v94 = vadd.f32 %v71, %v82
  %v95 = vadd.f32 %v72, %v82
  %v96 = vadd.f32 %v73, %v82
  %v97 = vadd.f32 %v74, %v82
  %v98 = vadd.f32 %v75, %v82
  %v99 = vadd.f32 %v76, %v82
  %v100 = vmax.f32 %v84, 0.0
  %v101 = vmax.f32 %v85, 0.0
  %v102 = vmax.f32 %v86, 0.0
  %v103 = vmax.f32 %v87, 0.0
  %v104 = vmax.f32 %v88, 0.0
  %v105 = vmax.f32 %v89, 0.0
  %v106 = vmax.f32 %v90, 0.0
  %v107 = vmax.f32 %v91, 0.0
  %v108 = vmax.f32 %v92, 0.0
  %v109 = vmax.f32 %v93, 0.0
  %v110 = vmax.f32 %v94, 0.0
  %v111 = vmax.f32 %v95, 0.0
  %v112 = vmax.f32 %v96, 0.0
  %v113 = vmax.f32 %v97, 0.0
  %v114 = vmax.f32 %v98, 0.0
  %v115 = vmax.f32 %v99, 0.0
  %v116 = vpack.c.bf16 %v101, %v100
  %v117 = vpack.c.bf16 %v103, %v102
  %v118 = vpack.c.bf16 %v105, %v104
  %v119 = vpack.c.bf16 %v107, %v106
  %v120 = vpack.c.bf16 %v109, %v108
  %v121 = vpack.c.bf16 %v111, %v110
  %v122 = vpack.c.bf16 %v113, %v112
  %v123 = vpack.c.bf16 %v115, %v114
  %v132 = vunpack.c.l.b16 %v116
  %v133 = vunpack.c.h.b16 %v116
  %v134 = vunpack.c.l.b16 %v117
  %v135 = vunpack.c.h.b16 %v117
  %v136 = vunpack.c.l.b16 %v118
  %v137 = vunpack.c.h.b16 %v118
  %v138 = vunpack.c.l.b16 %v119
  %v139 = vunpack.c.h.b16 %v119
  %v140 = vunpack.c.l.b16 %v120
  %v141 = vunpack.c.h.b16 %v120
  %v142 = vunpack.c.l.b16 %v121
  %v143 = vunpack.c.h.b16 %v121
  %v144 = vunpack.c.l.b16 %v122
  %v145 = vunpack.c.h.b16 %v122
  %v146 = vunpack.c.l.b16 %v123
  %v147 = vunpack.c.h.b16 %v123
  %v148 = vpack.c.b16 %v132, %v132
  %v149 = vpack.c.b16 %v133, %v133
  %v150 = vpack.c.b16 %v134, %v134
  %v151 = vpack.c.b16 %v135, %v135
  %v152 = vpack.c.b16 %v136, %v136
  %v153 = vpack.c.b16 %v137, %v137
  %v154 = vpack.c.b16 %v138, %v138
  %v155 = vpack.c.b16 %v139, %v139
  %v156 = vpack.c.b16 %v140, %v140
  %v157 = vpack.c.b16 %v141, %v141
  %v158 = vpack.c.b16 %v142, %v142
  %v159 = vpack.c.b16 %v143, %v143
  %v160 = vpack.c.b16 %v144, %v144
  %v161 = vpack.c.b16 %v145, %v145
  %v162 = vpack.c.b16 %v146, %v146
  %v163 = vpack.c.b16 %v147, %v147
  %vm180 = vcmask 257024
  %181 = vst.msk [vmem:[%s4] sm:$0xf] %vm180, %v148
  %182 = vst.msk [vmem:[%s4 + $0x4] sm:$0xf] %vm180, %v149
  %183 = vst.msk [vmem:[%s4 + $0x8] sm:$0xf] %vm180, %v150
  %184 = vst.msk [vmem:[%s4 + $0xc] sm:$0xf] %vm180, %v151
  %185 = vst.msk [vmem:[%s4 + $0x10] sm:$0xf] %vm180, %v152
  %186 = vst.msk [vmem:[%s4 + $0x14] sm:$0xf] %vm180, %v153
  %187 = vst.msk [vmem:[%s4 + $0x18] sm:$0xf] %vm180, %v154
  %188 = vst.msk [vmem:[%s4 + $0x1c] sm:$0xf] %vm180, %v155
  %189 = vst.msk [vmem:[%s4 + $0x20] sm:$0xf] %vm180, %v156
  %190 = vst.msk [vmem:[%s4 + $0x24] sm:$0xf] %vm180, %v157
  %191 = vst.msk [vmem:[%s4 + $0x28] sm:$0xf] %vm180, %v158
  %192 = vst.msk [vmem:[%s4 + $0x2c] sm:$0xf] %vm180, %v159
  %193 = vst.msk [vmem:[%s4 + $0x30] sm:$0xf] %vm180, %v160
  %194 = vst.msk [vmem:[%s4 + $0x34] sm:$0xf] %vm180, %v161
  %195 = vst.msk [vmem:[%s4 + $0x38] sm:$0xf] %vm180, %v162
  %196 = vst.msk [vmem:[%s4 + $0x3c] sm:$0xf] %vm180, %v163
  // Predicated region
  $region18: #{netg_forward.16} parent=0 // pred_check
    _
  $region19: #{netg_forward.16} parent=0 // pred_check_branch
    %198 = sbr.rel (0) target = $region21
  $region20: #{netg_forward.16} parent=0 // pred_region
    _
  $region21: #{netg_forward.16} parent=0 // pred_fallthru
    _
  // Predicated region
  $region22: #{netg_forward.16} parent=0 // pred_check
    _
  $region23: #{netg_forward.16} parent=0 // pred_check_branch
    %200 = sbr.rel (0) target = $region25
  $region24: #{netg_forward.16} parent=0 // pred_region
    _
  $region25: #{netg_forward.16} parent=0 // pred_fallthru
    _

// kernel: netg_forward.17
$region0: #{netg_forward.17}
  #allocation0 [shape = 'u32[]', space=smem, size = 0x4, offset = 0x4, fixed_abs, tag = 'smem constant byte address 0x4 - core index']
  #allocation1 [shape = 'u32[144,128]{1,0:T(1,128)}', space=vmem, size = 0x12000, scoped, tag = 'internal scratch']
  %s0 = inlined_call_operand.vmem [shape: bf16[128,32], index: 0, kind: input, shape index: {}]
  %s1 = inlined_call_operand.vmem [shape: bf16[32,256], index: 1, kind: input, shape index: {}]
  %s2 = inlined_call_operand.vmem [shape: f32[128,256], index: 2, kind: output, shape index: {}]
  %s3 = sld [smem:[#allocation0]]
  $region18: #{netg_forward.17} parent=0
    _
  %s5 = ssub.s32 1, %s3
  %s6 = scalar_select 0, %s5, %s3
  // Predicated region
  $region2: #{netg_forward.17} parent=0 // pred_check
    _
  $region3: #{netg_forward.17} parent=0 // pred_check_branch
    %8 = sbr.rel (0) target = $region5
  $region4: #{netg_forward.17} parent=0 // pred_region
    _
  $region5: #{netg_forward.17} parent=0 // pred_fallthru
    _
  // Predicated region
  $region6: #{netg_forward.17} parent=0 // pred_check
    _
  $region7: #{netg_forward.17} parent=0 // pred_check_branch
    %10 = sbr.rel (0) target = $region9
  $region8: #{netg_forward.17} parent=0 // pred_region
    _
  $region9: #{netg_forward.17} parent=0 // pred_fallthru
    _
  %v12 = vld [vmem:[%s0] sm:$0xf]
  %v13 = vld [vmem:[%s0 + $0x4] sm:$0xf]
  %v14 = vld [vmem:[%s0 + $0x8] sm:$0xf]
  %v15 = vld [vmem:[%s0 + $0xc] sm:$0xf]
  %v16 = vld [vmem:[%s0 + $0x10] sm:$0xf]
  %v17 = vld [vmem:[%s0 + $0x14] sm:$0xf]
  %v18 = vld [vmem:[%s0 + $0x18] sm:$0xf]
  %v19 = vld [vmem:[%s0 + $0x1c] sm:$0xf]
  %v20 = vld [vmem:[%s0 + $0x20] sm:$0xf]
  %v21 = vld [vmem:[%s0 + $0x24] sm:$0xf]
  %v22 = vld [vmem:[%s0 + $0x28] sm:$0xf]
  %v23 = vld [vmem:[%s0 + $0x2c] sm:$0xf]
  %v24 = vld [vmem:[%s0 + $0x30] sm:$0xf]
  %v25 = vld [vmem:[%s0 + $0x34] sm:$0xf]
  %v26 = vld [vmem:[%s0 + $0x38] sm:$0xf]
  %v27 = vld [vmem:[%s0 + $0x3c] sm:$0xf]
  %v28 = vld [vmem:[%s1] sm:$0xff]
  %v29 = vld [vmem:[%s1 + $0x8] sm:$0xff]
  %v30 = vld [vmem:[%s1 + $0x10] sm:$0xff]
  %v31 = vld [vmem:[%s1 + $0x18] sm:$0xff]
  %v48 = vunpack.c.l.b16 %v12
  %v49 = vunpack.c.l.b16 %v13
  %v50 = vunpack.c.l.b16 %v14
  %v51 = vunpack.c.l.b16 %v15
  %v52 = vunpack.c.l.b16 %v16
  %v53 = vunpack.c.l.b16 %v17
  %v54 = vunpack.c.l.b16 %v18
  %v55 = vunpack.c.l.b16 %v19
  %v56 = vunpack.c.l.b16 %v20
  %v57 = vunpack.c.l.b16 %v21
  %v58 = vunpack.c.l.b16 %v22
  %v59 = vunpack.c.l.b16 %v23
  %v60 = vunpack.c.l.b16 %v24
  %v61 = vunpack.c.l.b16 %v25
  %v62 = vunpack.c.l.b16 %v26
  %v63 = vunpack.c.l.b16 %v27
  %v64 = vpack.c.b16 %v49, %v48
  %v65 = vpack.c.b16 %v51, %v50
  %v66 = vpack.c.b16 %v53, %v52
  %v67 = vpack.c.b16 %v55, %v54
  %v68 = vpack.c.b16 %v57, %v56
  %v69 = vpack.c.b16 %v59, %v58
  %v70 = vpack.c.b16 %v61, %v60
  %v71 = vpack.c.b16 %v63, %v62
  %v76 = vunpack.c.l.b16 %v28
  %v77 = vunpack.c.h.b16 %v28
  %v78 = vunpack.c.l.b16 %v29
  %v79 = vunpack.c.h.b16 %v29
  %v80 = vunpack.c.l.b16 %v30
  %v81 = vunpack.c.h.b16 %v30
  %v82 = vunpack.c.l.b16 %v31
  %v83 = vunpack.c.h.b16 %v31
  %v84 = vpack.c.b16 %v78, %v76
  %v85 = vpack.c.b16 %v79, %v77
  %v86 = vpack.c.b16 %v82, %v80
  %v87 = vpack.c.b16 %v83, %v81
  %vm92 = vcmask 261120
  %v94 = vsel %vm92, %v64, 0
  %v97 = vsel %vm92, %v65, 0
  %v100 = vsel %vm92, %v66, 0
  %v103 = vsel %vm92, %v67, 0
  %v106 = vsel %vm92, %v68, 0
  %v109 = vsel %vm92, %v69, 0
  %v112 = vsel %vm92, %v70, 0
  %v115 = vsel %vm92, %v71, 0
  %117 = vmatprep.subr.bf16.mxu0 0
  %118 = vmatpush1.bf16.msra.mxu0 0
  %119 = vmatprep.subr.bf16.mxu0 0
  %120 = vmatpush1.bf16.msra.mxu0 0
  %121 = vmatprep.subr.bf16.mxu0 0
  %122 = vmatpush1.bf16.msra.mxu0 0
  %123 = vmatprep.subr.bf16.mxu0 0
  %124 = vmatpush1.bf16.msra.mxu0 0
  %125 = vmatprep.subr.bf16.mxu0 0
  %126 = vmatpush1.bf16.msra.mxu0 0
  %127 = vmatprep.subr.bf16.mxu0 0
  %128 = vmatpush1.bf16.msra.mxu0 0
  %129 = vmatprep.subr.bf16.mxu0 %v87
  %130 = vmatpush1.bf16.msra.mxu0 %v86
  %131 = vmatprep.subr.bf16.mxu0 %v85
  %132 = vmatpush1.bf16.msra.mxu0 %v84
  %133 = vmatprep.subr.bf16.mxu0 0
  %134 = vmatpush2.bf16.msra.mxu0 0
  %135 = vmatprep.subr.bf16.mxu0 0
  %136 = vmatpush2.bf16.msra.mxu0 0
  %137 = vmatprep.subr.bf16.mxu0 0
  %138 = vmatpush2.bf16.msra.mxu0 0
  %139 = vmatprep.subr.bf16.mxu0 0
  %140 = vmatpush2.bf16.msra.mxu0 0
  %141 = vmatprep.subr.bf16.mxu0 0
  %142 = vmatpush2.bf16.msra.mxu0 0
  %143 = vmatprep.subr.bf16.mxu0 0
  %144 = vmatpush2.bf16.msra.mxu0 0
  %145 = vmatprep.subr.bf16.mxu0 0
  %146 = vmatpush2.bf16.msra.mxu0 0
  %147 = vmatprep.subr.bf16.mxu0 0
  %148 = vmatpush2.bf16.msra.mxu0 0
  %149 = vmatprep.mubr.bf16.mxu0 0
  %150 = vmatmul.mubr.bf16.gmra.mxu0 %v94
  %v151 = vpop.f32.mrf.mxu0
  %v152 = vadd.f32 0.0, %v151
  %v153 = vpop.f32.mrf.mxu0
  %v154 = vadd.f32 0.0, %v153
  %v155 = vpop.f32.mrf.mxu0
  %v156 = vadd.f32 0.0, %v155
  %v157 = vpop.f32.mrf.mxu0
  %v158 = vadd.f32 0.0, %v157
  %159 = vmatprep.mubr.bf16.mxu0 0
  %160 = vmatmul.mubr.bf16.gmra.mxu0 %v97
  %v161 = vpop.f32.mrf.mxu0
  %v162 = vadd.f32 0.0, %v161
  %v163 = vpop.f32.mrf.mxu0
  %v164 = vadd.f32 0.0, %v163
  %v165 = vpop.f32.mrf.mxu0
  %v166 = vadd.f32 0.0, %v165
  %v167 = vpop.f32.mrf.mxu0
  %v168 = vadd.f32 0.0, %v167
  %169 = vmatprep.mubr.bf16.mxu0 0
  %170 = vmatmul.mubr.bf16.gmra.mxu0 %v100
  %v171 = vpop.f32.mrf.mxu0
  %v172 = vadd.f32 0.0, %v171
  %v173 = vpop.f32.mrf.mxu0
  %v174 = vadd.f32 0.0, %v173
  %v175 = vpop.f32.mrf.mxu0
  %v176 = vadd.f32 0.0, %v175
  %v177 = vpop.f32.mrf.mxu0
  %v178 = vadd.f32 0.0, %v177
  %179 = vmatprep.mubr.bf16.mxu0 0
  %180 = vmatmul.mubr.bf16.gmra.mxu0 %v103
  %v181 = vpop.f32.mrf.mxu0
  %v182 = vadd.f32 0.0, %v181
  %v183 = vpop.f32.mrf.mxu0
  %v184 = vadd.f32 0.0, %v183
  %v185 = vpop.f32.mrf.mxu0
  %v186 = vadd.f32 0.0, %v185
  %v187 = vpop.f32.mrf.mxu0
  %v188 = vadd.f32 0.0, %v187
  %189 = vmatprep.mubr.bf16.mxu0 0
  %190 = vmatmul.mubr.bf16.gmra.mxu0 %v106
  %v191 = vpop.f32.mrf.mxu0
  %v192 = vadd.f32 0.0, %v191
  %v193 = vpop.f32.mrf.mxu0
  %v194 = vadd.f32 0.0, %v193
  %v195 = vpop.f32.mrf.mxu0
  %v196 = vadd.f32 0.0, %v195
  %v197 = vpop.f32.mrf.mxu0
  %v198 = vadd.f32 0.0, %v197
  %199 = vmatprep.mubr.bf16.mxu0 0
  %200 = vmatmul.mubr.bf16.gmra.mxu0 %v109
  %v201 = vpop.f32.mrf.mxu0
  %v202 = vadd.f32 0.0, %v201
  %v203 = vpop.f32.mrf.mxu0
  %v204 = vadd.f32 0.0, %v203
  %v205 = vpop.f32.mrf.mxu0
  %v206 = vadd.f32 0.0, %v205
  %v207 = vpop.f32.mrf.mxu0
  %v208 = vadd.f32 0.0, %v207
  %209 = vmatprep.mubr.bf16.mxu0 0
  %210 = vmatmul.mubr.bf16.gmra.mxu0 %v112
  %v211 = vpop.f32.mrf.mxu0
  %v212 = vadd.f32 0.0, %v211
  %v213 = vpop.f32.mrf.mxu0
  %v214 = vadd.f32 0.0, %v213
  %v215 = vpop.f32.mrf.mxu0
  %v216 = vadd.f32 0.0, %v215
  %v217 = vpop.f32.mrf.mxu0
  %v218 = vadd.f32 0.0, %v217
  %219 = vmatprep.mubr.bf16.mxu0 0
  %220 = vmatmul.mubr.bf16.gmra.mxu0 %v115
  %v221 = vpop.f32.mrf.mxu0
  %v222 = vadd.f32 0.0, %v221
  %v223 = vpop.f32.mrf.mxu0
  %v224 = vadd.f32 0.0, %v223
  %v225 = vpop.f32.mrf.mxu0
  %v226 = vadd.f32 0.0, %v225
  %v227 = vpop.f32.mrf.mxu0
  %v228 = vadd.f32 0.0, %v227
  %229 = vdwg.mxu0
  %230 = vst [vmem:[%s2] sm:$0xff] %v152
  %231 = vst [vmem:[%s2 + $0x8] sm:$0xff] %v154
  %232 = vst [vmem:[%s2 + $0x10] sm:$0xff] %v156
  %233 = vst [vmem:[%s2 + $0x18] sm:$0xff] %v158
  %234 = vst [vmem:[%s2 + $0x20] sm:$0xff] %v162
  %235 = vst [vmem:[%s2 + $0x28] sm:$0xff] %v164
  %236 = vst [vmem:[%s2 + $0x30] sm:$0xff] %v166
  %237 = vst [vmem:[%s2 + $0x38] sm:$0xff] %v168
  %238 = vst [vmem:[%s2 + $0x40] sm:$0xff] %v172
  %239 = vst [vmem:[%s2 + $0x48] sm:$0xff] %v174
  %240 = vst [vmem:[%s2 + $0x50] sm:$0xff] %v176
  %241 = vst [vmem:[%s2 + $0x58] sm:$0xff] %v178
  %242 = vst [vmem:[%s2 + $0x60] sm:$0xff] %v182
  %243 = vst [vmem:[%s2 + $0x68] sm:$0xff] %v184
  %244 = vst [vmem:[%s2 + $0x70] sm:$0xff] %v186
  %245 = vst [vmem:[%s2 + $0x78] sm:$0xff] %v188
  %246 = vst [vmem:[%s2 + $0x80] sm:$0xff] %v192
  %247 = vst [vmem:[%s2 + $0x88] sm:$0xff] %v194
  %248 = vst [vmem:[%s2 + $0x90] sm:$0xff] %v196
  %249 = vst [vmem:[%s2 + $0x98] sm:$0xff] %v198
  %250 = vst [vmem:[%s2 + $0xa0] sm:$0xff] %v202
  %251 = vst [vmem:[%s2 + $0xa8] sm:$0xff] %v204
  %252 = vst [vmem:[%s2 + $0xb0] sm:$0xff] %v206
  %253 = vst [vmem:[%s2 + $0xb8] sm:$0xff] %v208
  %254 = vst [vmem:[%s2 + $0xc0] sm:$0xff] %v212
  %255 = vst [vmem:[%s2 + $0xc8] sm:$0xff] %v214
  %256 = vst [vmem:[%s2 + $0xd0] sm:$0xff] %v216
  %257 = vst [vmem:[%s2 + $0xd8] sm:$0xff] %v218
  %258 = vst [vmem:[%s2 + $0xe0] sm:$0xff] %v222
  %259 = vst [vmem:[%s2 + $0xe8] sm:$0xff] %v224
  %260 = vst [vmem:[%s2 + $0xf0] sm:$0xff] %v226
  %261 = vst [vmem:[%s2 + $0xf8] sm:$0xff] %v228
  // Predicated region
  $region10: #{netg_forward.17} parent=0 // pred_check
    _
  $region11: #{netg_forward.17} parent=0 // pred_check_branch
    %263 = sbr.rel (0) target = $region13
  $region12: #{netg_forward.17} parent=0 // pred_region
    _
  $region13: #{netg_forward.17} parent=0 // pred_fallthru
    _
  // Predicated region
  $region14: #{netg_forward.17} parent=0 // pred_check
    _
  $region15: #{netg_forward.17} parent=0 // pred_check_branch
    %265 = sbr.rel (0) target = $region17
  $region16: #{netg_forward.17} parent=0 // pred_region
    _
  $region17: #{netg_forward.17} parent=0 // pred_fallthru
    _

// kernel: netg_forward.18
$region0: #{netg_forward.18}
  #allocation0 [shape = 'u32[]', space=smem, size = 0x4, offset = 0x4, fixed_abs, tag = 'smem constant byte address 0x4 - core index']
  #allocation1 [shape = 'u32[144,128]{1,0:T(1,128)}', space=vmem, size = 0x12000, scoped, tag = 'internal scratch']
  #allocation2 [shape = 'f32[1,16]{1,0:T(1,128)}', space=vmem, size = 0x200, scoped, tag = 'scratch operand']
  #allocation3 [shape = 'f32[1,16]{1,0:T(1,128)}', space=vmem, size = 0x200, scoped, tag = 'scratch operand']
  %s0 = inlined_call_operand.vmem [shape: f32[512,16], index: 0, kind: input, shape index: {}]
  %s1 = inlined_call_operand.vmem [shape: f32[2,16], index: 1, kind: output, shape index: {}]
  %s2 = sld [smem:[#allocation0]]
  $region22: #{netg_forward.18} parent=0
    _
  %s4 = ssub.s32 1, %s2
  %s5 = scalar_select 0, %s4, %s2
  // Predicated region
  $region2: #{netg_forward.18} parent=0 // pred_check
    _
  $region3: #{netg_forward.18} parent=0 // pred_check_branch
    %7 = sbr.rel (0) target = $region5
  $region4: #{netg_forward.18} parent=0 // pred_region
    _
  $region5: #{netg_forward.18} parent=0 // pred_fallthru
    _
  %p8 = scmp.eq.s32.totalorder 0, 0
  // Predicated region
  $region6: #{netg_forward.18} parent=0 // pred_check
    %p9 = pneg %p8
  $region7: #{netg_forward.18} parent=0 // pred_check_branch
    %11 = sbr.rel (%p9) target = $region9
  $region8: #{netg_forward.18} parent=0 // pred_region
    %vm12 = vcmask 122880
    %13 = vst.msk [vmem:[#allocation2] sm:$0x1] %vm12, 0.0
    %14 = vst.msk [vmem:[#allocation3] sm:$0x1] %vm12, 0.0
  $region9: #{netg_forward.18} parent=0 // pred_fallthru
    _
  %v15 = vld [vmem:[%s0] sm:$0xff]
  %v16 = vld [vmem:[%s0 + $0x8] sm:$0xff]
  %v17 = vld [vmem:[%s0 + $0x10] sm:$0xff]
  %v18 = vld [vmem:[%s0 + $0x18] sm:$0xff]
  %v19 = vld [vmem:[%s0 + $0x20] sm:$0xff]
  %v20 = vld [vmem:[%s0 + $0x28] sm:$0xff]
  %v21 = vld [vmem:[%s0 + $0x30] sm:$0xff]
  %v22 = vld [vmem:[%s0 + $0x38] sm:$0xff]
  %v23 = vld [vmem:[%s0 + $0x40] sm:$0xff]
  %v24 = vld [vmem:[%s0 + $0x48] sm:$0xff]
  %v25 = vld [vmem:[%s0 + $0x50] sm:$0xff]
  %v26 = vld [vmem:[%s0 + $0x58] sm:$0xff]
  %v27 = vld [vmem:[%s0 + $0x60] sm:$0xff]
  %v28 = vld [vmem:[%s0 + $0x68] sm:$0xff]
  %v29 = vld [vmem:[%s0 + $0x70] sm:$0xff]
  %v30 = vld [vmem:[%s0 + $0x78] sm:$0xff]
  %v31 = vld [vmem:[%s0 + $0x80] sm:$0xff]
  %v32 = vld [vmem:[%s0 + $0x88] sm:$0xff]
  %v33 = vld [vmem:[%s0 + $0x90] sm:$0xff]
  %v34 = vld [vmem:[%s0 + $0x98] sm:$0xff]
  %v35 = vld [vmem:[%s0 + $0xa0] sm:$0xff]
  %v36 = vld [vmem:[%s0 + $0xa8] sm:$0xff]
  %v37 = vld [vmem:[%s0 + $0xb0] sm:$0xff]
  %v38 = vld [vmem:[%s0 + $0xb8] sm:$0xff]
  %v39 = vld [vmem:[%s0 + $0xc0] sm:$0xff]
  %v40 = vld [vmem:[%s0 + $0xc8] sm:$0xff]
  %v41 = vld [vmem:[%s0 + $0xd0] sm:$0xff]
  %v42 = vld [vmem:[%s0 + $0xd8] sm:$0xff]
  %v43 = vld [vmem:[%s0 + $0xe0] sm:$0xff]
  %v44 = vld [vmem:[%s0 + $0xe8] sm:$0xff]
  %v45 = vld [vmem:[%s0 + $0xf0] sm:$0xff]
  %v46 = vld [vmem:[%s0 + $0xf8] sm:$0xff]
  %v47 = vld [vmem:[%s0 + $0x100] sm:$0xff]
  %v48 = vld [vmem:[%s0 + $0x108] sm:$0xff]
  %v49 = vld [vmem:[%s0 + $0x110] sm:$0xff]
  %v50 = vld [vmem:[%s0 + $0x118] sm:$0xff]
  %v51 = vld [vmem:[%s0 + $0x120] sm:$0xff]
  %v52 = vld [vmem:[%s0 + $0x128] sm:$0xff]
  %v53 = vld [vmem:[%s0 + $0x130] sm:$0xff]
  %v54 = vld [vmem:[%s0 + $0x138] sm:$0xff]
  %v55 = vld [vmem:[%s0 + $0x140] sm:$0xff]
  %v56 = vld [vmem:[%s0 + $0x148] sm:$0xff]
  %v57 = vld [vmem:[%s0 + $0x150] sm:$0xff]
  %v58 = vld [vmem:[%s0 + $0x158] sm:$0xff]
  %v59 = vld [vmem:[%s0 + $0x160] sm:$0xff]
  %v60 = vld [vmem:[%s0 + $0x168] sm:$0xff]
  %v61 = vld [vmem:[%s0 + $0x170] sm:$0xff]
  %v62 = vld [vmem:[%s0 + $0x178] sm:$0xff]
  %v63 = vld [vmem:[%s0 + $0x180] sm:$0xff]
  %v64 = vld [vmem:[%s0 + $0x188] sm:$0xff]
  %v65 = vld [vmem:[%s0 + $0x190] sm:$0xff]
  %v66 = vld [vmem:[%s0 + $0x198] sm:$0xff]
  %v67 = vld [vmem:[%s0 + $0x1a0] sm:$0xff]
  %v68 = vld [vmem:[%s0 + $0x1a8] sm:$0xff]
  %v69 = vld [vmem:[%s0 + $0x1b0] sm:$0xff]
  %v70 = vld [vmem:[%s0 + $0x1b8] sm:$0xff]
  %v71 = vld [vmem:[%s0 + $0x1c0] sm:$0xff]
  %v72 = vld [vmem:[%s0 + $0x1c8] sm:$0xff]
  %v73 = vld [vmem:[%s0 + $0x1d0] sm:$0xff]
  %v74 = vld [vmem:[%s0 + $0x1d8] sm:$0xff]
  %v75 = vld [vmem:[%s0 + $0x1e0] sm:$0xff]
  %v76 = vld [vmem:[%s0 + $0x1e8] sm:$0xff]
  %v77 = vld [vmem:[%s0 + $0x1f0] sm:$0xff]
  %v78 = vld [vmem:[%s0 + $0x1f8] sm:$0xff]
  %v79 = vld [vmem:[#allocation2] sm:$0x1]
  %vm80 = vcmask 130048
  %v81 = vsel %vm80, %v15, 0.0
  %v82 = vsel %vm80, %v16, 0.0
  %v83 = vadd.f32 %v81, %v82
  %v84 = vsel %vm80, %v17, 0.0
  %v85 = vadd.f32 %v83, %v84
  %v86 = vsel %vm80, %v18, 0.0
  %v87 = vadd.f32 %v85, %v86
  %v88 = vsel %vm80, %v19, 0.0
  %v89 = vadd.f32 %v87, %v88
  %v90 = vsel %vm80, %v20, 0.0
  %v91 = vadd.f32 %v89, %v90
  %v92 = vsel %vm80, %v21, 0.0
  %v93 = vadd.f32 %v91, %v92
  %v94 = vsel %vm80, %v22, 0.0
  %v95 = vadd.f32 %v93, %v94
  %v96 = vsel %vm80, %v23, 0.0
  %v97 = vadd.f32 %v95, %v96
  %v98 = vsel %vm80, %v24, 0.0
  %v99 = vadd.f32 %v97, %v98
  %v100 = vsel %vm80, %v25, 0.0
  %v101 = vadd.f32 %v99, %v100
  %v102 = vsel %vm80, %v26, 0.0
  %v103 = vadd.f32 %v101, %v102
  %v104 = vsel %vm80, %v27, 0.0
  %v105 = vadd.f32 %v103, %v104
  %v106 = vsel %vm80, %v28, 0.0
  %v107 = vadd.f32 %v105, %v106
  %v108 = vsel %vm80, %v29, 0.0
  %v109 = vadd.f32 %v107, %v108
  %v110 = vsel %vm80, %v30, 0.0
  %v111 = vadd.f32 %v109, %v110
  %v112 = vsel %vm80, %v31, 0.0
  %v113 = vadd.f32 %v111, %v112
  %v114 = vsel %vm80, %v32, 0.0
  %v115 = vadd.f32 %v113, %v114
  %v116 = vsel %vm80, %v33, 0.0
  %v117 = vadd.f32 %v115, %v116
  %v118 = vsel %vm80, %v34, 0.0
  %v119 = vadd.f32 %v117, %v118
  %v120 = vsel %vm80, %v35, 0.0
  %v121 = vadd.f32 %v119, %v120
  %v122 = vsel %vm80, %v36, 0.0
  %v123 = vadd.f32 %v121, %v122
  %v124 = vsel %vm80, %v37, 0.0
  %v125 = vadd.f32 %v123, %v124
  %v126 = vsel %vm80, %v38, 0.0
  %v127 = vadd.f32 %v125, %v126
  %v128 = vsel %vm80, %v39, 0.0
  %v129 = vadd.f32 %v127, %v128
  %v130 = vsel %vm80, %v40, 0.0
  %v131 = vadd.f32 %v129, %v130
  %v132 = vsel %vm80, %v41, 0.0
  %v133 = vadd.f32 %v131, %v132
  %v134 = vsel %vm80, %v42, 0.0
  %v135 = vadd.f32 %v133, %v134
  %v136 = vsel %vm80, %v43, 0.0
  %v137 = vadd.f32 %v135, %v136
  %v138 = vsel %vm80, %v44, 0.0
  %v139 = vadd.f32 %v137, %v138
  %v140 = vsel %vm80, %v45, 0.0
  %v141 = vadd.f32 %v139, %v140
  %v142 = vsel %vm80, %v46, 0.0
  %v143 = vadd.f32 %v141, %v142
  %v144 = vsel %vm80, %v47, 0.0
  %v145 = vadd.f32 %v143, %v144
  %v146 = vsel %vm80, %v48, 0.0
  %v147 = vadd.f32 %v145, %v146
  %v148 = vsel %vm80, %v49, 0.0
  %v149 = vadd.f32 %v147, %v148
  %v150 = vsel %vm80, %v50, 0.0
  %v151 = vadd.f32 %v149, %v150
  %v152 = vsel %vm80, %v51, 0.0
  %v153 = vadd.f32 %v151, %v152
  %v154 = vsel %vm80, %v52, 0.0
  %v155 = vadd.f32 %v153, %v154
  %v156 = vsel %vm80, %v53, 0.0
  %v157 = vadd.f32 %v155, %v156
  %v158 = vsel %vm80, %v54, 0.0
  %v159 = vadd.f32 %v157, %v158
  %v160 = vsel %vm80, %v55, 0.0
  %v161 = vadd.f32 %v159, %v160
  %v162 = vsel %vm80, %v56, 0.0
  %v163 = vadd.f32 %v161, %v162
  %v164 = vsel %vm80, %v57, 0.0
  %v165 = vadd.f32 %v163, %v164
  %v166 = vsel %vm80, %v58, 0.0
  %v167 = vadd.f32 %v165, %v166
  %v168 = vsel %vm80, %v59, 0.0
  %v169 = vadd.f32 %v167, %v168
  %v170 = vsel %vm80, %v60, 0.0
  %v171 = vadd.f32 %v169, %v170
  %v172 = vsel %vm80, %v61, 0.0
  %v173 = vadd.f32 %v171, %v172
  %v174 = vsel %vm80, %v62, 0.0
  %v175 = vadd.f32 %v173, %v174
  %v176 = vsel %vm80, %v63, 0.0
  %v177 = vadd.f32 %v175, %v176
  %v178 = vsel %vm80, %v64, 0.0
  %v179 = vadd.f32 %v177, %v178
  %v180 = vsel %vm80, %v65, 0.0
  %v181 = vadd.f32 %v179, %v180
  %v182 = vsel %vm80, %v66, 0.0
  %v183 = vadd.f32 %v181, %v182
  %v184 = vsel %vm80, %v67, 0.0
  %v185 = vadd.f32 %v183, %v184
  %v186 = vsel %vm80, %v68, 0.0
  %v187 = vadd.f32 %v185, %v186
  %v188 = vsel %vm80, %v69, 0.0
  %v189 = vadd.f32 %v187, %v188
  %v190 = vsel %vm80, %v70, 0.0
  %v191 = vadd.f32 %v189, %v190
  %v192 = vsel %vm80, %v71, 0.0
  %v193 = vadd.f32 %v191, %v192
  %v194 = vsel %vm80, %v72, 0.0
  %v195 = vadd.f32 %v193, %v194
  %v196 = vsel %vm80, %v73, 0.0
  %v197 = vadd.f32 %v195, %v196
  %v198 = vsel %vm80, %v74, 0.0
  %v199 = vadd.f32 %v197, %v198
  %v200 = vsel %vm80, %v75, 0.0
  %v201 = vadd.f32 %v199, %v200
  %v202 = vsel %vm80, %v76, 0.0
  %v203 = vadd.f32 %v201, %v202
  %v204 = vsel %vm80, %v77, 0.0
  %v205 = vadd.f32 %v203, %v204
  %v206 = vsel %vm80, %v78, 0.0
  %v207 = vadd.f32 %v205, %v206
  %v208 = vrot.slane %v207, 4
  %v209 = vadd.f32 %v207, %v208
  %v210 = vrot.slane %v209, 2
  %v211 = vadd.f32 %v209, %v210
  %v212 = vrot.slane %v211, 1
  %v213 = vadd.f32 %v211, %v212
  %v214 = vadd.f32 %v79, %v213
  %vm215 = vcmask 122880
  %216 = vst.msk [vmem:[#allocation2] sm:$0x1] %vm215, %v214
  %v217 = vld [vmem:[#allocation3] sm:$0x1]
  %v218 = vmul.f32 %v15, %v15
  %v219 = vmul.f32 %v16, %v16
  %v220 = vmul.f32 %v17, %v17
  %v221 = vmul.f32 %v18, %v18
  %v222 = vmul.f32 %v19, %v19
  %v223 = vmul.f32 %v20, %v20
  %v224 = vmul.f32 %v21, %v21
  %v225 = vmul.f32 %v22, %v22
  %v226 = vmul.f32 %v23, %v23
  %v227 = vmul.f32 %v24, %v24
  %v228 = vmul.f32 %v25, %v25
  %v229 = vmul.f32 %v26, %v26
  %v230 = vmul.f32 %v27, %v27
  %v231 = vmul.f32 %v28, %v28
  %v232 = vmul.f32 %v29, %v29
  %v233 = vmul.f32 %v30, %v30
  %v234 = vmul.f32 %v31, %v31
  %v235 = vmul.f32 %v32, %v32
  %v236 = vmul.f32 %v33, %v33
  %v237 = vmul.f32 %v34, %v34
  %v238 = vmul.f32 %v35, %v35
  %v239 = vmul.f32 %v36, %v36
  %v240 = vmul.f32 %v37, %v37
  %v241 = vmul.f32 %v38, %v38
  %v242 = vmul.f32 %v39, %v39
  %v243 = vmul.f32 %v40, %v40
  %v244 = vmul.f32 %v41, %v41
  %v245 = vmul.f32 %v42, %v42
  %v246 = vmul.f32 %v43, %v43
  %v247 = vmul.f32 %v44, %v44
  %v248 = vmul.f32 %v45, %v45
  %v249 = vmul.f32 %v46, %v46
  %v250 = vmul.f32 %v47, %v47
  %v251 = vmul.f32 %v48, %v48
  %v252 = vmul.f32 %v49, %v49
  %v253 = vmul.f32 %v50, %v50
  %v254 = vmul.f32 %v51, %v51
  %v255 = vmul.f32 %v52, %v52
  %v256 = vmul.f32 %v53, %v53
  %v257 = vmul.f32 %v54, %v54
  %v258 = vmul.f32 %v55, %v55
  %v259 = vmul.f32 %v56, %v56
  %v260 = vmul.f32 %v57, %v57
  %v261 = vmul.f32 %v58, %v58
  %v262 = vmul.f32 %v59, %v59
  %v263 = vmul.f32 %v60, %v60
  %v264 = vmul.f32 %v61, %v61
  %v265 = vmul.f32 %v62, %v62
  %v266 = vmul.f32 %v63, %v63
  %v267 = vmul.f32 %v64, %v64
  %v268 = vmul.f32 %v65, %v65
  %v269 = vmul.f32 %v66, %v66
  %v270 = vmul.f32 %v67, %v67
  %v271 = vmul.f32 %v68, %v68
  %v272 = vmul.f32 %v69, %v69
  %v273 = vmul.f32 %v70, %v70
  %v274 = vmul.f32 %v71, %v71
  %v275 = vmul.f32 %v72, %v72
  %v276 = vmul.f32 %v73, %v73
  %v277 = vmul.f32 %v74, %v74
  %v278 = vmul.f32 %v75, %v75
  %v279 = vmul.f32 %v76, %v76
  %v280 = vmul.f32 %v77, %v77
  %v281 = vmul.f32 %v78, %v78
  %v282 = vsel %vm80, %v218, 0.0
  %v283 = vsel %vm80, %v219, 0.0
  %v284 = vadd.f32 %v282, %v283
  %v285 = vsel %vm80, %v220, 0.0
  %v286 = vadd.f32 %v284, %v285
  %v287 = vsel %vm80, %v221, 0.0
  %v288 = vadd.f32 %v286, %v287
  %v289 = vsel %vm80, %v222, 0.0
  %v290 = vadd.f32 %v288, %v289
  %v291 = vsel %vm80, %v223, 0.0
  %v292 = vadd.f32 %v290, %v291
  %v293 = vsel %vm80, %v224, 0.0
  %v294 = vadd.f32 %v292, %v293
  %v295 = vsel %vm80, %v225, 0.0
  %v296 = vadd.f32 %v294, %v295
  %v297 = vsel %vm80, %v226, 0.0
  %v298 = vadd.f32 %v296, %v297
  %v299 = vsel %vm80, %v227, 0.0
  %v300 = vadd.f32 %v298, %v299
  %v301 = vsel %vm80, %v228, 0.0
  %v302 = vadd.f32 %v300, %v301
  %v303 = vsel %vm80, %v229, 0.0
  %v304 = vadd.f32 %v302, %v303
  %v305 = vsel %vm80, %v230, 0.0
  %v306 = vadd.f32 %v304, %v305
  %v307 = vsel %vm80, %v231, 0.0
  %v308 = vadd.f32 %v306, %v307
  %v309 = vsel %vm80, %v232, 0.0
  %v310 = vadd.f32 %v308, %v309
  %v311 = vsel %vm80, %v233, 0.0
  %v312 = vadd.f32 %v310, %v311
  %v313 = vsel %vm80, %v234, 0.0
  %v314 = vadd.f32 %v312, %v313
  %v315 = vsel %vm80, %v235, 0.0
  %v316 = vadd.f32 %v314, %v315
  %v317 = vsel %vm80, %v236, 0.0
  %v318 = vadd.f32 %v316, %v317
  %v319 = vsel %vm80, %v237, 0.0
  %v320 = vadd.f32 %v318, %v319
  %v321 = vsel %vm80, %v238, 0.0
  %v322 = vadd.f32 %v320, %v321
  %v323 = vsel %vm80, %v239, 0.0
  %v324 = vadd.f32 %v322, %v323
  %v325 = vsel %vm80, %v240, 0.0
  %v326 = vadd.f32 %v324, %v325
  %v327 = vsel %vm80, %v241, 0.0
  %v328 = vadd.f32 %v326, %v327
  %v329 = vsel %vm80, %v242, 0.0
  %v330 = vadd.f32 %v328, %v329
  %v331 = vsel %vm80, %v243, 0.0
  %v332 = vadd.f32 %v330, %v331
  %v333 = vsel %vm80, %v244, 0.0
  %v334 = vadd.f32 %v332, %v333
  %v335 = vsel %vm80, %v245, 0.0
  %v336 = vadd.f32 %v334, %v335
  %v337 = vsel %vm80, %v246, 0.0
  %v338 = vadd.f32 %v336, %v337
  %v339 = vsel %vm80, %v247, 0.0
  %v340 = vadd.f32 %v338, %v339
  %v341 = vsel %vm80, %v248, 0.0
  %v342 = vadd.f32 %v340, %v341
  %v343 = vsel %vm80, %v249, 0.0
  %v344 = vadd.f32 %v342, %v343
  %v345 = vsel %vm80, %v250, 0.0
  %v346 = vadd.f32 %v344, %v345
  %v347 = vsel %vm80, %v251, 0.0
  %v348 = vadd.f32 %v346, %v347
  %v349 = vsel %vm80, %v252, 0.0
  %v350 = vadd.f32 %v348, %v349
  %v351 = vsel %vm80, %v253, 0.0
  %v352 = vadd.f32 %v350, %v351
  %v353 = vsel %vm80, %v254, 0.0
  %v354 = vadd.f32 %v352, %v353
  %v355 = vsel %vm80, %v255, 0.0
  %v356 = vadd.f32 %v354, %v355
  %v357 = vsel %vm80, %v256, 0.0
  %v358 = vadd.f32 %v356, %v357
  %v359 = vsel %vm80, %v257, 0.0
  %v360 = vadd.f32 %v358, %v359
  %v361 = vsel %vm80, %v258, 0.0
  %v362 = vadd.f32 %v360, %v361
  %v363 = vsel %vm80, %v259, 0.0
  %v364 = vadd.f32 %v362, %v363
  %v365 = vsel %vm80, %v260, 0.0
  %v366 = vadd.f32 %v364, %v365
  %v367 = vsel %vm80, %v261, 0.0
  %v368 = vadd.f32 %v366, %v367
  %v369 = vsel %vm80, %v262, 0.0
  %v370 = vadd.f32 %v368, %v369
  %v371 = vsel %vm80, %v263, 0.0
  %v372 = vadd.f32 %v370, %v371
  %v373 = vsel %vm80, %v264, 0.0
  %v374 = vadd.f32 %v372, %v373
  %v375 = vsel %vm80, %v265, 0.0
  %v376 = vadd.f32 %v374, %v375
  %v377 = vsel %vm80, %v266, 0.0
  %v378 = vadd.f32 %v376, %v377
  %v379 = vsel %vm80, %v267, 0.0
  %v380 = vadd.f32 %v378, %v379
  %v381 = vsel %vm80, %v268, 0.0
  %v382 = vadd.f32 %v380, %v381
  %v383 = vsel %vm80, %v269, 0.0
  %v384 = vadd.f32 %v382, %v383
  %v385 = vsel %vm80, %v270, 0.0
  %v386 = vadd.f32 %v384, %v385
  %v387 = vsel %vm80, %v271, 0.0
  %v388 = vadd.f32 %v386, %v387
  %v389 = vsel %vm80, %v272, 0.0
  %v390 = vadd.f32 %v388, %v389
  %v391 = vsel %vm80, %v273, 0.0
  %v392 = vadd.f32 %v390, %v391
  %v393 = vsel %vm80, %v274, 0.0
  %v394 = vadd.f32 %v392, %v393
  %v395 = vsel %vm80, %v275, 0.0
  %v396 = vadd.f32 %v394, %v395
  %v397 = vsel %vm80, %v276, 0.0
  %v398 = vadd.f32 %v396, %v397
  %v399 = vsel %vm80, %v277, 0.0
  %v400 = vadd.f32 %v398, %v399
  %v401 = vsel %vm80, %v278, 0.0
  %v402 = vadd.f32 %v400, %v401
  %v403 = vsel %vm80, %v279, 0.0
  %v404 = vadd.f32 %v402, %v403
  %v405 = vsel %vm80, %v280, 0.0
  %v406 = vadd.f32 %v404, %v405
  %v407 = vsel %vm80, %v281, 0.0
  %v408 = vadd.f32 %v406, %v407
  %v409 = vrot.slane %v408, 4
  %v410 = vadd.f32 %v408, %v409
  %v411 = vrot.slane %v410, 2
  %v412 = vadd.f32 %v410, %v411
  %v413 = vrot.slane %v412, 1
  %v414 = vadd.f32 %v412, %v413
  %v415 = vadd.f32 %v217, %v414
  %416 = vst.msk [vmem:[#allocation3] sm:$0x1] %vm215, %v415
  // Predicated region
  $region10: #{netg_forward.18} parent=0 // pred_check
    %p417 = pneg %p8
  $region11: #{netg_forward.18} parent=0 // pred_check_branch
    %419 = sbr.rel (%p417) target = $region13
  $region12: #{netg_forward.18} parent=0 // pred_region
    %v420 = vld [vmem:[#allocation2] sm:$0x1]
    %v421 = vmul.f32 %v420, 0.001953125
    %v422 = vld [vmem:[#allocation3] sm:$0x1]
    %v423 = vmul.f32 %v422, 0.001953125
    %v424 = vmul.f32 %v421, %v421
    %v425 = vsub.f32 %v423, %v424
    %v426 = vmax.f32 %v425, 0.0
    %427 = vst.msk [vmem:[%s1] sm:$0x1] %vm215, %v421
    %v428 = vadd.f32 %v426, 1e-05
    %v429 = vrsqrt.pop %v428
    %430 = vst.msk [vmem:[%s1 + $0x1] sm:$0x1] %vm215, %v429
  $region13: #{netg_forward.18} parent=0 // pred_fallthru
    _
  // Predicated region
  $region14: #{netg_forward.18} parent=0 // pred_check
    _
  $region15: #{netg_forward.18} parent=0 // pred_check_branch
    %432 = sbr.rel (0) target = $region17
  $region16: #{netg_forward.18} parent=0 // pred_region
    _
  $region17: #{netg_forward.18} parent=0 // pred_fallthru
    _
  // Predicated region
  $region18: #{netg_forward.18} parent=0 // pred_check
    _
  $region19: #{netg_forward.18} parent=0 // pred_check_branch
    %434 = sbr.rel (0) target = $region21
  $region20: #{netg_forward.18} parent=0 // pred_region
    _
  $region21: #{netg_forward.18} parent=0 // pred_fallthru
    _

// kernel: netg_forward.19
$region0: #{netg_forward.19}
  #allocation0 [shape = 'u32[]', space=smem, size = 0x4, offset = 0x4, fixed_abs, tag = 'smem constant byte address 0x4 - core index']
  #allocation1 [shape = 'u32[144,128]{1,0:T(1,128)}', space=vmem, size = 0x12000, scoped, tag = 'internal scratch']
  %s0 = inlined_call_operand.vmem [shape: f32[512,16], index: 0, kind: input, shape index: {}]
  %s1 = inlined_call_operand.vmem [shape: f32[2,16], index: 1, kind: input, shape index: {}]
  %s2 = inlined_call_operand.vmem [shape: f32[1,16], index: 2, kind: input, shape index: {}]
  %s3 = inlined_call_operand.vmem [shape: f32[1,16], index: 3, kind: input, shape index: {}]
  %s4 = inlined_call_operand.vmem [shape: bf16[512,16], index: 4, kind: output, shape index: {}]
  %s5 = sld [smem:[#allocation0]]
  $region26: #{netg_forward.19} parent=0
    _
  %s7 = ssub.s32 1, %s5
  %s8 = scalar_select 0, %s7, %s5
  // Predicated region
  $region2: #{netg_forward.19} parent=0 // pred_check
    _
  $region3: #{netg_forward.19} parent=0 // pred_check_branch
    %10 = sbr.rel (0) target = $region5
  $region4: #{netg_forward.19} parent=0 // pred_region
    _
  $region5: #{netg_forward.19} parent=0 // pred_fallthru
    _
  // Predicated region
  $region6: #{netg_forward.19} parent=0 // pred_check
    _
  $region7: #{netg_forward.19} parent=0 // pred_check_branch
    %12 = sbr.rel (0) target = $region9
  $region8: #{netg_forward.19} parent=0 // pred_region
    _
  $region9: #{netg_forward.19} parent=0 // pred_fallthru
    _
  // Predicated region
  $region10: #{netg_forward.19} parent=0 // pred_check
    _
  $region11: #{netg_forward.19} parent=0 // pred_check_branch
    %14 = sbr.rel (0) target = $region13
  $region12: #{netg_forward.19} parent=0 // pred_region
    _
  $region13: #{netg_forward.19} parent=0 // pred_fallthru
    _
  // Predicated region
  $region14: #{netg_forward.19} parent=0 // pred_check
    _
  $region15: #{netg_forward.19} parent=0 // pred_check_branch
    %16 = sbr.rel (0) target = $region17
  $region16: #{netg_forward.19} parent=0 // pred_region
    _
  $region17: #{netg_forward.19} parent=0 // pred_fallthru
    _
  %v17 = vld [vmem:[%s1] sm:$0x1]
  %v18 = vld [vmem:[%s1 + $0x1] sm:$0x1]
  %v19 = vld [vmem:[%s0] sm:$0xff]
  %v20 = vld [vmem:[%s0 + $0x8] sm:$0xff]
  %v21 = vld [vmem:[%s0 + $0x10] sm:$0xff]
  %v22 = vld [vmem:[%s0 + $0x18] sm:$0xff]
  %v23 = vld [vmem:[%s0 + $0x20] sm:$0xff]
  %v24 = vld [vmem:[%s0 + $0x28] sm:$0xff]
  %v25 = vld [vmem:[%s0 + $0x30] sm:$0xff]
  %v26 = vld [vmem:[%s0 + $0x38] sm:$0xff]
  %v27 = vld [vmem:[%s0 + $0x40] sm:$0xff]
  %v28 = vld [vmem:[%s0 + $0x48] sm:$0xff]
  %v29 = vld [vmem:[%s0 + $0x50] sm:$0xff]
  %v30 = vld [vmem:[%s0 + $0x58] sm:$0xff]
  %v31 = vld [vmem:[%s0 + $0x60] sm:$0xff]
  %v32 = vld [vmem:[%s0 + $0x68] sm:$0xff]
  %v33 = vld [vmem:[%s0 + $0x70] sm:$0xff]
  %v34 = vld [vmem:[%s0 + $0x78] sm:$0xff]
  %v35 = vld [vmem:[%s0 + $0x80] sm:$0xff]
  %v36 = vld [vmem:[%s0 + $0x88] sm:$0xff]
  %v37 = vld [vmem:[%s0 + $0x90] sm:$0xff]
  %v38 = vld [vmem:[%s0 + $0x98] sm:$0xff]
  %v39 = vld [vmem:[%s0 + $0xa0] sm:$0xff]
  %v40 = vld [vmem:[%s0 + $0xa8] sm:$0xff]
  %v41 = vld [vmem:[%s0 + $0xb0] sm:$0xff]
  %v42 = vld [vmem:[%s0 + $0xb8] sm:$0xff]
  %v43 = vld [vmem:[%s0 + $0xc0] sm:$0xff]
  %v44 = vld [vmem:[%s0 + $0xc8] sm:$0xff]
  %v45 = vld [vmem:[%s0 + $0xd0] sm:$0xff]
  %v46 = vld [vmem:[%s0 + $0xd8] sm:$0xff]
  %v47 = vld [vmem:[%s0 + $0xe0] sm:$0xff]
  %v48 = vld [vmem:[%s0 + $0xe8] sm:$0xff]
  %v49 = vld [vmem:[%s0 + $0xf0] sm:$0xff]
  %v50 = vld [vmem:[%s0 + $0xf8] sm:$0xff]
  %v51 = vld [vmem:[%s0 + $0x100] sm:$0xff]
  %v52 = vld [vmem:[%s0 + $0x108] sm:$0xff]
  %v53 = vld [vmem:[%s0 + $0x110] sm:$0xff]
  %v54 = vld [vmem:[%s0 + $0x118] sm:$0xff]
  %v55 = vld [vmem:[%s0 + $0x120] sm:$0xff]
  %v56 = vld [vmem:[%s0 + $0x128] sm:$0xff]
  %v57 = vld [vmem:[%s0 + $0x130] sm:$0xff]
  %v58 = vld [vmem:[%s0 + $0x138] sm:$0xff]
  %v59 = vld [vmem:[%s0 + $0x140] sm:$0xff]
  %v60 = vld [vmem:[%s0 + $0x148] sm:$0xff]
  %v61 = vld [vmem:[%s0 + $0x150] sm:$0xff]
  %v62 = vld [vmem:[%s0 + $0x158] sm:$0xff]
  %v63 = vld [vmem:[%s0 + $0x160] sm:$0xff]
  %v64 = vld [vmem:[%s0 + $0x168] sm:$0xff]
  %v65 = vld [vmem:[%s0 + $0x170] sm:$0xff]
  %v66 = vld [vmem:[%s0 + $0x178] sm:$0xff]
  %v67 = vld [vmem:[%s0 + $0x180] sm:$0xff]
  %v68 = vld [vmem:[%s0 + $0x188] sm:$0xff]
  %v69 = vld [vmem:[%s0 + $0x190] sm:$0xff]
  %v70 = vld [vmem:[%s0 + $0x198] sm:$0xff]
  %v71 = vld [vmem:[%s0 + $0x1a0] sm:$0xff]
  %v72 = vld [vmem:[%s0 + $0x1a8] sm:$0xff]
  %v73 = vld [vmem:[%s0 + $0x1b0] sm:$0xff]
  %v74 = vld [vmem:[%s0 + $0x1b8] sm:$0xff]
  %v75 = vld [vmem:[%s0 + $0x1c0] sm:$0xff]
  %v76 = vld [vmem:[%s0 + $0x1c8] sm:$0xff]
  %v77 = vld [vmem:[%s0 + $0x1d0] sm:$0xff]
  %v78 = vld [vmem:[%s0 + $0x1d8] sm:$0xff]
  %v79 = vld [vmem:[%s0 + $0x1e0] sm:$0xff]
  %v80 = vld [vmem:[%s0 + $0x1e8] sm:$0xff]
  %v81 = vld [vmem:[%s0 + $0x1f0] sm:$0xff]
  %v82 = vld [vmem:[%s0 + $0x1f8] sm:$0xff]
  %v83 = vlaneseq
  %v84 = vshrl.u32 %v83, 7
  %v85 = vsub.s32 0, %v84
  %v86 = vrot.slane %v17, %v85
  %v87 = vsub.f32 %v19, %v86
  %v88 = vsub.f32 %v20, %v86
  %v89 = vsub.f32 %v21, %v86
  %v90 = vsub.f32 %v22, %v86
  %v91 = vsub.f32 %v23, %v86
  %v92 = vsub.f32 %v24, %v86
  %v93 = vsub.f32 %v25, %v86
  %v94 = vsub.f32 %v26, %v86
  %v95 = vsub.f32 %v27, %v86
  %v96 = vsub.f32 %v28, %v86
  %v97 = vsub.f32 %v29, %v86
  %v98 = vsub.f32 %v30, %v86
  %v99 = vsub.f32 %v31, %v86
  %v100 = vsub.f32 %v32, %v86
  %v101 = vsub.f32 %v33, %v86
  %v102 = vsub.f32 %v34, %v86
  %v103 = vsub.f32 %v35, %v86
  %v104 = vsub.f32 %v36, %v86
  %v105 = vsub.f32 %v37, %v86
  %v106 = vsub.f32 %v38, %v86
  %v107 = vsub.f32 %v39, %v86
  %v108 = vsub.f32 %v40, %v86
  %v109 = vsub.f32 %v41, %v86
  %v110 = vsub.f32 %v42, %v86
  %v111 = vsub.f32 %v43, %v86
  %v112 = vsub.f32 %v44, %v86
  %v113 = vsub.f32 %v45, %v86
  %v114 = vsub.f32 %v46, %v86
  %v115 = vsub.f32 %v47, %v86
  %v116 = vsub.f32 %v48, %v86
  %v117 = vsub.f32 %v49, %v86
  %v118 = vsub.f32 %v50, %v86
  %v119 = vsub.f32 %v51, %v86
  %v120 = vsub.f32 %v52, %v86
  %v121 = vsub.f32 %v53, %v86
  %v122 = vsub.f32 %v54, %v86
  %v123 = vsub.f32 %v55, %v86
  %v124 = vsub.f32 %v56, %v86
  %v125 = vsub.f32 %v57, %v86
  %v126 = vsub.f32 %v58, %v86
  %v127 = vsub.f32 %v59, %v86
  %v128 = vsub.f32 %v60, %v86
  %v129 = vsub.f32 %v61, %v86
  %v130 = vsub.f32 %v62, %v86
  %v131 = vsub.f32 %v63, %v86
  %v132 = vsub.f32 %v64, %v86
  %v133 = vsub.f32 %v65, %v86
  %v134 = vsub.f32 %v66, %v86
  %v135 = vsub.f32 %v67, %v86
  %v136 = vsub.f32 %v68, %v86
  %v137 = vsub.f32 %v69, %v86
  %v138 = vsub.f32 %v70, %v86
  %v139 = vsub.f32 %v71, %v86
  %v140 = vsub.f32 %v72, %v86
  %v141 = vsub.f32 %v73, %v86
  %v142 = vsub.f32 %v74, %v86
  %v143 = vsub.f32 %v75, %v86
  %v144 = vsub.f32 %v76, %v86
  %v145 = vsub.f32 %v77, %v86
  %v146 = vsub.f32 %v78, %v86
  %v147 = vsub.f32 %v79, %v86
  %v148 = vsub.f32 %v80, %v86
  %v149 = vsub.f32 %v81, %v86
  %v150 = vsub.f32 %v82, %v86
  %v151 = vld [vmem:[%s2] sm:$0x1]
  %v152 = vmul.f32 %v18, %v151
  %v153 = vlaneseq
  %v154 = vshrl.u32 %v153, 7
  %v155 = vsub.s32 0, %v154
  %v156 = vrot.slane %v152, %v155
  %v157 = vmul.f32 %v87, %v156
  %v158 = vmul.f32 %v88, %v156
  %v159 = vmul.f32 %v89, %v156
  %v160 = vmul.f32 %v90, %v156
  %v161 = vmul.f32 %v91, %v156
  %v162 = vmul.f32 %v92, %v156
  %v163 = vmul.f32 %v93, %v156
  %v164 = vmul.f32 %v94, %v156
  %v165 = vmul.f32 %v95, %v156
  %v166 = vmul.f32 %v96, %v156
  %v167 = vmul.f32 %v97, %v156
  %v168 = vmul.f32 %v98, %v156
  %v169 = vmul.f32 %v99, %v156
  %v170 = vmul.f32 %v100, %v156
  %v171 = vmul.f32 %v101, %v156
  %v172 = vmul.f32 %v102, %v156
  %v173 = vmul.f32 %v103, %v156
  %v174 = vmul.f32 %v104, %v156
  %v175 = vmul.f32 %v105, %v156
  %v176 = vmul.f32 %v106, %v156
  %v177 = vmul.f32 %v107, %v156
  %v178 = vmul.f32 %v108, %v156
  %v179 = vmul.f32 %v109, %v156
  %v180 = vmul.f32 %v110, %v156
  %v181 = vmul.f32 %v111, %v156
  %v182 = vmul.f32 %v112, %v156
  %v183 = vmul.f32 %v113, %v156
  %v184 = vmul.f32 %v114, %v156
  %v185 = vmul.f32 %v115, %v156
  %v186 = vmul.f32 %v116, %v156
  %v187 = vmul.f32 %v117, %v156
  %v188 = vmul.f32 %v118, %v156
  %v189 = vmul.f32 %v119, %v156
  %v190 = vmul.f32 %v120, %v156
  %v191 = vmul.f32 %v121, %v156
  %v192 = vmul.f32 %v122, %v156
  %v193 = vmul.f32 %v123, %v156
  %v194 = vmul.f32 %v124, %v156
  %v195 = vmul.f32 %v125, %v156
  %v196 = vmul.f32 %v126, %v156
  %v197 = vmul.f32 %v127, %v156
  %v198 = vmul.f32 %v128, %v156
  %v199 = vmul.f32 %v129, %v156
  %v200 = vmul.f32 %v130, %v156
  %v201 = vmul.f32 %v131, %v156
  %v202 = vmul.f32 %v132, %v156
  %v203 = vmul.f32 %v133, %v156
  %v204 = vmul.f32 %v134, %v156
  %v205 = vmul.f32 %v135, %v156
  %v206 = vmul.f32 %v136, %v156
  %v207 = vmul.f32 %v137, %v156
  %v208 = vmul.f32 %v138, %v156
  %v209 = vmul.f32 %v139, %v156
  %v210 = vmul.f32 %v140, %v156
  %v211 = vmul.f32 %v141, %v156
  %v212 = vmul.f32 %v142, %v156
  %v213 = vmul.f32 %v143, %v156
  %v214 = vmul.f32 %v144, %v156
  %v215 = vmul.f32 %v145, %v156
  %v216 = vmul.f32 %v146, %v156
  %v217 = vmul.f32 %v147, %v156
  %v218 = vmul.f32 %v148, %v156
  %v219 = vmul.f32 %v149, %v156
  %v220 = vmul.f32 %v150, %v156
  %v221 = vld [vmem:[%s3] sm:$0x1]
  %v223 = vlaneseq
  %v224 = vshrl.u32 %v223, 7
  %v225 = vsub.s32 0, %v224
  %v226 = vrot.slane %v221, %v225
  %v228 = vadd.f32 %v157, %v226
  %v229 = vadd.f32 %v158, %v226
  %v230 = vadd.f32 %v159, %v226
  %v231 = vadd.f32 %v160, %v226
  %v232 = vadd.f32 %v161, %v226
  %v233 = vadd.f32 %v162, %v226
  %v234 = vadd.f32 %v163, %v226
  %v235 = vadd.f32 %v164, %v226
  %v236 = vadd.f32 %v165, %v226
  %v237 = vadd.f32 %v166, %v226
  %v238 = vadd.f32 %v167, %v226
  %v239 = vadd.f32 %v168, %v226
  %v240 = vadd.f32 %v169, %v226
  %v241 = vadd.f32 %v170, %v226
  %v242 = vadd.f32 %v171, %v226
  %v243 = vadd.f32 %v172, %v226
  %v244 = vadd.f32 %v173, %v226
  %v245 = vadd.f32 %v174, %v226
  %v246 = vadd.f32 %v175, %v226
  %v247 = vadd.f32 %v176, %v226
  %v248 = vadd.f32 %v177, %v226
  %v249 = vadd.f32 %v178, %v226
  %v250 = vadd.f32 %v179, %v226
  %v251 = vadd.f32 %v180, %v226
  %v252 = vadd.f32 %v181, %v226
  %v253 = vadd.f32 %v182, %v226
  %v254 = vadd.f32 %v183, %v226
  %v255 = vadd.f32 %v184, %v226
  %v256 = vadd.f32 %v185, %v226
  %v257 = vadd.f32 %v186, %v226
  %v258 = vadd.f32 %v187, %v226
  %v259 = vadd.f32 %v188, %v226
  %v260 = vadd.f32 %v189, %v226
  %v261 = vadd.f32 %v190, %v226
  %v262 = vadd.f32 %v191, %v226
  %v263 = vadd.f32 %v192, %v226
  %v264 = vadd.f32 %v193, %v226
  %v265 = vadd.f32 %v194, %v226
  %v266 = vadd.f32 %v195, %v226
  %v267 = vadd.f32 %v196, %v226
  %v268 = vadd.f32 %v197, %v226
  %v269 = vadd.f32 %v198, %v226
  %v270 = vadd.f32 %v199, %v226
  %v271 = vadd.f32 %v200, %v226
  %v272 = vadd.f32 %v201, %v226
  %v273 = vadd.f32 %v202, %v226
  %v274 = vadd.f32 %v203, %v226
  %v275 = vadd.f32 %v204, %v226
  %v276 = vadd.f32 %v205, %v226
  %v277 = vadd.f32 %v206, %v226
  %v278 = vadd.f32 %v207, %v226
  %v279 = vadd.f32 %v208, %v226
  %v280 = vadd.f32 %v209, %v226
  %v281 = vadd.f32 %v210, %v226
  %v282 = vadd.f32 %v211, %v226
  %v283 = vadd.f32 %v212, %v226
  %v284 = vadd.f32 %v213, %v226
  %v285 = vadd.f32 %v214, %v226
  %v286 = vadd.f32 %v215, %v226
  %v287 = vadd.f32 %v216, %v226
  %v288 = vadd.f32 %v217, %v226
  %v289 = vadd.f32 %v218, %v226
  %v290 = vadd.f32 %v219, %v226
  %v291 = vadd.f32 %v220, %v226
  %v292 = vmax.f32 %v228, 0.0
  %v293 = vmax.f32 %v229, 0.0
  %v294 = vmax.f32 %v230, 0.0
  %v295 = vmax.f32 %v231, 0.0
  %v296 = vmax.f32 %v232, 0.0
  %v297 = vmax.f32 %v233, 0.0
  %v298 = vmax.f32 %v234, 0.0
  %v299 = vmax.f32 %v235, 0.0
  %v300 = vmax.f32 %v236, 0.0
  %v301 = vmax.f32 %v237, 0.0
  %v302 = vmax.f32 %v238, 0.0
  %v303 = vmax.f32 %v239, 0.0
  %v304 = vmax.f32 %v240, 0.0
  %v305 = vmax.f32 %v241, 0.0
  %v306 = vmax.f32 %v242, 0.0
  %v307 = vmax.f32 %v243, 0.0
  %v308 = vmax.f32 %v244, 0.0
  %v309 = vmax.f32 %v245, 0.0
  %v310 = vmax.f32 %v246, 0.0
  %v311 = vmax.f32 %v247, 0.0
  %v312 = vmax.f32 %v248, 0.0
  %v313 = vmax.f32 %v249, 0.0
  %v314 = vmax.f32 %v250, 0.0
  %v315 = vmax.f32 %v251, 0.0
  %v316 = vmax.f32 %v252, 0.0
  %v317 = vmax.f32 %v253, 0.0
  %v318 = vmax.f32 %v254, 0.0
  %v319 = vmax.f32 %v255, 0.0
  %v320 = vmax.f32 %v256, 0.0
  %v321 = vmax.f32 %v257, 0.0
  %v322 = vmax.f32 %v258, 0.0
  %v323 = vmax.f32 %v259, 0.0
  %v324 = vmax.f32 %v260, 0.0
  %v325 = vmax.f32 %v261, 0.0
  %v326 = vmax.f32 %v262, 0.0
  %v327 = vmax.f32 %v263, 0.0
  %v328 = vmax.f32 %v264, 0.0
  %v329 = vmax.f32 %v265, 0.0
  %v330 = vmax.f32 %v266, 0.0
  %v331 = vmax.f32 %v267, 0.0
  %v332 = vmax.f32 %v268, 0.0
  %v333 = vmax.f32 %v269, 0.0
  %v334 = vmax.f32 %v270, 0.0
  %v335 = vmax.f32 %v271, 0.0
  %v336 = vmax.f32 %v272, 0.0
  %v337 = vmax.f32 %v273, 0.0
  %v338 = vmax.f32 %v274, 0.0
  %v339 = vmax.f32 %v275, 0.0
  %v340 = vmax.f32 %v276, 0.0
  %v341 = vmax.f32 %v277, 0.0
  %v342 = vmax.f32 %v278, 0.0
  %v343 = vmax.f32 %v279, 0.0
  %v344 = vmax.f32 %v280, 0.0
  %v345 = vmax.f32 %v281, 0.0
  %v346 = vmax.f32 %v282, 0.0
  %v347 = vmax.f32 %v283, 0.0
  %v348 = vmax.f32 %v284, 0.0
  %v349 = vmax.f32 %v285, 0.0
  %v350 = vmax.f32 %v286, 0.0
  %v351 = vmax.f32 %v287, 0.0
  %v352 = vmax.f32 %v288, 0.0
  %v353 = vmax.f32 %v289, 0.0
  %v354 = vmax.f32 %v290, 0.0
  %v355 = vmax.f32 %v291, 0.0
  %v356 = vpack.c.bf16 %v293, %v292
  %v357 = vpack.c.bf16 %v295, %v294
  %v358 = vpack.c.bf16 %v297, %v296
  %v359 = vpack.c.bf16 %v299, %v298
  %v360 = vpack.c.bf16 %v301, %v300
  %v361 = vpack.c.bf16 %v303, %v302
  %v362 = vpack.c.bf16 %v305, %v304
  %v363 = vpack.c.bf16 %v307, %v306
  %v364 = vpack.c.bf16 %v309, %v308
  %v365 = vpack.c.bf16 %v311, %v310
  %v366 = vpack.c.bf16 %v313, %v312
  %v367 = vpack.c.bf16 %v315, %v314
  %v368 = vpack.c.bf16 %v317, %v316
  %v369 = vpack.c.bf16 %v319, %v318
  %v370 = vpack.c.bf16 %v321, %v320
  %v371 = vpack.c.bf16 %v323, %v322
  %v372 = vpack.c.bf16 %v325, %v324
  %v373 = vpack.c.bf16 %v327, %v326
  %v374 = vpack.c.bf16 %v329, %v328
  %v375 = vpack.c.bf16 %v331, %v330
  %v376 = vpack.c.bf16 %v333, %v332
  %v377 = vpack.c.bf16 %v335, %v334
  %v378 = vpack.c.bf16 %v337, %v336
  %v379 = vpack.c.bf16 %v339, %v338
  %v380 = vpack.c.bf16 %v341, %v340
  %v381 = vpack.c.bf16 %v343, %v342
  %v382 = vpack.c.bf16 %v345, %v344
  %v383 = vpack.c.bf16 %v347, %v346
  %v384 = vpack.c.bf16 %v349, %v348
  %v385 = vpack.c.bf16 %v351, %v350
  %v386 = vpack.c.bf16 %v353, %v352
  %v387 = vpack.c.bf16 %v355, %v354
  %v420 = vunpack.c.l.b16 %v356
  %v421 = vunpack.c.h.b16 %v356
  %v422 = vunpack.c.l.b16 %v357
  %v423 = vunpack.c.h.b16 %v357
  %v424 = vunpack.c.l.b16 %v358
  %v425 = vunpack.c.h.b16 %v358
  %v426 = vunpack.c.l.b16 %v359
  %v427 = vunpack.c.h.b16 %v359
  %v428 = vunpack.c.l.b16 %v360
  %v429 = vunpack.c.h.b16 %v360
  %v430 = vunpack.c.l.b16 %v361
  %v431 = vunpack.c.h.b16 %v361
  %v432 = vunpack.c.l.b16 %v362
  %v433 = vunpack.c.h.b16 %v362
  %v434 = vunpack.c.l.b16 %v363
  %v435 = vunpack.c.h.b16 %v363
  %v436 = vunpack.c.l.b16 %v364
  %v437 = vunpack.c.h.b16 %v364
  %v438 = vunpack.c.l.b16 %v365
  %v439 = vunpack.c.h.b16 %v365
  %v440 = vunpack.c.l.b16 %v366
  %v441 = vunpack.c.h.b16 %v366
  %v442 = vunpack.c.l.b16 %v367
  %v443 = vunpack.c.h.b16 %v367
  %v444 = vunpack.c.l.b16 %v368
  %v445 = vunpack.c.h.b16 %v368
  %v446 = vunpack.c.l.b16 %v369
  %v447 = vunpack.c.h.b16 %v369
  %v448 = vunpack.c.l.b16 %v370
  %v449 = vunpack.c.h.b16 %v370
  %v450 = vunpack.c.l.b16 %v371
  %v451 = vunpack.c.h.b16 %v371
  %v452 = vunpack.c.l.b16 %v372
  %v453 = vunpack.c.h.b16 %v372
  %v454 = vunpack.c.l.b16 %v373
  %v455 = vunpack.c.h.b16 %v373
  %v456 = vunpack.c.l.b16 %v374
  %v457 = vunpack.c.h.b16 %v374
  %v458 = vunpack.c.l.b16 %v375
  %v459 = vunpack.c.h.b16 %v375
  %v460 = vunpack.c.l.b16 %v376
  %v461 = vunpack.c.h.b16 %v376
  %v462 = vunpack.c.l.b16 %v377
  %v463 = vunpack.c.h.b16 %v377
  %v464 = vunpack.c.l.b16 %v378
  %v465 = vunpack.c.h.b16 %v378
  %v466 = vunpack.c.l.b16 %v379
  %v467 = vunpack.c.h.b16 %v379
  %v468 = vunpack.c.l.b16 %v380
  %v469 = vunpack.c.h.b16 %v380
  %v470 = vunpack.c.l.b16 %v381
  %v471 = vunpack.c.h.b16 %v381
  %v472 = vunpack.c.l.b16 %v382
  %v473 = vunpack.c.h.b16 %v382
  %v474 = vunpack.c.l.b16 %v383
  %v475 = vunpack.c.h.b16 %v383
  %v476 = vunpack.c.l.b16 %v384
  %v477 = vunpack.c.h.b16 %v384
  %v478 = vunpack.c.l.b16 %v385
  %v479 = vunpack.c.h.b16 %v385
  %v480 = vunpack.c.l.b16 %v386
  %v481 = vunpack.c.h.b16 %v386
  %v482 = vunpack.c.l.b16 %v387
  %v483 = vunpack.c.h.b16 %v387
  %v484 = vpack.c.b16 %v420, %v420
  %v485 = vpack.c.b16 %v421, %v421
  %v486 = vpack.c.b16 %v422, %v422
  %v487 = vpack.c.b16 %v423, %v423
  %v488 = vpack.c.b16 %v424, %v424
  %v489 = vpack.c.b16 %v425, %v425
  %v490 = vpack.c.b16 %v426, %v426
  %v491 = vpack.c.b16 %v427, %v427
  %v492 = vpack.c.b16 %v428, %v428
  %v493 = vpack.c.b16 %v429, %v429
  %v494 = vpack.c.b16 %v430, %v430
  %v495 = vpack.c.b16 %v431, %v431
  %v496 = vpack.c.b16 %v432, %v432
  %v497 = vpack.c.b16 %v433, %v433
  %v498 = vpack.c.b16 %v434, %v434
  %v499 = vpack.c.b16 %v435, %v435
  %v500 = vpack.c.b16 %v436, %v436
  %v501 = vpack.c.b16 %v437, %v437
  %v502 = vpack.c.b16 %v438, %v438
  %v503 = vpack.c.b16 %v439, %v439
  %v504 = vpack.c.b16 %v440, %v440
  %v505 = vpack.c.b16 %v441, %v441
  %v506 = vpack.c.b16 %v442, %v442
  %v507 = vpack.c.b16 %v443, %v443
  %v508 = vpack.c.b16 %v444, %v444
  %v509 = vpack.c.b16 %v445, %v445
  %v510 = vpack.c.b16 %v446, %v446
  %v511 = vpack.c.b16 %v447, %v447
  %v512 = vpack.c.b16 %v448, %v448
  %v513 = vpack.c.b16 %v449, %v449
  %v514 = vpack.c.b16 %v450, %v450
  %v515 = vpack.c.b16 %v451, %v451
  %v516 = vpack.c.b16 %v452, %v452
  %v517 = vpack.c.b16 %v453, %v453
  %v518 = vpack.c.b16 %v454, %v454
  %v519 = vpack.c.b16 %v455, %v455
  %v520 = vpack.c.b16 %v456, %v456
  %v521 = vpack.c.b16 %v457, %v457
  %v522 = vpack.c.b16 %v458, %v458
  %v523 = vpack.c.b16 %v459, %v459
  %v524 = vpack.c.b16 %v460, %v460
  %v525 = vpack.c.b16 %v461, %v461
  %v526 = vpack.c.b16 %v462, %v462
  %v527 = vpack.c.b16 %v463, %v463
  %v528 = vpack.c.b16 %v464, %v464
  %v529 = vpack.c.b16 %v465, %v465
  %v530 = vpack.c.b16 %v466, %v466
  %v531 = vpack.c.b16 %v467, %v467
  %v532 = vpack.c.b16 %v468, %v468
  %v533 = vpack.c.b16 %v469, %v469
  %v534 = vpack.c.b16 %v470, %v470
  %v535 = vpack.c.b16 %v471, %v471
  %v536 = vpack.c.b16 %v472, %v472
  %v537 = vpack.c.b16 %v473, %v473
  %v538 = vpack.c.b16 %v474, %v474
  %v539 = vpack.c.b16 %v475, %v475
  %v540 = vpack.c.b16 %v476, %v476
  %v541 = vpack.c.b16 %v477, %v477
  %v542 = vpack.c.b16 %v478, %v478
  %v543 = vpack.c.b16 %v479, %v479
  %v544 = vpack.c.b16 %v480, %v480
  %v545 = vpack.c.b16 %v481, %v481
  %v546 = vpack.c.b16 %v482, %v482
  %v547 = vpack.c.b16 %v483, %v483
  %vm612 = vcmask 125952
  %613 = vst.msk [vmem:[%s4] sm:$0xf] %vm612, %v484
  %614 = vst.msk [vmem:[%s4 + $0x4] sm:$0xf] %vm612, %v485
  %615 = vst.msk [vmem:[%s4 + $0x8] sm:$0xf] %vm612, %v486
  %616 = vst.msk [vmem:[%s4 + $0xc] sm:$0xf] %vm612, %v487
  %617 = vst.msk [vmem:[%s4 + $0x10] sm:$0xf] %vm612, %v488
  %618 = vst.msk [vmem:[%s4 + $0x14] sm:$0xf] %vm612, %v489
  %619 = vst.msk [vmem:[%s4 + $0x18] sm:$0xf] %vm612, %v490
  %620 = vst.msk [vmem:[%s4 + $0x1c] sm:$0xf] %vm612, %v491
  %621 = vst.msk [vmem:[%s4 + $0x20] sm:$0xf] %vm612, %v492
  %622 = vst.msk [vmem:[%s4 + $0x24] sm:$0xf] %vm612, %v493
  %623 = vst.msk [vmem:[%s4 + $0x28] sm:$0xf] %vm612, %v494
  %624 = vst.msk [vmem:[%s4 + $0x2c] sm:$0xf] %vm612, %v495
  %625 = vst.msk [vmem:[%s4 + $0x30] sm:$0xf] %vm612, %v496
  %626 = vst.msk [vmem:[%s4 + $0x34] sm:$0xf] %vm612, %v497
  %627 = vst.msk [vmem:[%s4 + $0x38] sm:$0xf] %vm612, %v498
  %628 = vst.msk [vmem:[%s4 + $0x3c] sm:$0xf] %vm612, %v499
  %629 = vst.msk [vmem:[%s4 + $0x40] sm:$0xf] %vm612, %v500
  %630 = vst.msk [vmem:[%s4 + $0x44] sm:$0xf] %vm612, %v501
  %631 = vst.msk [vmem:[%s4 + $0x48] sm:$0xf] %vm612, %v502
  %632 = vst.msk [vmem:[%s4 + $0x4c] sm:$0xf] %vm612, %v503
  %633 = vst.msk [vmem:[%s4 + $0x50] sm:$0xf] %vm612, %v504
  %634 = vst.msk [vmem:[%s4 + $0x54] sm:$0xf] %vm612, %v505
  %635 = vst.msk [vmem:[%s4 + $0x58] sm:$0xf] %vm612, %v506
  %636 = vst.msk [vmem:[%s4 + $0x5c] sm:$0xf] %vm612, %v507
  %637 = vst.msk [vmem:[%s4 + $0x60] sm:$0xf] %vm612, %v508
  %638 = vst.msk [vmem:[%s4 + $0x64] sm:$0xf] %vm612, %v509
  %639 = vst.msk [vmem:[%s4 + $0x68] sm:$0xf] %vm612, %v510
  %640 = vst.msk [vmem:[%s4 + $0x6c] sm:$0xf] %vm612, %v511
  %641 = vst.msk [vmem:[%s4 + $0x70] sm:$0xf] %vm612, %v512
  %642 = vst.msk [vmem:[%s4 + $0x74] sm:$0xf] %vm612, %v513
  %643 = vst.msk [vmem:[%s4 + $0x78] sm:$0xf] %vm612, %v514
  %644 = vst.msk [vmem:[%s4 + $0x7c] sm:$0xf] %vm612, %v515
  %645 = vst.msk [vmem:[%s4 + $0x80] sm:$0xf] %vm612, %v516
  %646 = vst.msk [vmem:[%s4 + $0x84] sm:$0xf] %vm612, %v517
  %647 = vst.msk [vmem:[%s4 + $0x88] sm:$0xf] %vm612, %v518
  %648 = vst.msk [vmem:[%s4 + $0x8c] sm:$0xf] %vm612, %v519
  %649 = vst.msk [vmem:[%s4 + $0x90] sm:$0xf] %vm612, %v520
  %650 = vst.msk [vmem:[%s4 + $0x94] sm:$0xf] %vm612, %v521
  %651 = vst.msk [vmem:[%s4 + $0x98] sm:$0xf] %vm612, %v522
  %652 = vst.msk [vmem:[%s4 + $0x9c] sm:$0xf] %vm612, %v523
  %653 = vst.msk [vmem:[%s4 + $0xa0] sm:$0xf] %vm612, %v524
  %654 = vst.msk [vmem:[%s4 + $0xa4] sm:$0xf] %vm612, %v525
  %655 = vst.msk [vmem:[%s4 + $0xa8] sm:$0xf] %vm612, %v526
  %656 = vst.msk [vmem:[%s4 + $0xac] sm:$0xf] %vm612, %v527
  %657 = vst.msk [vmem:[%s4 + $0xb0] sm:$0xf] %vm612, %v528
  %658 = vst.msk [vmem:[%s4 + $0xb4] sm:$0xf] %vm612, %v529
  %659 = vst.msk [vmem:[%s4 + $0xb8] sm:$0xf] %vm612, %v530
  %660 = vst.msk [vmem:[%s4 + $0xbc] sm:$0xf] %vm612, %v531
  %661 = vst.msk [vmem:[%s4 + $0xc0] sm:$0xf] %vm612, %v532
  %662 = vst.msk [vmem:[%s4 + $0xc4] sm:$0xf] %vm612, %v533
  %663 = vst.msk [vmem:[%s4 + $0xc8] sm:$0xf] %vm612, %v534
  %664 = vst.msk [vmem:[%s4 + $0xcc] sm:$0xf] %vm612, %v535
  %665 = vst.msk [vmem:[%s4 + $0xd0] sm:$0xf] %vm612, %v536
  %666 = vst.msk [vmem:[%s4 + $0xd4] sm:$0xf] %vm612, %v537
  %667 = vst.msk [vmem:[%s4 + $0xd8] sm:$0xf] %vm612, %v538
  %668 = vst.msk [vmem:[%s4 + $0xdc] sm:$0xf] %vm612, %v539
  %669 = vst.msk [vmem:[%s4 + $0xe0] sm:$0xf] %vm612, %v540
  %670 = vst.msk [vmem:[%s4 + $0xe4] sm:$0xf] %vm612, %v541
  %671 = vst.msk [vmem:[%s4 + $0xe8] sm:$0xf] %vm612, %v542
  %672 = vst.msk [vmem:[%s4 + $0xec] sm:$0xf] %vm612, %v543
  %673 = vst.msk [vmem:[%s4 + $0xf0] sm:$0xf] %vm612, %v544
  %674 = vst.msk [vmem:[%s4 + $0xf4] sm:$0xf] %vm612, %v545
  %675 = vst.msk [vmem:[%s4 + $0xf8] sm:$0xf] %vm612, %v546
  %676 = vst.msk [vmem:[%s4 + $0xfc] sm:$0xf] %vm612, %v547
  // Predicated region
  $region18: #{netg_forward.19} parent=0 // pred_check
    _
  $region19: #{netg_forward.19} parent=0 // pred_check_branch
    %678 = sbr.rel (0) target = $region21
  $region20: #{netg_forward.19} parent=0 // pred_region
    _
  $region21: #{netg_forward.19} parent=0 // pred_fallthru
    _
  // Predicated region
  $region22: #{netg_forward.19} parent=0 // pred_check
    _
  $region23: #{netg_forward.19} parent=0 // pred_check_branch
    %680 = sbr.rel (0) target = $region25
  $region24: #{netg_forward.19} parent=0 // pred_region
    _
  $region25: #{netg_forward.19} parent=0 // pred_fallthru
    _

// kernel: netg_forward.20
$region0: #{netg_forward.20}
  #allocation0 [shape = 'u32[]', space=smem, size = 0x4, offset = 0x4, fixed_abs, tag = 'smem constant byte address 0x4 - core index']
  #allocation1 [shape = 'u32[144,128]{1,0:T(1,128)}', space=vmem, size = 0x12000, scoped, tag = 'internal scratch']
  %s0 = inlined_call_operand.vmem [shape: bf16[512,16], index: 0, kind: input, shape index: {}]
  %s1 = inlined_call_operand.vmem [shape: bf16[16,128], index: 1, kind: input, shape index: {}]
  %s2 = inlined_call_operand.vmem [shape: f32[512,128], index: 2, kind: output, shape index: {}]
  %s3 = sld [smem:[#allocation0]]
  $region18: #{netg_forward.20} parent=0
    _
  %s5 = ssub.s32 1, %s3
  %s6 = scalar_select 0, %s5, %s3
  // Predicated region
  $region2: #{netg_forward.20} parent=0 // pred_check
    _
  $region3: #{netg_forward.20} parent=0 // pred_check_branch
    %8 = sbr.rel (0) target = $region5
  $region4: #{netg_forward.20} parent=0 // pred_region
    _
  $region5: #{netg_forward.20} parent=0 // pred_fallthru
    _
  // Predicated region
  $region6: #{netg_forward.20} parent=0 // pred_check
    _
  $region7: #{netg_forward.20} parent=0 // pred_check_branch
    %10 = sbr.rel (0) target = $region9
  $region8: #{netg_forward.20} parent=0 // pred_region
    _
  $region9: #{netg_forward.20} parent=0 // pred_fallthru
    _
  %v12 = vld [vmem:[%s0] sm:$0xf]
  %v13 = vld [vmem:[%s0 + $0x4] sm:$0xf]
  %v14 = vld [vmem:[%s0 + $0x8] sm:$0xf]
  %v15 = vld [vmem:[%s0 + $0xc] sm:$0xf]
  %v16 = vld [vmem:[%s0 + $0x10] sm:$0xf]
  %v17 = vld [vmem:[%s0 + $0x14] sm:$0xf]
  %v18 = vld [vmem:[%s0 + $0x18] sm:$0xf]
  %v19 = vld [vmem:[%s0 + $0x1c] sm:$0xf]
  %v20 = vld [vmem:[%s0 + $0x20] sm:$0xf]
  %v21 = vld [vmem:[%s0 + $0x24] sm:$0xf]
  %v22 = vld [vmem:[%s0 + $0x28] sm:$0xf]
  %v23 = vld [vmem:[%s0 + $0x2c] sm:$0xf]
  %v24 = vld [vmem:[%s0 + $0x30] sm:$0xf]
  %v25 = vld [vmem:[%s0 + $0x34] sm:$0xf]
  %v26 = vld [vmem:[%s0 + $0x38] sm:$0xf]
  %v27 = vld [vmem:[%s0 + $0x3c] sm:$0xf]
  %v28 = vld [vmem:[%s0 + $0x40] sm:$0xf]
  %v29 = vld [vmem:[%s0 + $0x44] sm:$0xf]
  %v30 = vld [vmem:[%s0 + $0x48] sm:$0xf]
  %v31 = vld [vmem:[%s0 + $0x4c] sm:$0xf]
  %v32 = vld [vmem:[%s0 + $0x50] sm:$0xf]
  %v33 = vld [vmem:[%s0 + $0x54] sm:$0xf]
  %v34 = vld [vmem:[%s0 + $0x58] sm:$0xf]
  %v35 = vld [vmem:[%s0 + $0x5c] sm:$0xf]
  %v36 = vld [vmem:[%s0 + $0x60] sm:$0xf]
  %v37 = vld [vmem:[%s0 + $0x64] sm:$0xf]
  %v38 = vld [vmem:[%s0 + $0x68] sm:$0xf]
  %v39 = vld [vmem:[%s0 + $0x6c] sm:$0xf]
  %v40 = vld [vmem:[%s0 + $0x70] sm:$0xf]
  %v41 = vld [vmem:[%s0 + $0x74] sm:$0xf]
  %v42 = vld [vmem:[%s0 + $0x78] sm:$0xf]
  %v43 = vld [vmem:[%s0 + $0x7c] sm:$0xf]
  %v44 = vld [vmem:[%s0 + $0x80] sm:$0xf]
  %v45 = vld [vmem:[%s0 + $0x84] sm:$0xf]
  %v46 = vld [vmem:[%s0 + $0x88] sm:$0xf]
  %v47 = vld [vmem:[%s0 + $0x8c] sm:$0xf]
  %v48 = vld [vmem:[%s0 + $0x90] sm:$0xf]
  %v49 = vld [vmem:[%s0 + $0x94] sm:$0xf]
  %v50 = vld [vmem:[%s0 + $0x98] sm:$0xf]
  %v51 = vld [vmem:[%s0 + $0x9c] sm:$0xf]
  %v52 = vld [vmem:[%s0 + $0xa0] sm:$0xf]
  %v53 = vld [vmem:[%s0 + $0xa4] sm:$0xf]
  %v54 = vld [vmem:[%s0 + $0xa8] sm:$0xf]
  %v55 = vld [vmem:[%s0 + $0xac] sm:$0xf]
  %v56 = vld [vmem:[%s0 + $0xb0] sm:$0xf]
  %v57 = vld [vmem:[%s0 + $0xb4] sm:$0xf]
  %v58 = vld [vmem:[%s0 + $0xb8] sm:$0xf]
  %v59 = vld [vmem:[%s0 + $0xbc] sm:$0xf]
  %v60 = vld [vmem:[%s0 + $0xc0] sm:$0xf]
  %v61 = vld [vmem:[%s0 + $0xc4] sm:$0xf]
  %v62 = vld [vmem:[%s0 + $0xc8] sm:$0xf]
  %v63 = vld [vmem:[%s0 + $0xcc] sm:$0xf]
  %v64 = vld [vmem:[%s0 + $0xd0] sm:$0xf]
  %v65 = vld [vmem:[%s0 + $0xd4] sm:$0xf]
  %v66 = vld [vmem:[%s0 + $0xd8] sm:$0xf]
  %v67 = vld [vmem:[%s0 + $0xdc] sm:$0xf]
  %v68 = vld [vmem:[%s0 + $0xe0] sm:$0xf]
  %v69 = vld [vmem:[%s0 + $0xe4] sm:$0xf]
  %v70 = vld [vmem:[%s0 + $0xe8] sm:$0xf]
  %v71 = vld [vmem:[%s0 + $0xec] sm:$0xf]
  %v72 = vld [vmem:[%s0 + $0xf0] sm:$0xf]
  %v73 = vld [vmem:[%s0 + $0xf4] sm:$0xf]
  %v74 = vld [vmem:[%s0 + $0xf8] sm:$0xf]
  %v75 = vld [vmem:[%s0 + $0xfc] sm:$0xf]
  %v76 = vld [vmem:[%s1] sm:$0xf]
  %v77 = vld [vmem:[%s1 + $0x4] sm:$0xf]
  %v142 = vunpack.c.l.b16 %v12
  %v143 = vunpack.c.l.b16 %v13
  %v144 = vunpack.c.l.b16 %v14
  %v145 = vunpack.c.l.b16 %v15
  %v146 = vunpack.c.l.b16 %v16
  %v147 = vunpack.c.l.b16 %v17
  %v148 = vunpack.c.l.b16 %v18
  %v149 = vunpack.c.l.b16 %v19
  %v150 = vunpack.c.l.b16 %v20
  %v151 = vunpack.c.l.b16 %v21
  %v152 = vunpack.c.l.b16 %v22
  %v153 = vunpack.c.l.b16 %v23
  %v154 = vunpack.c.l.b16 %v24
  %v155 = vunpack.c.l.b16 %v25
  %v156 = vunpack.c.l.b16 %v26
  %v157 = vunpack.c.l.b16 %v27
  %v158 = vunpack.c.l.b16 %v28
  %v159 = vunpack.c.l.b16 %v29
  %v160 = vunpack.c.l.b16 %v30
  %v161 = vunpack.c.l.b16 %v31
  %v162 = vunpack.c.l.b16 %v32
  %v163 = vunpack.c.l.b16 %v33
  %v164 = vunpack.c.l.b16 %v34
  %v165 = vunpack.c.l.b16 %v35
  %v166 = vunpack.c.l.b16 %v36
  %v167 = vunpack.c.l.b16 %v37
  %v168 = vunpack.c.l.b16 %v38
  %v169 = vunpack.c.l.b16 %v39
  %v170 = vunpack.c.l.b16 %v40
  %v171 = vunpack.c.l.b16 %v41
  %v172 = vunpack.c.l.b16 %v42
  %v173 = vunpack.c.l.b16 %v43
  %v174 = vunpack.c.l.b16 %v44
  %v175 = vunpack.c.l.b16 %v45
  %v176 = vunpack.c.l.b16 %v46
  %v177 = vunpack.c.l.b16 %v47
  %v178 = vunpack.c.l.b16 %v48
  %v179 = vunpack.c.l.b16 %v49
  %v180 = vunpack.c.l.b16 %v50
  %v181 = vunpack.c.l.b16 %v51
  %v182 = vunpack.c.l.b16 %v52
  %v183 = vunpack.c.l.b16 %v53
  %v184 = vunpack.c.l.b16 %v54
  %v185 = vunpack.c.l.b16 %v55
  %v186 = vunpack.c.l.b16 %v56
  %v187 = vunpack.c.l.b16 %v57
  %v188 = vunpack.c.l.b16 %v58
  %v189 = vunpack.c.l.b16 %v59
  %v190 = vunpack.c.l.b16 %v60
  %v191 = vunpack.c.l.b16 %v61
  %v192 = vunpack.c.l.b16 %v62
  %v193 = vunpack.c.l.b16 %v63
  %v194 = vunpack.c.l.b16 %v64
  %v195 = vunpack.c.l.b16 %v65
  %v196 = vunpack.c.l.b16 %v66
  %v197 = vunpack.c.l.b16 %v67
  %v198 = vunpack.c.l.b16 %v68
  %v199 = vunpack.c.l.b16 %v69
  %v200 = vunpack.c.l.b16 %v70
  %v201 = vunpack.c.l.b16 %v71
  %v202 = vunpack.c.l.b16 %v72
  %v203 = vunpack.c.l.b16 %v73
  %v204 = vunpack.c.l.b16 %v74
  %v205 = vunpack.c.l.b16 %v75
  %v206 = vpack.c.b16 %v143, %v142
  %v207 = vpack.c.b16 %v145, %v144
  %v208 = vpack.c.b16 %v147, %v146
  %v209 = vpack.c.b16 %v149, %v148
  %v210 = vpack.c.b16 %v151, %v150
  %v211 = vpack.c.b16 %v153, %v152
  %v212 = vpack.c.b16 %v155, %v154
  %v213 = vpack.c.b16 %v157, %v156
  %v214 = vpack.c.b16 %v159, %v158
  %v215 = vpack.c.b16 %v161, %v160
  %v216 = vpack.c.b16 %v163, %v162
  %v217 = vpack.c.b16 %v165, %v164
  %v218 = vpack.c.b16 %v167, %v166
  %v219 = vpack.c.b16 %v169, %v168
  %v220 = vpack.c.b16 %v171, %v170
  %v221 = vpack.c.b16 %v173, %v172
  %v222 = vpack.c.b16 %v175, %v174
  %v223 = vpack.c.b16 %v177, %v176
  %v224 = vpack.c.b16 %v179, %v178
  %v225 = vpack.c.b16 %v181, %v180
  %v226 = vpack.c.b16 %v183, %v182
  %v227 = vpack.c.b16 %v185, %v184
  %v228 = vpack.c.b16 %v187, %v186
  %v229 = vpack.c.b16 %v189, %v188
  %v230 = vpack.c.b16 %v191, %v190
  %v231 = vpack.c.b16 %v193, %v192
  %v232 = vpack.c.b16 %v195, %v194
  %v233 = vpack.c.b16 %v197, %v196
  %v234 = vpack.c.b16 %v199, %v198
  %v235 = vpack.c.b16 %v201, %v200
  %v236 = vpack.c.b16 %v203, %v202
  %v237 = vpack.c.b16 %v205, %v204
  %v240 = vunpack.c.l.b16 %v76
  %v241 = vunpack.c.l.b16 %v77
  %v242 = vpack.c.b16 %v241, %v240
  %vm244 = vcmask 130048
  %v246 = vsel %vm244, %v206, 0
  %v249 = vsel %vm244, %v207, 0
  %v252 = vsel %vm244, %v208, 0
  %v255 = vsel %vm244, %v209, 0
  %v258 = vsel %vm244, %v210, 0
  %v261 = vsel %vm244, %v211, 0
  %v264 = vsel %vm244, %v212, 0
  %v267 = vsel %vm244, %v213, 0
  %v270 = vsel %vm244, %v214, 0
  %v273 = vsel %vm244, %v215, 0
  %v276 = vsel %vm244, %v216, 0
  %v279 = vsel %vm244, %v217, 0
  %v282 = vsel %vm244, %v218, 0
  %v285 = vsel %vm244, %v219, 0
  %v288 = vsel %vm244, %v220, 0
  %v291 = vsel %vm244, %v221, 0
  %v294 = vsel %vm244, %v222, 0
  %v297 = vsel %vm244, %v223, 0
  %v300 = vsel %vm244, %v224, 0
  %v303 = vsel %vm244, %v225, 0
  %v306 = vsel %vm244, %v226, 0
  %v309 = vsel %vm244, %v227, 0
  %v312 = vsel %vm244, %v228, 0
  %v315 = vsel %vm244, %v229, 0
  %v318 = vsel %vm244, %v230, 0
  %v321 = vsel %vm244, %v231, 0
  %v324 = vsel %vm244, %v232, 0
  %v327 = vsel %vm244, %v233, 0
  %v330 = vsel %vm244, %v234, 0
  %v333 = vsel %vm244, %v235, 0
  %v336 = vsel %vm244, %v236, 0
  %v339 = vsel %vm244, %v237, 0
  %341 = vmatprep.subr.bf16.mxu0 0
  %342 = vmatpush1.bf16.msra.mxu0 0
  %343 = vmatprep.subr.bf16.mxu0 0
  %344 = vmatpush1.bf16.msra.mxu0 0
  %345 = vmatprep.subr.bf16.mxu0 0
  %346 = vmatpush1.bf16.msra.mxu0 0
  %347 = vmatprep.subr.bf16.mxu0 0
  %348 = vmatpush1.bf16.msra.mxu0 0
  %349 = vmatprep.subr.bf16.mxu0 0
  %350 = vmatpush1.bf16.msra.mxu0 0
  %351 = vmatprep.subr.bf16.mxu0 0
  %352 = vmatpush1.bf16.msra.mxu0 0
  %353 = vmatprep.subr.bf16.mxu0 0
  %354 = vmatpush1.bf16.msra.mxu0 0
  %355 = vmatprep.subr.bf16.mxu0 0
  %356 = vmatpush1.bf16.msra.mxu0 %v242
  %357 = vmatprep.subr.bf16.mxu0 0
  %358 = vmatpush2.bf16.msra.mxu0 0
  %359 = vmatprep.subr.bf16.mxu0 0
  %360 = vmatpush2.bf16.msra.mxu0 0
  %361 = vmatprep.subr.bf16.mxu0 0
  %362 = vmatpush2.bf16.msra.mxu0 0
  %363 = vmatprep.subr.bf16.mxu0 0
  %364 = vmatpush2.bf16.msra.mxu0 0
  %365 = vmatprep.subr.bf16.mxu0 0
  %366 = vmatpush2.bf16.msra.mxu0 0
  %367 = vmatprep.subr.bf16.mxu0 0
  %368 = vmatpush2.bf16.msra.mxu0 0
  %369 = vmatprep.subr.bf16.mxu0 0
  %370 = vmatpush2.bf16.msra.mxu0 0
  %371 = vmatprep.subr.bf16.mxu0 0
  %372 = vmatpush2.bf16.msra.mxu0 0
  %373 = vmatprep.mubr.bf16.mxu0 0
  %374 = vmatmul.mubr.bf16.gmra.mxu0 %v246
  %v375 = vpop.f32.mrf.mxu0
  %v376 = vadd.f32 0.0, %v375
  %v377 = vpop.f32.mrf.mxu0
  %v378 = vpop.f32.mrf.mxu0
  %v379 = vadd.f32 0.0, %v378
  %v380 = vpop.f32.mrf.mxu0
  %381 = vmatprep.mubr.bf16.mxu0 0
  %382 = vmatmul.mubr.bf16.gmra.mxu0 %v249
  %v383 = vpop.f32.mrf.mxu0
  %v384 = vadd.f32 0.0, %v383
  %v385 = vpop.f32.mrf.mxu0
  %v386 = vpop.f32.mrf.mxu0
  %v387 = vadd.f32 0.0, %v386
  %v388 = vpop.f32.mrf.mxu0
  %389 = vmatprep.mubr.bf16.mxu0 0
  %390 = vmatmul.mubr.bf16.gmra.mxu0 %v252
  %v391 = vpop.f32.mrf.mxu0
  %v392 = vadd.f32 0.0, %v391
  %v393 = vpop.f32.mrf.mxu0
  %v394 = vpop.f32.mrf.mxu0
  %v395 = vadd.f32 0.0, %v394
  %v396 = vpop.f32.mrf.mxu0
  %397 = vmatprep.mubr.bf16.mxu0 0
  %398 = vmatmul.mubr.bf16.gmra.mxu0 %v255
  %v399 = vpop.f32.mrf.mxu0
  %v400 = vadd.f32 0.0, %v399
  %v401 = vpop.f32.mrf.mxu0
  %v402 = vpop.f32.mrf.mxu0
  %v403 = vadd.f32 0.0, %v402
  %v404 = vpop.f32.mrf.mxu0
  %405 = vmatprep.mubr.bf16.mxu0 0
  %406 = vmatmul.mubr.bf16.gmra.mxu0 %v258
  %v407 = vpop.f32.mrf.mxu0
  %v408 = vadd.f32 0.0, %v407
  %v409 = vpop.f32.mrf.mxu0
  %v410 = vpop.f32.mrf.mxu0
  %v411 = vadd.f32 0.0, %v410
  %v412 = vpop.f32.mrf.mxu0
  %413 = vmatprep.mubr.bf16.mxu0 0
  %414 = vmatmul.mubr.bf16.gmra.mxu0 %v261
  %v415 = vpop.f32.mrf.mxu0
  %v416 = vadd.f32 0.0, %v415
  %v417 = vpop.f32.mrf.mxu0
  %v418 = vpop.f32.mrf.mxu0
  %v419 = vadd.f32 0.0, %v418
  %v420 = vpop.f32.mrf.mxu0
  %421 = vmatprep.mubr.bf16.mxu0 0
  %422 = vmatmul.mubr.bf16.gmra.mxu0 %v264
  %v423 = vpop.f32.mrf.mxu0
  %v424 = vadd.f32 0.0, %v423
  %v425 = vpop.f32.mrf.mxu0
  %v426 = vpop.f32.mrf.mxu0
  %v427 = vadd.f32 0.0, %v426
  %v428 = vpop.f32.mrf.mxu0
  %429 = vmatprep.mubr.bf16.mxu0 0
  %430 = vmatmul.mubr.bf16.gmra.mxu0 %v267
  %v431 = vpop.f32.mrf.mxu0
  %v432 = vadd.f32 0.0, %v431
  %v433 = vpop.f32.mrf.mxu0
  %v434 = vpop.f32.mrf.mxu0
  %v435 = vadd.f32 0.0, %v434
  %v436 = vpop.f32.mrf.mxu0
  %437 = vmatprep.mubr.bf16.mxu0 0
  %438 = vmatmul.mubr.bf16.gmra.mxu0 %v270
  %v439 = vpop.f32.mrf.mxu0
  %v440 = vadd.f32 0.0, %v439
  %v441 = vpop.f32.mrf.mxu0
  %v442 = vpop.f32.mrf.mxu0
  %v443 = vadd.f32 0.0, %v442
  %v444 = vpop.f32.mrf.mxu0
  %445 = vmatprep.mubr.bf16.mxu0 0
  %446 = vmatmul.mubr.bf16.gmra.mxu0 %v273
  %v447 = vpop.f32.mrf.mxu0
  %v448 = vadd.f32 0.0, %v447
  %v449 = vpop.f32.mrf.mxu0
  %v450 = vpop.f32.mrf.mxu0
  %v451 = vadd.f32 0.0, %v450
  %v452 = vpop.f32.mrf.mxu0
  %453 = vmatprep.mubr.bf16.mxu0 0
  %454 = vmatmul.mubr.bf16.gmra.mxu0 %v276
  %v455 = vpop.f32.mrf.mxu0
  %v456 = vadd.f32 0.0, %v455
  %v457 = vpop.f32.mrf.mxu0
  %v458 = vpop.f32.mrf.mxu0
  %v459 = vadd.f32 0.0, %v458
  %v460 = vpop.f32.mrf.mxu0
  %461 = vmatprep.mubr.bf16.mxu0 0
  %462 = vmatmul.mubr.bf16.gmra.mxu0 %v279
  %v463 = vpop.f32.mrf.mxu0
  %v464 = vadd.f32 0.0, %v463
  %v465 = vpop.f32.mrf.mxu0
  %v466 = vpop.f32.mrf.mxu0
  %v467 = vadd.f32 0.0, %v466
  %v468 = vpop.f32.mrf.mxu0
  %469 = vmatprep.mubr.bf16.mxu0 0
  %470 = vmatmul.mubr.bf16.gmra.mxu0 %v282
  %v471 = vpop.f32.mrf.mxu0
  %v472 = vadd.f32 0.0, %v471
  %v473 = vpop.f32.mrf.mxu0
  %v474 = vpop.f32.mrf.mxu0
  %v475 = vadd.f32 0.0, %v474
  %v476 = vpop.f32.mrf.mxu0
  %477 = vmatprep.mubr.bf16.mxu0 0
  %478 = vmatmul.mubr.bf16.gmra.mxu0 %v285
  %v479 = vpop.f32.mrf.mxu0
  %v480 = vadd.f32 0.0, %v479
  %v481 = vpop.f32.mrf.mxu0
  %v482 = vpop.f32.mrf.mxu0
  %v483 = vadd.f32 0.0, %v482
  %v484 = vpop.f32.mrf.mxu0
  %485 = vmatprep.mubr.bf16.mxu0 0
  %486 = vmatmul.mubr.bf16.gmra.mxu0 %v288
  %v487 = vpop.f32.mrf.mxu0
  %v488 = vadd.f32 0.0, %v487
  %v489 = vpop.f32.mrf.mxu0
  %v490 = vpop.f32.mrf.mxu0
  %v491 = vadd.f32 0.0, %v490
  %v492 = vpop.f32.mrf.mxu0
  %493 = vmatprep.mubr.bf16.mxu0 0
  %494 = vmatmul.mubr.bf16.gmra.mxu0 %v291
  %v495 = vpop.f32.mrf.mxu0
  %v496 = vadd.f32 0.0, %v495
  %v497 = vpop.f32.mrf.mxu0
  %v498 = vpop.f32.mrf.mxu0
  %v499 = vadd.f32 0.0, %v498
  %v500 = vpop.f32.mrf.mxu0
  %501 = vmatprep.mubr.bf16.mxu0 0
  %502 = vmatmul.mubr.bf16.gmra.mxu0 %v294
  %v503 = vpop.f32.mrf.mxu0
  %v504 = vadd.f32 0.0, %v503
  %v505 = vpop.f32.mrf.mxu0
  %v506 = vpop.f32.mrf.mxu0
  %v507 = vadd.f32 0.0, %v506
  %v508 = vpop.f32.mrf.mxu0
  %509 = vmatprep.mubr.bf16.mxu0 0
  %510 = vmatmul.mubr.bf16.gmra.mxu0 %v297
  %v511 = vpop.f32.mrf.mxu0
  %v512 = vadd.f32 0.0, %v511
  %v513 = vpop.f32.mrf.mxu0
  %v514 = vpop.f32.mrf.mxu0
  %v515 = vadd.f32 0.0, %v514
  %v516 = vpop.f32.mrf.mxu0
  %517 = vmatprep.mubr.bf16.mxu0 0
  %518 = vmatmul.mubr.bf16.gmra.mxu0 %v300
  %v519 = vpop.f32.mrf.mxu0
  %v520 = vadd.f32 0.0, %v519
  %v521 = vpop.f32.mrf.mxu0
  %v522 = vpop.f32.mrf.mxu0
  %v523 = vadd.f32 0.0, %v522
  %v524 = vpop.f32.mrf.mxu0
  %525 = vmatprep.mubr.bf16.mxu0 0
  %526 = vmatmul.mubr.bf16.gmra.mxu0 %v303
  %v527 = vpop.f32.mrf.mxu0
  %v528 = vadd.f32 0.0, %v527
  %v529 = vpop.f32.mrf.mxu0
  %v530 = vpop.f32.mrf.mxu0
  %v531 = vadd.f32 0.0, %v530
  %v532 = vpop.f32.mrf.mxu0
  %533 = vmatprep.mubr.bf16.mxu0 0
  %534 = vmatmul.mubr.bf16.gmra.mxu0 %v306
  %v535 = vpop.f32.mrf.mxu0
  %v536 = vadd.f32 0.0, %v535
  %v537 = vpop.f32.mrf.mxu0
  %v538 = vpop.f32.mrf.mxu0
  %v539 = vadd.f32 0.0, %v538
  %v540 = vpop.f32.mrf.mxu0
  %541 = vmatprep.mubr.bf16.mxu0 0
  %542 = vmatmul.mubr.bf16.gmra.mxu0 %v309
  %v543 = vpop.f32.mrf.mxu0
  %v544 = vadd.f32 0.0, %v543
  %v545 = vpop.f32.mrf.mxu0
  %v546 = vpop.f32.mrf.mxu0
  %v547 = vadd.f32 0.0, %v546
  %v548 = vpop.f32.mrf.mxu0
  %549 = vmatprep.mubr.bf16.mxu0 0
  %550 = vmatmul.mubr.bf16.gmra.mxu0 %v312
  %v551 = vpop.f32.mrf.mxu0
  %v552 = vadd.f32 0.0, %v551
  %v553 = vpop.f32.mrf.mxu0
  %v554 = vpop.f32.mrf.mxu0
  %v555 = vadd.f32 0.0, %v554
  %v556 = vpop.f32.mrf.mxu0
  %557 = vmatprep.mubr.bf16.mxu0 0
  %558 = vmatmul.mubr.bf16.gmra.mxu0 %v315
  %v559 = vpop.f32.mrf.mxu0
  %v560 = vadd.f32 0.0, %v559
  %v561 = vpop.f32.mrf.mxu0
  %v562 = vpop.f32.mrf.mxu0
  %v563 = vadd.f32 0.0, %v562
  %v564 = vpop.f32.mrf.mxu0
  %565 = vmatprep.mubr.bf16.mxu0 0
  %566 = vmatmul.mubr.bf16.gmra.mxu0 %v318
  %v567 = vpop.f32.mrf.mxu0
  %v568 = vadd.f32 0.0, %v567
  %v569 = vpop.f32.mrf.mxu0
  %v570 = vpop.f32.mrf.mxu0
  %v571 = vadd.f32 0.0, %v570
  %v572 = vpop.f32.mrf.mxu0
  %573 = vmatprep.mubr.bf16.mxu0 0
  %574 = vmatmul.mubr.bf16.gmra.mxu0 %v321
  %v575 = vpop.f32.mrf.mxu0
  %v576 = vadd.f32 0.0, %v575
  %v577 = vpop.f32.mrf.mxu0
  %v578 = vpop.f32.mrf.mxu0
  %v579 = vadd.f32 0.0, %v578
  %v580 = vpop.f32.mrf.mxu0
  %581 = vmatprep.mubr.bf16.mxu0 0
  %582 = vmatmul.mubr.bf16.gmra.mxu0 %v324
  %v583 = vpop.f32.mrf.mxu0
  %v584 = vadd.f32 0.0, %v583
  %v585 = vpop.f32.mrf.mxu0
  %v586 = vpop.f32.mrf.mxu0
  %v587 = vadd.f32 0.0, %v586
  %v588 = vpop.f32.mrf.mxu0
  %589 = vmatprep.mubr.bf16.mxu0 0
  %590 = vmatmul.mubr.bf16.gmra.mxu0 %v327
  %v591 = vpop.f32.mrf.mxu0
  %v592 = vadd.f32 0.0, %v591
  %v593 = vpop.f32.mrf.mxu0
  %v594 = vpop.f32.mrf.mxu0
  %v595 = vadd.f32 0.0, %v594
  %v596 = vpop.f32.mrf.mxu0
  %597 = vmatprep.mubr.bf16.mxu0 0
  %598 = vmatmul.mubr.bf16.gmra.mxu0 %v330
  %v599 = vpop.f32.mrf.mxu0
  %v600 = vadd.f32 0.0, %v599
  %v601 = vpop.f32.mrf.mxu0
  %v602 = vpop.f32.mrf.mxu0
  %v603 = vadd.f32 0.0, %v602
  %v604 = vpop.f32.mrf.mxu0
  %605 = vmatprep.mubr.bf16.mxu0 0
  %606 = vmatmul.mubr.bf16.gmra.mxu0 %v333
  %v607 = vpop.f32.mrf.mxu0
  %v608 = vadd.f32 0.0, %v607
  %v609 = vpop.f32.mrf.mxu0
  %v610 = vpop.f32.mrf.mxu0
  %v611 = vadd.f32 0.0, %v610
  %v612 = vpop.f32.mrf.mxu0
  %613 = vmatprep.mubr.bf16.mxu0 0
  %614 = vmatmul.mubr.bf16.gmra.mxu0 %v336
  %v615 = vpop.f32.mrf.mxu0
  %v616 = vadd.f32 0.0, %v615
  %v617 = vpop.f32.mrf.mxu0
  %v618 = vpop.f32.mrf.mxu0
  %v619 = vadd.f32 0.0, %v618
  %v620 = vpop.f32.mrf.mxu0
  %621 = vmatprep.mubr.bf16.mxu0 0
  %622 = vmatmul.mubr.bf16.gmra.mxu0 %v339
  %v623 = vpop.f32.mrf.mxu0
  %v624 = vadd.f32 0.0, %v623
  %v625 = vpop.f32.mrf.mxu0
  %v626 = vpop.f32.mrf.mxu0
  %v627 = vadd.f32 0.0, %v626
  %v628 = vpop.f32.mrf.mxu0
  %629 = vdwg.mxu0
  %630 = vst [vmem:[%s2] sm:$0xff] %v376
  %631 = vst [vmem:[%s2 + $0x8] sm:$0xff] %v379
  %632 = vst [vmem:[%s2 + $0x10] sm:$0xff] %v384
  %633 = vst [vmem:[%s2 + $0x18] sm:$0xff] %v387
  %634 = vst [vmem:[%s2 + $0x20] sm:$0xff] %v392
  %635 = vst [vmem:[%s2 + $0x28] sm:$0xff] %v395
  %636 = vst [vmem:[%s2 + $0x30] sm:$0xff] %v400
  %637 = vst [vmem:[%s2 + $0x38] sm:$0xff] %v403
  %638 = vst [vmem:[%s2 + $0x40] sm:$0xff] %v408
  %639 = vst [vmem:[%s2 + $0x48] sm:$0xff] %v411
  %640 = vst [vmem:[%s2 + $0x50] sm:$0xff] %v416
  %641 = vst [vmem:[%s2 + $0x58] sm:$0xff] %v419
  %642 = vst [vmem:[%s2 + $0x60] sm:$0xff] %v424
  %643 = vst [vmem:[%s2 + $0x68] sm:$0xff] %v427
  %644 = vst [vmem:[%s2 + $0x70] sm:$0xff] %v432
  %645 = vst [vmem:[%s2 + $0x78] sm:$0xff] %v435
  %646 = vst [vmem:[%s2 + $0x80] sm:$0xff] %v440
  %647 = vst [vmem:[%s2 + $0x88] sm:$0xff] %v443
  %648 = vst [vmem:[%s2 + $0x90] sm:$0xff] %v448
  %649 = vst [vmem:[%s2 + $0x98] sm:$0xff] %v451
  %650 = vst [vmem:[%s2 + $0xa0] sm:$0xff] %v456
  %651 = vst [vmem:[%s2 + $0xa8] sm:$0xff] %v459
  %652 = vst [vmem:[%s2 + $0xb0] sm:$0xff] %v464
  %653 = vst [vmem:[%s2 + $0xb8] sm:$0xff] %v467
  %654 = vst [vmem:[%s2 + $0xc0] sm:$0xff] %v472
  %655 = vst [vmem:[%s2 + $0xc8] sm:$0xff] %v475
  %656 = vst [vmem:[%s2 + $0xd0] sm:$0xff] %v480
  %657 = vst [vmem:[%s2 + $0xd8] sm:$0xff] %v483
  %658 = vst [vmem:[%s2 + $0xe0] sm:$0xff] %v488
  %659 = vst [vmem:[%s2 + $0xe8] sm:$0xff] %v491
  %660 = vst [vmem:[%s2 + $0xf0] sm:$0xff] %v496
  %661 = vst [vmem:[%s2 + $0xf8] sm:$0xff] %v499
  %662 = vst [vmem:[%s2 + $0x100] sm:$0xff] %v504
  %663 = vst [vmem:[%s2 + $0x108] sm:$0xff] %v507
  %664 = vst [vmem:[%s2 + $0x110] sm:$0xff] %v512
  %665 = vst [vmem:[%s2 + $0x118] sm:$0xff] %v515
  %666 = vst [vmem:[%s2 + $0x120] sm:$0xff] %v520
  %667 = vst [vmem:[%s2 + $0x128] sm:$0xff] %v523
  %668 = vst [vmem:[%s2 + $0x130] sm:$0xff] %v528
  %669 = vst [vmem:[%s2 + $0x138] sm:$0xff] %v531
  %670 = vst [vmem:[%s2 + $0x140] sm:$0xff] %v536
  %671 = vst [vmem:[%s2 + $0x148] sm:$0xff] %v539
  %672 = vst [vmem:[%s2 + $0x150] sm:$0xff] %v544
  %673 = vst [vmem:[%s2 + $0x158] sm:$0xff] %v547
  %674 = vst [vmem:[%s2 + $0x160] sm:$0xff] %v552
  %675 = vst [vmem:[%s2 + $0x168] sm:$0xff] %v555
  %676 = vst [vmem:[%s2 + $0x170] sm:$0xff] %v560
  %677 = vst [vmem:[%s2 + $0x178] sm:$0xff] %v563
  %678 = vst [vmem:[%s2 + $0x180] sm:$0xff] %v568
  %679 = vst [vmem:[%s2 + $0x188] sm:$0xff] %v571
  %680 = vst [vmem:[%s2 + $0x190] sm:$0xff] %v576
  %681 = vst [vmem:[%s2 + $0x198] sm:$0xff] %v579
  %682 = vst [vmem:[%s2 + $0x1a0] sm:$0xff] %v584
  %683 = vst [vmem:[%s2 + $0x1a8] sm:$0xff] %v587
  %684 = vst [vmem:[%s2 + $0x1b0] sm:$0xff] %v592
  %685 = vst [vmem:[%s2 + $0x1b8] sm:$0xff] %v595
  %686 = vst [vmem:[%s2 + $0x1c0] sm:$0xff] %v600
  %687 = vst [vmem:[%s2 + $0x1c8] sm:$0xff] %v603
  %688 = vst [vmem:[%s2 + $0x1d0] sm:$0xff] %v608
  %689 = vst [vmem:[%s2 + $0x1d8] sm:$0xff] %v611
  %690 = vst [vmem:[%s2 + $0x1e0] sm:$0xff] %v616
  %691 = vst [vmem:[%s2 + $0x1e8] sm:$0xff] %v619
  %692 = vst [vmem:[%s2 + $0x1f0] sm:$0xff] %v624
  %693 = vst [vmem:[%s2 + $0x1f8] sm:$0xff] %v627
  // Predicated region
  $region10: #{netg_forward.20} parent=0 // pred_check
    _
  $region11: #{netg_forward.20} parent=0 // pred_check_branch
    %695 = sbr.rel (0) target = $region13
  $region12: #{netg_forward.20} parent=0 // pred_region
    _
  $region13: #{netg_forward.20} parent=0 // pred_fallthru
    _
  // Predicated region
  $region14: #{netg_forward.20} parent=0 // pred_check
    _
  $region15: #{netg_forward.20} parent=0 // pred_check_branch
    %697 = sbr.rel (0) target = $region17
  $region16: #{netg_forward.20} parent=0 // pred_region
    _
  $region17: #{netg_forward.20} parent=0 // pred_fallthru
    _

// kernel: netg_forward.21
$region0: #{netg_forward.21}
  #allocation0 [shape = 'u32[]', space=smem, size = 0x4, offset = 0x4, fixed_abs, tag = 'smem constant byte address 0x4 - core index']
  #allocation1 [shape = 'u32[144,128]{1,0:T(1,128)}', space=vmem, size = 0x12000, scoped, tag = 'internal scratch']
  %s0 = inlined_call_operand.vmem [shape: f32[6,1024], index: 0, kind: input, shape index: {}]
  %s1 = inlined_call_operand.vmem [shape: f32[6,1024], index: 1, kind: output, shape index: {}]
  %s2 = sld [smem:[#allocation0]]
  $region14: #{netg_forward.21} parent=0
    _
  %s4 = ssub.s32 1, %s2
  %s5 = scalar_select 0, %s4, %s2
  // Predicated region
  $region2: #{netg_forward.21} parent=0 // pred_check
    _
  $region3: #{netg_forward.21} parent=0 // pred_check_branch
    %7 = sbr.rel (0) target = $region5
  $region4: #{netg_forward.21} parent=0 // pred_region
    _
  $region5: #{netg_forward.21} parent=0 // pred_fallthru
    _
  %v8 = vld [vmem:[%s0] sm:$0x3f]
  %v9 = vld [vmem:[%s0 + $0x8] sm:$0x3f]
  %v10 = vld [vmem:[%s0 + $0x10] sm:$0x3f]
  %v11 = vld [vmem:[%s0 + $0x18] sm:$0x3f]
  %v12 = vld [vmem:[%s0 + $0x20] sm:$0x3f]
  %v13 = vld [vmem:[%s0 + $0x28] sm:$0x3f]
  %v14 = vld [vmem:[%s0 + $0x30] sm:$0x3f]
  %v15 = vld [vmem:[%s0 + $0x38] sm:$0x3f]
  %v16 = vsub.f32 0.0, %v8
  %v17 = vsub.f32 0.0, %v9
  %v18 = vsub.f32 0.0, %v10
  %v19 = vsub.f32 0.0, %v11
  %v20 = vsub.f32 0.0, %v12
  %v21 = vsub.f32 0.0, %v13
  %v22 = vsub.f32 0.0, %v14
  %v23 = vsub.f32 0.0, %v15
  %v24 = vmul.f32 %v16, 1.442695
  %v25 = vpow.pop %v24
  %v26 = vmul.f32 %v17, 1.442695
  %v27 = vpow.pop %v26
  %v28 = vmul.f32 %v18, 1.442695
  %v29 = vpow.pop %v28
  %v30 = vmul.f32 %v19, 1.442695
  %v31 = vpow.pop %v30
  %v32 = vmul.f32 %v20, 1.442695
  %v33 = vpow.pop %v32
  %v34 = vmul.f32 %v21, 1.442695
  %v35 = vpow.pop %v34
  %v36 = vmul.f32 %v22, 1.442695
  %v37 = vpow.pop %v36
  %v38 = vmul.f32 %v23, 1.442695
  %v39 = vpow.pop %v38
  %v40 = vadd.f32 %v25, 1.0
  %v41 = vadd.f32 %v27, 1.0
  %v42 = vadd.f32 %v29, 1.0
  %v43 = vadd.f32 %v31, 1.0
  %v44 = vadd.f32 %v33, 1.0
  %v45 = vadd.f32 %v35, 1.0
  %v46 = vadd.f32 %v37, 1.0
  %v47 = vadd.f32 %v39, 1.0
  %v48 = vrcp.pop %v40
  %v49 = vrcp.pop %v41
  %v50 = vrcp.pop %v42
  %v51 = vrcp.pop %v43
  %v52 = vrcp.pop %v44
  %v53 = vrcp.pop %v45
  %v54 = vrcp.pop %v46
  %v55 = vrcp.pop %v47
  %56 = vst [vmem:[%s1] sm:$0x3f] %v48
  %57 = vst [vmem:[%s1 + $0x8] sm:$0x3f] %v49
  %58 = vst [vmem:[%s1 + $0x10] sm:$0x3f] %v50
  %59 = vst [vmem:[%s1 + $0x18] sm:$0x3f] %v51
  %60 = vst [vmem:[%s1 + $0x20] sm:$0x3f] %v52
  %61 = vst [vmem:[%s1 + $0x28] sm:$0x3f] %v53
  %62 = vst [vmem:[%s1 + $0x30] sm:$0x3f] %v54
  %63 = vst [vmem:[%s1 + $0x38] sm:$0x3f] %v55
  // Predicated region
  $region6: #{netg_forward.21} parent=0 // pred_check
    _
  $region7: #{netg_forward.21} parent=0 // pred_check_branch
    %65 = sbr.rel (0) target = $region9
  $region8: #{netg_forward.21} parent=0 // pred_region
    _
  $region9: #{netg_forward.21} parent=0 // pred_fallthru
    _
  // Predicated region
  $region10: #{netg_forward.21} parent=0 // pred_check
    _
  $region11: #{netg_forward.21} parent=0 // pred_check_branch
    %67 = sbr.rel (0) target = $region13
  $region12: #{netg_forward.21} parent=0 // pred_region
    _
  $region13: #{netg_forward.21} parent=0 // pred_fallthru
    _

</llo_original>
